<compile_context>
chip_gen: v7x
topology: tpu7x:2x2x1
jax: 0.10.0
libtpu: 0.0.40
codegen_flags: <defaults>
</compile_context>

<pallas_src>
import functools

import jax
import jax.numpy as jnp
from jax import lax
from jax.experimental import pallas as pl
from jax.experimental.pallas import tpu as pltpu


def _round_up(x, m):
    return (x + m - 1) // m * m


def _vmem_capacity_bytes():
    """Per-TensorCore VMEM capacity; conservative 64 MiB fallback."""
    try:
        return int(pltpu.get_tpu_info().vmem_capacity_bytes)
    except Exception:
        return 64 * 1024 * 1024


@functools.lru_cache(maxsize=1)
def _buffered_one_supported():
    """Probe whether pipeline_mode=pl.Buffered(1) compiles/runs here."""
    def _k(x_ref, o_ref):
        o_ref[...] = x_ref[...] + 1.0
    try:
        spec = pl.BlockSpec((8, 128), lambda i: (0, 0),
                            pipeline_mode=pl.Buffered(1))
        f = pl.pallas_call(
            _k, out_shape=jax.ShapeDtypeStruct((8, 128), jnp.float32),
            grid=(1,), in_specs=[spec],
            out_specs=pl.BlockSpec((8, 128), lambda i: (0, 0)))
        jax.block_until_ready(f(jnp.zeros((8, 128), jnp.float32)))
        return True
    except Exception:
        return False


def _choose_tile_h(H, W, Cp, budget_bytes, with_im2col):
    """Pick a row-tile TH (divides H) whose per-step scratch fits the budget,
    preferring 8-aligned / MXU-sized matmul M dims and >= 2 tiles per image."""
    def scratch_bytes(th):
        b = ((th + 4) * (W + 2) * Cp + (th + 2) * (W + 2) * Cp) * 2  # slabs
        if with_im2col:
            b += (th + 2) * W * 9 * Cp * 2                           # im2col
        return b

    divisors = [d for d in range(2, H + 1) if H % d == 0] or [H]
    fitting = [d for d in divisors if scratch_bytes(d) <= budget_bytes]
    cand = fitting or [min(divisors)]   # TODO(synk): hard-fail / pad H instead

    def pref(d):
        m = d * W
        return ((m % 8 == 0) and (((d + 2) * W) % 8 == 0), m % 8 == 0, d)

    th = max(cand, key=pref)
    # Prefer >= 2 row tiles (still MXU-sized) so both v7x TensorCores get work
    # even at batch size 1.
    if th == H:
        smaller = [d for d in cand if d < H and d * W >= 128]
        if smaller:
            th = max(smaller, key=pref)
    return th


# ----------------------------------------------------------------------------
# Pallas kernel: one (batch, row-tile) step of the basic block.
# ----------------------------------------------------------------------------
def _ibasic_block_kernel(x_ref, w1_ref, w2_ref,
                         s1_ref, b1_ref, b2_ref, b3_ref, a_ref,
                         o_ref, t1_ref, t2_ref, p_ref=None, *, use_im2col):
    # x_ref  : (1, H, W, Cp)        full image (resident across row tiles)
    # w*_ref : (9*Cp, Cp)  bf16     conv weights * following BN scale,
    #                               im2col row order (ky, kx, cin)
    # s1,b1  : (1, Cp)     f32      folded bn1 scale / bias
    # b2,b3  : (1, Cp)     f32      folded bn2 / bn3 biases (scales in weights)
    # a_ref  : (1, Cp)     f32      PReLU slope
    # o_ref  : (1, TH, W, Cp)       output row tile (global rows [r0, r0+TH))
    # t1_ref : (TH+4, W+2, Cp) bf16 bn1 activations with zero-padded borders
    # t2_ref : (TH+2, W+2, Cp) bf16 PReLU activations with zero-padded borders
    # p_ref  : (TH+2, W, 9*Cp) bf16 im2col patches (only when use_im2col)
    h = pl.program_id(1)
    nh = pl.num_programs(1)
    TH = o_ref.shape[1]
    W = o_ref.shape[2]
    Cp = o_ref.shape[3]
    r0 = h * TH
    f32 = jnp.float32
    bf16 = jnp.bfloat16

    s1 = s1_ref[...]
    b1 = b1_ref[...]

    def bn1(rows):               # rows: (k, W, Cp) slice of x
        return (rows.astype(f32) * s1 + b1).astype(bf16)

    # ---- zero-padded bn1 slab for global rows [r0-2, r0+TH+2) ---------------
    # TODO(synk): pad columns could be zeroed once per core instead of per step
    # (needs a persistent per-core flag that is reset per pallas_call).
    t1_ref[:, 0:1, :] = jnp.zeros((TH + 4, 1, Cp), bf16)          # left pad
    t1_ref[:, W + 1:W + 2, :] = jnp.zeros((TH + 4, 1, Cp), bf16)  # right pad
    t1_ref[2:TH + 2, 1:W + 1, :] = bn1(x_ref[0, pl.ds(r0, TH), :, :])

    @pl.when(h > 0)
    def _():
        t1_ref[0:2, 1:W + 1, :] = bn1(x_ref[0, pl.ds(r0 - 2, 2), :, :])

    @pl.when(h == 0)
    def _():
        t1_ref[0:2, :, :] = jnp.zeros((2, W + 2, Cp), bf16)

    @pl.when(h < nh - 1)
    def _():
        t1_ref[TH + 2:TH + 4, 1:W + 1, :] = bn1(x_ref[0, pl.ds(r0 + TH, 2), :, :])

    @pl.when(h == nh - 1)
    def _():
        t1_ref[TH + 2:TH + 4, :, :] = jnp.zeros((2, W + 2, Cp), bf16)

    def conv3x3(slab_ref, rows, w_ref):
        """3x3 SAME conv over `rows` output rows -> (rows*W, Cp) f32."""
        M = rows * W
        if use_im2col:
            # One fused K = 9*Cp matmul; p_ref is 3-D so each patch store is a
            # plain (rows, W, Cp) slice assignment (no strided reshape-copy).
            for dy in range(3):
                for dx in range(3):
                    k = dy * 3 + dx
                    p_ref[0:rows, :, k * Cp:(k + 1) * Cp] = (
                        slab_ref[dy:dy + rows, dx:dx + W, :])
            return jnp.dot(p_ref[0:rows].reshape(M, 9 * Cp), w_ref[...],
                           preferred_element_type=f32)
        # Per-tap accumulation: nine K = Cp matmuls, no im2col store traffic.
        acc = None
        for dy in range(3):
            for dx in range(3):
                k = dy * 3 + dx
                patch = slab_ref[dy:dy + rows, dx:dx + W, :].reshape(M, Cp)
                part = jnp.dot(patch, w_ref[k * Cp:(k + 1) * Cp, :],
                               preferred_element_type=f32)
                acc = part if acc is None else acc + part
        return acc

    # ---- conv1 (bn2 scale folded into w1) + bn2 bias + PReLU (f32) ----------
    a1 = conv3x3(t1_ref, TH + 2, w1_ref)
    y = a1 + b2_ref[...]
    y = jnp.where(y > 0, y, a_ref[...] * y)

    # ---- stage PReLU output (global rows [r0-1, r0+TH+1)) with zero padding --
    t2_ref[:, 0:1, :] = jnp.zeros((TH + 2, 1, Cp), bf16)
    t2_ref[:, W + 1:W + 2, :] = jnp.zeros((TH + 2, 1, Cp), bf16)
    t2_ref[:, 1:W + 1, :] = y.astype(bf16).reshape(TH + 2, W, Cp)

    @pl.when(h == 0)             # row r0-1 lies above the image -> zero pad
    def _():
        t2_ref[0:1, :, :] = jnp.zeros((1, W + 2, Cp), bf16)

    @pl.when(h == nh - 1)        # row r0+TH lies below the image -> zero pad
    def _():
        t2_ref[TH + 1:TH + 2, :, :] = jnp.zeros((1, W + 2, Cp), bf16)

    # ---- conv2 (bn3 scale folded into w2) + bn3 bias + residual --------------
    a2 = conv3x3(t2_ref, TH, w2_ref)
    res = x_ref[0, pl.ds(r0, TH), :, :].astype(f32)
    out = a2.reshape(TH, W, Cp) + b3_ref[...] + res
    o_ref[0] = out.astype(o_ref.dtype)


# ----------------------------------------------------------------------------
# NHWC entry point (preferred: no layout round-trips).
# ----------------------------------------------------------------------------
def ibasic_block_pallas_nhwc(x_nhwc, params, eps=1e-5, *, force_per_tap=False,
                             return_padded=False):
    N, H, W, C = x_nhwc.shape
    Cp = _round_up(C, 128)                 # lane-dense channels (>=128)

    # Fused K=9*Cp im2col matmul only for Cp==128 (fills a 256-deep MXU ~2x
    # better than K=128 taps); per-tap accumulation for Cp>=256 (same MXU
    # pushes, no im2col scratch / 9x store traffic).
    use_im2col = (Cp <= 128) and not force_per_tap

    vmem_cap = _vmem_capacity_bytes()
    budget = (3 * 1024 * 1024) if vmem_cap <= 80 * 1024 * 1024 else (8 * 1024 * 1024)
    TH = _choose_tile_h(H, W, Cp, budget, use_im2col)
    nh = H // TH

    def bn_fold(p):
        gamma, beta, mean, var = p
        scale = (gamma / jnp.sqrt(var + eps)).astype(jnp.float32)
        bias = (beta - mean * scale).astype(jnp.float32)
        return scale, bias

    def pad_vec(v):
        return jnp.pad(v, (0, Cp - C)).reshape(1, Cp).astype(jnp.float32)

    s1, b1 = bn_fold(params["bn1"])
    s2, b2 = bn_fold(params["bn2"])
    s3, b3 = bn_fold(params["bn3"])

    def prep_w(w_hwio, out_scale):         # fold next-BN scale, (3,3,C,C)->(9*Cp,Cp)
        w = w_hwio.astype(jnp.float32) * out_scale[None, None, None, :]
        w = jnp.pad(w, ((0, 0), (0, 0), (0, Cp - C), (0, Cp - C)))
        return w.reshape(9 * Cp, Cp).astype(jnp.bfloat16)

    w1 = prep_w(params["w1_hwio"], s2)
    w2 = prep_w(params["w2_hwio"], s3)
    s1p, b1p = pad_vec(s1), pad_vec(b1)
    b2p, b3p = pad_vec(b2), pad_vec(b3)
    alphap = pad_vec(params["alpha"])
    xp = jnp.pad(x_nhwc, ((0, 0), (0, 0), (0, 0), (0, Cp - C)))

    single_buf = _buffered_one_supported()
    const_kw = dict(pipeline_mode=pl.Buffered(1)) if single_buf else {}

    def const(shape):
        return pl.BlockSpec(shape, lambda n, h: (0,) * len(shape), **const_kw)

    # VMEM budget estimate (pipelined inputs/outputs + scratches).
    bpe = xp.dtype.itemsize
    wbuf = 1 if single_buf else 2
    est = (2 * H * W * Cp * bpe                    # x block (double-buffered)
           + 2 * TH * W * Cp * bpe                 # out block
           + wbuf * 2 * 9 * Cp * Cp * 2            # w1, w2 (bf16)
           + wbuf * 5 * Cp * 4                     # folded BN / alpha vectors
           + (TH + 4) * (W + 2) * Cp * 2           # t1 scratch
           + (TH + 2) * (W + 2) * Cp * 2           # t2 scratch
           + (1 if use_im2col else 0) * (TH + 2) * W * 9 * Cp * 2)
    vmem_limit = min(int(max(16 * 1024 * 1024, 1.5 * est)),
                     int(0.9 * vmem_cap))

    scratch = [pltpu.VMEM((TH + 4, W + 2, Cp), jnp.bfloat16),    # bn1 slab
               pltpu.VMEM((TH + 2, W + 2, Cp), jnp.bfloat16)]    # prelu slab
    if use_im2col:
        scratch.append(pltpu.VMEM((TH + 2, W, 9 * Cp), jnp.bfloat16))

    out = pl.pallas_call(
        functools.partial(_ibasic_block_kernel, use_im2col=use_im2col),
        out_shape=jax.ShapeDtypeStruct((N, H, W, Cp), x_nhwc.dtype),
        grid=(N, nh),
        in_specs=[
            pl.BlockSpec((1, H, W, Cp), lambda n, h: (n, 0, 0, 0)),   # x
            const((9 * Cp, Cp)),                                      # w1
            const((9 * Cp, Cp)),                                      # w2
            const((1, Cp)), const((1, Cp)),                           # s1, b1
            const((1, Cp)), const((1, Cp)),                           # b2, b3
            const((1, Cp)),                                           # alpha
        ],
        out_specs=pl.BlockSpec((1, TH, W, Cp), lambda n, h: (n, h, 0, 0)),
        scratch_shapes=scratch,
        compiler_params=pltpu.CompilerParams(
            dimension_semantics=("parallel", "parallel"),
            vmem_limit_bytes=vmem_limit),
    )(xp, w1, w2, s1p, b1p, b2p, b3p, alphap)

    if return_padded:
        return out                 # keep padded-Cp NHWC for the next block
    return out[..., :C]


# ----------------------------------------------------------------------------
# NCHW wrapper for PyTorch parity.
# TODO(synk): drop these transposes by keeping the surrounding model in NHWC.
# ----------------------------------------------------------------------------
def ibasic_block_pallas(x_nchw, params, eps=1e-5, **kwargs):
    x = jnp.transpose(x_nchw, (0, 2, 3, 1))
    out = ibasic_block_pallas_nhwc(x, params, eps=eps, **kwargs)
    return jnp.transpose(out, (0, 3, 1, 2))


# ----------------------------------------------------------------------------
# Pure-JAX f32 reference (same math, XLA convs) for correctness checking.
# ----------------------------------------------------------------------------
def ibasic_block_ref(x_nchw, params, eps=1e-5):
    x = jnp.transpose(x_nchw, (0, 2, 3, 1))

    def bn(v, p):
        gamma, beta, mean, var = p
        return (v - mean) / jnp.sqrt(var + eps) * gamma + beta

    def conv(v, w):
        return lax.conv_general_dilated(
            v, w, window_strides=(1, 1), padding="SAME",
            dimension_numbers=("NHWC", "HWIO", "NHWC"))

    t = bn(x, params["bn1"])
    t = conv(t, params["w1_hwio"])
    t = bn(t, params["bn2"])
    t = jnp.where(t > 0, t, params["alpha"] * t)
    t = conv(t, params["w2_hwio"])
    t = bn(t, params["bn3"])
    t = t + x
    return jnp.transpose(t, (0, 3, 1, 2))


# ----------------------------------------------------------------------------
# Deterministic parameter init (shapes from IBasicBlock.__init__).
# ----------------------------------------------------------------------------
def make_params(key, inplanes, planes):
    assert inplanes == planes, "downsample=None path requires inplanes == planes"
    ks = jax.random.split(key, 15)

    def bn_params(k0, k1, k2, k3, c):
        gamma = jax.random.uniform(k0, (c,), jnp.float32, 0.5, 1.5)
        beta = 0.1 * jax.random.normal(k1, (c,), jnp.float32)
        mean = 0.1 * jax.random.normal(k2, (c,), jnp.float32)
        var = jax.random.uniform(k3, (c,), jnp.float32, 0.5, 1.5)
        return (gamma, beta, mean, var)

    # PyTorch conv weights are OIHW; convert to HWIO for the NHWC kernel.
    w1_oihw = 0.1 * jax.random.normal(ks[0], (planes, inplanes, 3, 3), jnp.float32)
    w2_oihw = 0.1 * jax.random.normal(ks[1], (planes, planes, 3, 3), jnp.float32)
    return {
        "w1_hwio": jnp.transpose(w1_oihw, (2, 3, 1, 0)),
        "w2_hwio": jnp.transpose(w2_oihw, (2, 3, 1, 0)),
        "bn1": bn_params(ks[2], ks[3], ks[4], ks[5], inplanes),
        "bn2": bn_params(ks[6], ks[7], ks[8], ks[9], planes),
        "bn3": bn_params(ks[10], ks[11], ks[12], ks[13], planes),
        "alpha": jax.random.uniform(ks[14], (planes,), jnp.float32, 0.1, 0.3),
    }


if __name__ == "__main__":
    key = jax.random.PRNGKey(0)
    k_x, k_p = jax.random.split(key)

    N, C, Hs, Ws = 2, 4, 16, 16          # batch=2, inplanes=planes=4, 16x16
    x = jax.random.normal(k_x, (N, C, Hs, Ws), jnp.float32)
    params = make_params(k_p, inplanes=C, planes=C)

    ref = ibasic_block_ref(x, params)

    # Default path (Cp=128 -> fused K=9*Cp im2col matmul).
    run = jax.jit(functools.partial(ibasic_block_pallas, params=params))
    out = jax.block_until_ready(run(x))
    assert out.shape == (N, C, Hs, Ws) and out.dtype == jnp.float32
    # bf16 MXU inputs with f32 accumulation -> loosened tolerance vs f32 ref.
    assert jnp.allclose(out, ref, atol=5e-2, rtol=5e-2), (
        f"im2col path: max abs err = {jnp.max(jnp.abs(out - ref))}")

    # Also exercise the per-tap conv path used for the Cp>=256 stages.
    run_pt = jax.jit(functools.partial(ibasic_block_pallas, params=params,
                                       force_per_tap=True))
    out_pt = jax.block_until_ready(run_pt(x))
    assert jnp.allclose(out_pt, ref, atol=5e-2, rtol=5e-2), (
        f"per-tap path: max abs err = {jnp.max(jnp.abs(out_pt - ref))}")

    print("KERNEL_OK")
</pallas_src>

<mosaic_0001>
module attributes {stable_mosaic.version = 11 : i64} {
  func.func @_ibasic_block_kernel(%arg0: i32, %arg1: i32, %arg2: memref<1x16x16x128xf32, #tpu.memory_space<vmem>>, %arg3: memref<1152x128xbf16, #tpu.memory_space<vmem>>, %arg4: memref<1152x128xbf16, #tpu.memory_space<vmem>>, %arg5: memref<1x128xf32, #tpu.memory_space<vmem>>, %arg6: memref<1x128xf32, #tpu.memory_space<vmem>>, %arg7: memref<1x128xf32, #tpu.memory_space<vmem>>, %arg8: memref<1x128xf32, #tpu.memory_space<vmem>>, %arg9: memref<1x128xf32, #tpu.memory_space<vmem>>, %arg10: memref<1x8x16x128xf32, #tpu.memory_space<vmem>>, %arg11: memref<12x18x128xbf16, #tpu.memory_space<vmem>>, %arg12: memref<10x18x128xbf16, #tpu.memory_space<vmem>>, %arg13: memref<10x16x1152xbf16, #tpu.memory_space<vmem>>) attributes {dimension_semantics = [#tpu.dimension_semantics<parallel>, #tpu.dimension_semantics<parallel>], iteration_bounds = array<i64: 2, 2>, scalar_prefetch = 0 : i64, scratch_operands = 3 : i64, tpu.core_type = #tpu.core_type<tc>, window_params = [{transform_indices = @transform_0, window_bounds = array<i64: 1, 16, 16, 128>}, {pipeline_mode = #tpu.pipeline_mode<synchronous>, transform_indices = @transform_1, window_bounds = array<i64: 1152, 128>}, {pipeline_mode = #tpu.pipeline_mode<synchronous>, transform_indices = @transform_2, window_bounds = array<i64: 1152, 128>}, {pipeline_mode = #tpu.pipeline_mode<synchronous>, transform_indices = @transform_3, window_bounds = array<i64: 1, 128>}, {pipeline_mode = #tpu.pipeline_mode<synchronous>, transform_indices = @transform_4, window_bounds = array<i64: 1, 128>}, {pipeline_mode = #tpu.pipeline_mode<synchronous>, transform_indices = @transform_5, window_bounds = array<i64: 1, 128>}, {pipeline_mode = #tpu.pipeline_mode<synchronous>, transform_indices = @transform_6, window_bounds = array<i64: 1, 128>}, {pipeline_mode = #tpu.pipeline_mode<synchronous>, transform_indices = @transform_7, window_bounds = array<i64: 1, 128>}, {transform_indices = @transform_8, window_bounds = array<i64: 1, 8, 16, 128>}]} {
    %c8_i32 = arith.constant 8 : i32
    %0 = arith.muli %arg1, %c8_i32 : i32
    %c0 = arith.constant 0 : index
    %c0_0 = arith.constant 0 : index
    %1 = vector.load %arg5[%c0, %c0_0] : memref<1x128xf32, #tpu.memory_space<vmem>>, vector<1x128xf32>
    %c0_1 = arith.constant 0 : index
    %c0_2 = arith.constant 0 : index
    %2 = vector.load %arg6[%c0_1, %c0_2] : memref<1x128xf32, #tpu.memory_space<vmem>>, vector<1x128xf32>
    %cst = arith.constant 0.000000e+00 : bf16
    %3 = vector.broadcast %cst : bf16 to vector<12x1x128xbf16>
    %c0_3 = arith.constant 0 : index
    %c0_4 = arith.constant 0 : index
    %c0_5 = arith.constant 0 : index
    %4 = vector.load %arg11[%c0_3, %c0_4, %c0_5] : memref<12x18x128xbf16, #tpu.memory_space<vmem>>, vector<12x1x128xbf16>
    tpu.vector_store %arg11[%c0_3, %c0_4, %c0_5], %3 {strides = array<i32>} : memref<12x18x128xbf16, #tpu.memory_space<vmem>>, vector<12x1x128xbf16>,
    %cst_6 = arith.constant 0.000000e+00 : bf16
    %5 = vector.broadcast %cst_6 : bf16 to vector<12x1x128xbf16>
    %c0_7 = arith.constant 0 : index
    %c17 = arith.constant 17 : index
    %c0_8 = arith.constant 0 : index
    %6 = vector.load %arg11[%c0_7, %c17, %c0_8] : memref<12x18x128xbf16, #tpu.memory_space<vmem>>, vector<12x1x128xbf16>
    tpu.vector_store %arg11[%c0_7, %c17, %c0_8], %5 {strides = array<i32>} : memref<12x18x128xbf16, #tpu.memory_space<vmem>>, vector<12x1x128xbf16>,
    %c0_9 = arith.constant 0 : index
    %7 = arith.index_cast %0 : i32 to index
    %c0_10 = arith.constant 0 : index
    %c0_11 = arith.constant 0 : index
    %8 = vector.load %arg2[%c0_9, %7, %c0_10, %c0_11] : memref<1x16x16x128xf32, #tpu.memory_space<vmem>>, vector<1x8x16x128xf32>
    %9 = vector.shape_cast %8 : vector<1x8x16x128xf32> to vector<8x16x128xf32>
    %10 = vector.shape_cast %1 : vector<1x128xf32> to vector<1x1x128xf32>
    %11 = vector.broadcast %10 : vector<1x1x128xf32> to vector<8x16x128xf32>
    %12 = arith.mulf %9, %11 : vector<8x16x128xf32>
    %13 = vector.shape_cast %2 : vector<1x128xf32> to vector<1x1x128xf32>
    %14 = vector.broadcast %13 : vector<1x1x128xf32> to vector<8x16x128xf32>
    %15 = arith.addf %12, %14 : vector<8x16x128xf32>
    %16 = arith.truncf %15 : vector<8x16x128xf32> to vector<8x16x128xbf16>
    %c2 = arith.constant 2 : index
    %c1 = arith.constant 1 : index
    %c0_12 = arith.constant 0 : index
    %17 = vector.load %arg11[%c2, %c1, %c0_12] : memref<12x18x128xbf16, #tpu.memory_space<vmem>>, vector<8x16x128xbf16>
    tpu.vector_store %arg11[%c2, %c1, %c0_12], %16 {strides = array<i32>} : memref<12x18x128xbf16, #tpu.memory_space<vmem>>, vector<8x16x128xbf16>,
    %c0_i32 = arith.constant 0 : i32
    %18 = arith.cmpi sgt, %arg1, %c0_i32 : i32
    %19 = arith.extui %18 : i1 to i32
    %c0_i32_13 = arith.constant 0 : i32
    %20 = arith.cmpi ne, %19, %c0_i32_13 : i32
    scf.if %20 {
      %c2_i32 = arith.constant 2 : i32
      %108 = arith.subi %0, %c2_i32 : i32
      %c0_160 = arith.constant 0 : index
      %109 = arith.index_cast %108 : i32 to index
      %c0_161 = arith.constant 0 : index
      %c0_162 = arith.constant 0 : index
      %110 = vector.load %arg2[%c0_160, %109, %c0_161, %c0_162] : memref<1x16x16x128xf32, #tpu.memory_space<vmem>>, vector<1x2x16x128xf32>
      %111 = vector.shape_cast %110 : vector<1x2x16x128xf32> to vector<2x16x128xf32>
      %112 = vector.shape_cast %1 : vector<1x128xf32> to vector<1x1x128xf32>
      %113 = vector.broadcast %112 : vector<1x1x128xf32> to vector<2x16x128xf32>
      %114 = arith.mulf %111, %113 : vector<2x16x128xf32>
      %115 = vector.shape_cast %2 : vector<1x128xf32> to vector<1x1x128xf32>
      %116 = vector.broadcast %115 : vector<1x1x128xf32> to vector<2x16x128xf32>
      %117 = arith.addf %114, %116 : vector<2x16x128xf32>
      %118 = arith.truncf %117 : vector<2x16x128xf32> to vector<2x16x128xbf16>
      %c0_163 = arith.constant 0 : index
      %c1_164 = arith.constant 1 : index
      %c0_165 = arith.constant 0 : index
      %119 = vector.load %arg11[%c0_163, %c1_164, %c0_165] : memref<12x18x128xbf16, #tpu.memory_space<vmem>>, vector<2x16x128xbf16>
      tpu.vector_store %arg11[%c0_163, %c1_164, %c0_165], %118 {strides = array<i32>} : memref<12x18x128xbf16, #tpu.memory_space<vmem>>, vector<2x16x128xbf16>,
    } else {
    }
    %c0_i32_14 = arith.constant 0 : i32
    %21 = arith.cmpi eq, %arg1, %c0_i32_14 : i32
    %22 = arith.extui %21 : i1 to i32
    %c0_i32_15 = arith.constant 0 : i32
    %23 = arith.cmpi ne, %22, %c0_i32_15 : i32
    scf.if %23 {
      %cst_160 = arith.constant 0.000000e+00 : bf16
      %108 = vector.broadcast %cst_160 : bf16 to vector<2x18x128xbf16>
      %c0_161 = arith.constant 0 : index
      %c0_162 = arith.constant 0 : index
      %c0_163 = arith.constant 0 : index
      %109 = vector.load %arg11[%c0_161, %c0_162, %c0_163] : memref<12x18x128xbf16, #tpu.memory_space<vmem>>, vector<2x18x128xbf16>
      tpu.vector_store %arg11[%c0_161, %c0_162, %c0_163], %108 {strides = array<i32>} : memref<12x18x128xbf16, #tpu.memory_space<vmem>>, vector<2x18x128xbf16>,
    } else {
    }
    %c1_i32 = arith.constant 1 : i32
    %24 = arith.cmpi slt, %arg1, %c1_i32 : i32
    %25 = arith.extui %24 : i1 to i32
    %c0_i32_16 = arith.constant 0 : i32
    %26 = arith.cmpi ne, %25, %c0_i32_16 : i32
    scf.if %26 {
      %c8_i32_160 = arith.constant 8 : i32
      %108 = arith.addi %0, %c8_i32_160 : i32
      %c0_161 = arith.constant 0 : index
      %109 = arith.index_cast %108 : i32 to index
      %c0_162 = arith.constant 0 : index
      %c0_163 = arith.constant 0 : index
      %110 = vector.load %arg2[%c0_161, %109, %c0_162, %c0_163] : memref<1x16x16x128xf32, #tpu.memory_space<vmem>>, vector<1x2x16x128xf32>
      %111 = vector.shape_cast %110 : vector<1x2x16x128xf32> to vector<2x16x128xf32>
      %112 = vector.shape_cast %1 : vector<1x128xf32> to vector<1x1x128xf32>
      %113 = vector.broadcast %112 : vector<1x1x128xf32> to vector<2x16x128xf32>
      %114 = arith.mulf %111, %113 : vector<2x16x128xf32>
      %115 = vector.shape_cast %2 : vector<1x128xf32> to vector<1x1x128xf32>
      %116 = vector.broadcast %115 : vector<1x1x128xf32> to vector<2x16x128xf32>
      %117 = arith.addf %114, %116 : vector<2x16x128xf32>
      %118 = arith.truncf %117 : vector<2x16x128xf32> to vector<2x16x128xbf16>
      %c10 = arith.constant 10 : index
      %c1_164 = arith.constant 1 : index
      %c0_165 = arith.constant 0 : index
      %119 = vector.load %arg11[%c10, %c1_164, %c0_165] : memref<12x18x128xbf16, #tpu.memory_space<vmem>>, vector<2x16x128xbf16>
      tpu.vector_store %arg11[%c10, %c1_164, %c0_165], %118 {strides = array<i32>} : memref<12x18x128xbf16, #tpu.memory_space<vmem>>, vector<2x16x128xbf16>,
    } else {
    }
    %c1_i32_17 = arith.constant 1 : i32
    %27 = arith.cmpi eq, %arg1, %c1_i32_17 : i32
    %28 = arith.extui %27 : i1 to i32
    %c0_i32_18 = arith.constant 0 : i32
    %29 = arith.cmpi ne, %28, %c0_i32_18 : i32
    scf.if %29 {
      %cst_160 = arith.constant 0.000000e+00 : bf16
      %108 = vector.broadcast %cst_160 : bf16 to vector<2x18x128xbf16>
      %c10 = arith.constant 10 : index
      %c0_161 = arith.constant 0 : index
      %c0_162 = arith.constant 0 : index
      %109 = vector.load %arg11[%c10, %c0_161, %c0_162] : memref<12x18x128xbf16, #tpu.memory_space<vmem>>, vector<2x18x128xbf16>
      tpu.vector_store %arg11[%c10, %c0_161, %c0_162], %108 {strides = array<i32>} : memref<12x18x128xbf16, #tpu.memory_space<vmem>>, vector<2x18x128xbf16>,
    } else {
    }
    %c0_19 = arith.constant 0 : index
    %c0_20 = arith.constant 0 : index
    %c0_21 = arith.constant 0 : index
    %30 = vector.load %arg11[%c0_19, %c0_20, %c0_21] : memref<12x18x128xbf16, #tpu.memory_space<vmem>>, vector<10x16x128xbf16>
    %c0_22 = arith.constant 0 : index
    %c0_23 = arith.constant 0 : index
    %c0_24 = arith.constant 0 : index
    %31 = vector.load %arg13[%c0_22, %c0_23, %c0_24] : memref<10x16x1152xbf16, #tpu.memory_space<vmem>>, vector<10x16x128xbf16>
    tpu.vector_store %arg13[%c0_22, %c0_23, %c0_24], %30 {strides = array<i32>} : memref<10x16x1152xbf16, #tpu.memory_space<vmem>>, vector<10x16x128xbf16>,
    %c0_25 = arith.constant 0 : index
    %c1_26 = arith.constant 1 : index
    %c0_27 = arith.constant 0 : index
    %32 = vector.load %arg11[%c0_25, %c1_26, %c0_27] : memref<12x18x128xbf16, #tpu.memory_space<vmem>>, vector<10x16x128xbf16>
    %c0_28 = arith.constant 0 : index
    %c0_29 = arith.constant 0 : index
    %c128 = arith.constant 128 : index
    %33 = vector.load %arg13[%c0_28, %c0_29, %c128] : memref<10x16x1152xbf16, #tpu.memory_space<vmem>>, vector<10x16x128xbf16>
    tpu.vector_store %arg13[%c0_28, %c0_29, %c128], %32 {strides = array<i32>} : memref<10x16x1152xbf16, #tpu.memory_space<vmem>>, vector<10x16x128xbf16>,
    %c0_30 = arith.constant 0 : index
    %c2_31 = arith.constant 2 : index
    %c0_32 = arith.constant 0 : index
    %34 = vector.load %arg11[%c0_30, %c2_31, %c0_32] : memref<12x18x128xbf16, #tpu.memory_space<vmem>>, vector<10x16x128xbf16>
    %c0_33 = arith.constant 0 : index
    %c0_34 = arith.constant 0 : index
    %c256 = arith.constant 256 : index
    %35 = vector.load %arg13[%c0_33, %c0_34, %c256] : memref<10x16x1152xbf16, #tpu.memory_space<vmem>>, vector<10x16x128xbf16>
    tpu.vector_store %arg13[%c0_33, %c0_34, %c256], %34 {strides = array<i32>} : memref<10x16x1152xbf16, #tpu.memory_space<vmem>>, vector<10x16x128xbf16>,
    %c1_35 = arith.constant 1 : index
    %c0_36 = arith.constant 0 : index
    %c0_37 = arith.constant 0 : index
    %36 = vector.load %arg11[%c1_35, %c0_36, %c0_37] : memref<12x18x128xbf16, #tpu.memory_space<vmem>>, vector<10x16x128xbf16>
    %c0_38 = arith.constant 0 : index
    %c0_39 = arith.constant 0 : index
    %c384 = arith.constant 384 : index
    %37 = vector.load %arg13[%c0_38, %c0_39, %c384] : memref<10x16x1152xbf16, #tpu.memory_space<vmem>>, vector<10x16x128xbf16>
    tpu.vector_store %arg13[%c0_38, %c0_39, %c384], %36 {strides = array<i32>} : memref<10x16x1152xbf16, #tpu.memory_space<vmem>>, vector<10x16x128xbf16>,
    %c1_40 = arith.constant 1 : index
    %c1_41 = arith.constant 1 : index
    %c0_42 = arith.constant 0 : index
    %38 = vector.load %arg11[%c1_40, %c1_41, %c0_42] : memref<12x18x128xbf16, #tpu.memory_space<vmem>>, vector<10x16x128xbf16>
    %c0_43 = arith.constant 0 : index
    %c0_44 = arith.constant 0 : index
    %c512 = arith.constant 512 : index
    %39 = vector.load %arg13[%c0_43, %c0_44, %c512] : memref<10x16x1152xbf16, #tpu.memory_space<vmem>>, vector<10x16x128xbf16>
    tpu.vector_store %arg13[%c0_43, %c0_44, %c512], %38 {strides = array<i32>} : memref<10x16x1152xbf16, #tpu.memory_space<vmem>>, vector<10x16x128xbf16>,
    %c1_45 = arith.constant 1 : index
    %c2_46 = arith.constant 2 : index
    %c0_47 = arith.constant 0 : index
    %40 = vector.load %arg11[%c1_45, %c2_46, %c0_47] : memref<12x18x128xbf16, #tpu.memory_space<vmem>>, vector<10x16x128xbf16>
    %c0_48 = arith.constant 0 : index
    %c0_49 = arith.constant 0 : index
    %c640 = arith.constant 640 : index
    %41 = vector.load %arg13[%c0_48, %c0_49, %c640] : memref<10x16x1152xbf16, #tpu.memory_space<vmem>>, vector<10x16x128xbf16>
    tpu.vector_store %arg13[%c0_48, %c0_49, %c640], %40 {strides = array<i32>} : memref<10x16x1152xbf16, #tpu.memory_space<vmem>>, vector<10x16x128xbf16>,
    %c2_50 = arith.constant 2 : index
    %c0_51 = arith.constant 0 : index
    %c0_52 = arith.constant 0 : index
    %42 = vector.load %arg11[%c2_50, %c0_51, %c0_52] : memref<12x18x128xbf16, #tpu.memory_space<vmem>>, vector<10x16x128xbf16>
    %c0_53 = arith.constant 0 : index
    %c0_54 = arith.constant 0 : index
    %c768 = arith.constant 768 : index
    %43 = vector.load %arg13[%c0_53, %c0_54, %c768] : memref<10x16x1152xbf16, #tpu.memory_space<vmem>>, vector<10x16x128xbf16>
    tpu.vector_store %arg13[%c0_53, %c0_54, %c768], %42 {strides = array<i32>} : memref<10x16x1152xbf16, #tpu.memory_space<vmem>>, vector<10x16x128xbf16>,
    %c2_55 = arith.constant 2 : index
    %c1_56 = arith.constant 1 : index
    %c0_57 = arith.constant 0 : index
    %44 = vector.load %arg11[%c2_55, %c1_56, %c0_57] : memref<12x18x128xbf16, #tpu.memory_space<vmem>>, vector<10x16x128xbf16>
    %c0_58 = arith.constant 0 : index
    %c0_59 = arith.constant 0 : index
    %c896 = arith.constant 896 : index
    %45 = vector.load %arg13[%c0_58, %c0_59, %c896] : memref<10x16x1152xbf16, #tpu.memory_space<vmem>>, vector<10x16x128xbf16>
    tpu.vector_store %arg13[%c0_58, %c0_59, %c896], %44 {strides = array<i32>} : memref<10x16x1152xbf16, #tpu.memory_space<vmem>>, vector<10x16x128xbf16>,
    %c2_60 = arith.constant 2 : index
    %c2_61 = arith.constant 2 : index
    %c0_62 = arith.constant 0 : index
    %46 = vector.load %arg11[%c2_60, %c2_61, %c0_62] : memref<12x18x128xbf16, #tpu.memory_space<vmem>>, vector<10x16x128xbf16>
    %c0_63 = arith.constant 0 : index
    %c0_64 = arith.constant 0 : index
    %c1024 = arith.constant 1024 : index
    %47 = vector.load %arg13[%c0_63, %c0_64, %c1024] : memref<10x16x1152xbf16, #tpu.memory_space<vmem>>, vector<10x16x128xbf16>
    tpu.vector_store %arg13[%c0_63, %c0_64, %c1024], %46 {strides = array<i32>} : memref<10x16x1152xbf16, #tpu.memory_space<vmem>>, vector<10x16x128xbf16>,
    %c0_65 = arith.constant 0 : index
    %c0_66 = arith.constant 0 : index
    %c0_67 = arith.constant 0 : index
    %48 = vector.load %arg13[%c0_65, %c0_66, %c0_67] : memref<10x16x1152xbf16, #tpu.memory_space<vmem>>, vector<10x16x1152xbf16>
    %49 = vector.shape_cast %48 : vector<10x16x1152xbf16> to vector<160x1152xbf16>
    %c0_68 = arith.constant 0 : index
    %c0_69 = arith.constant 0 : index
    %50 = vector.load %arg3[%c0_68, %c0_69] : memref<1152x128xbf16, #tpu.memory_space<vmem>>, vector<1152x128xbf16>
    %cst_70 = arith.constant dense<0.000000e+00> : vector<160x128xf32>
    %51 = tpu.matmul %49, %50, %cst_70 {dimension_numbers = #tpu.dot_dimension_numbers<[1], [0], [0], [1], [0, 0, 1, 1], [], []>} : vector<160x1152xbf16>, vector<1152x128xbf16>, vector<160x128xf32> -> vector<160x128xf32>
    %c0_71 = arith.constant 0 : index
    %c0_72 = arith.constant 0 : index
    %52 = vector.load %arg7[%c0_71, %c0_72] : memref<1x128xf32, #tpu.memory_space<vmem>>, vector<1x128xf32>
    %53 = vector.broadcast %52 : vector<1x128xf32> to vector<160x128xf32>
    %54 = arith.addf %51, %53 : vector<160x128xf32>
    %cst_73 = arith.constant 0.000000e+00 : f32
    %55 = vector.broadcast %cst_73 : f32 to vector<160x128xf32>
    %56 = arith.cmpf ogt, %54, %55 : vector<160x128xf32>
    %c0_74 = arith.constant 0 : index
    %c0_75 = arith.constant 0 : index
    %57 = vector.load %arg9[%c0_74, %c0_75] : memref<1x128xf32, #tpu.memory_space<vmem>>, vector<1x128xf32>
    %58 = vector.broadcast %57 : vector<1x128xf32> to vector<160x128xf32>
    %59 = arith.mulf %58, %54 : vector<160x128xf32>
    %60 = arith.select %56, %54, %59 : vector<160x128xi1>, vector<160x128xf32>
    %cst_76 = arith.constant 0.000000e+00 : bf16
    %61 = vector.broadcast %cst_76 : bf16 to vector<10x1x128xbf16>
    %c0_77 = arith.constant 0 : index
    %c0_78 = arith.constant 0 : index
    %c0_79 = arith.constant 0 : index
    %62 = vector.load %arg12[%c0_77, %c0_78, %c0_79] : memref<10x18x128xbf16, #tpu.memory_space<vmem>>, vector<10x1x128xbf16>
    tpu.vector_store %arg12[%c0_77, %c0_78, %c0_79], %61 {strides = array<i32>} : memref<10x18x128xbf16, #tpu.memory_space<vmem>>, vector<10x1x128xbf16>,
    %cst_80 = arith.constant 0.000000e+00 : bf16
    %63 = vector.broadcast %cst_80 : bf16 to vector<10x1x128xbf16>
    %c0_81 = arith.constant 0 : index
    %c17_82 = arith.constant 17 : index
    %c0_83 = arith.constant 0 : index
    %64 = vector.load %arg12[%c0_81, %c17_82, %c0_83] : memref<10x18x128xbf16, #tpu.memory_space<vmem>>, vector<10x1x128xbf16>
    tpu.vector_store %arg12[%c0_81, %c17_82, %c0_83], %63 {strides = array<i32>} : memref<10x18x128xbf16, #tpu.memory_space<vmem>>, vector<10x1x128xbf16>,
    %65 = arith.truncf %60 : vector<160x128xf32> to vector<160x128xbf16>
    %66 = vector.shape_cast %65 : vector<160x128xbf16> to vector<10x16x128xbf16>
    %c0_84 = arith.constant 0 : index
    %c1_85 = arith.constant 1 : index
    %c0_86 = arith.constant 0 : index
    %67 = vector.load %arg12[%c0_84, %c1_85, %c0_86] : memref<10x18x128xbf16, #tpu.memory_space<vmem>>, vector<10x16x128xbf16>
    tpu.vector_store %arg12[%c0_84, %c1_85, %c0_86], %66 {strides = array<i32>} : memref<10x18x128xbf16, #tpu.memory_space<vmem>>, vector<10x16x128xbf16>,
    %c0_i32_87 = arith.constant 0 : i32
    %68 = arith.cmpi eq, %arg1, %c0_i32_87 : i32
    %69 = arith.extui %68 : i1 to i32
    %c0_i32_88 = arith.constant 0 : i32
    %70 = arith.cmpi ne, %69, %c0_i32_88 : i32
    scf.if %70 {
      %cst_160 = arith.constant 0.000000e+00 : bf16
      %108 = vector.broadcast %cst_160 : bf16 to vector<1x18x128xbf16>
      %c0_161 = arith.constant 0 : index
      %c0_162 = arith.constant 0 : index
      %c0_163 = arith.constant 0 : index
      %109 = vector.load %arg12[%c0_161, %c0_162, %c0_163] : memref<10x18x128xbf16, #tpu.memory_space<vmem>>, vector<1x18x128xbf16>
      tpu.vector_store %arg12[%c0_161, %c0_162, %c0_163], %108 {strides = array<i32>} : memref<10x18x128xbf16, #tpu.memory_space<vmem>>, vector<1x18x128xbf16>,
    } else {
    }
    %c1_i32_89 = arith.constant 1 : i32
    %71 = arith.cmpi eq, %arg1, %c1_i32_89 : i32
    %72 = arith.extui %71 : i1 to i32
    %c0_i32_90 = arith.constant 0 : i32
    %73 = arith.cmpi ne, %72, %c0_i32_90 : i32
    scf.if %73 {
      %cst_160 = arith.constant 0.000000e+00 : bf16
      %108 = vector.broadcast %cst_160 : bf16 to vector<1x18x128xbf16>
      %c9 = arith.constant 9 : index
      %c0_161 = arith.constant 0 : index
      %c0_162 = arith.constant 0 : index
      %109 = vector.load %arg12[%c9, %c0_161, %c0_162] : memref<10x18x128xbf16, #tpu.memory_space<vmem>>, vector<1x18x128xbf16>
      tpu.vector_store %arg12[%c9, %c0_161, %c0_162], %108 {strides = array<i32>} : memref<10x18x128xbf16, #tpu.memory_space<vmem>>, vector<1x18x128xbf16>,
    } else {
    }
    %c0_91 = arith.constant 0 : index
    %c0_92 = arith.constant 0 : index
    %c0_93 = arith.constant 0 : index
    %74 = vector.load %arg12[%c0_91, %c0_92, %c0_93] : memref<10x18x128xbf16, #tpu.memory_space<vmem>>, vector<8x16x128xbf16>
    %c0_94 = arith.constant 0 : index
    %c0_95 = arith.constant 0 : index
    %c0_96 = arith.constant 0 : index
    %75 = vector.load %arg13[%c0_94, %c0_95, %c0_96] : memref<10x16x1152xbf16, #tpu.memory_space<vmem>>, vector<8x16x128xbf16>
    tpu.vector_store %arg13[%c0_94, %c0_95, %c0_96], %74 {strides = array<i32>} : memref<10x16x1152xbf16, #tpu.memory_space<vmem>>, vector<8x16x128xbf16>,
    %c0_97 = arith.constant 0 : index
    %c1_98 = arith.constant 1 : index
    %c0_99 = arith.constant 0 : index
    %76 = vector.load %arg12[%c0_97, %c1_98, %c0_99] : memref<10x18x128xbf16, #tpu.memory_space<vmem>>, vector<8x16x128xbf16>
    %c0_100 = arith.constant 0 : index
    %c0_101 = arith.constant 0 : index
    %c128_102 = arith.constant 128 : index
    %77 = vector.load %arg13[%c0_100, %c0_101, %c128_102] : memref<10x16x1152xbf16, #tpu.memory_space<vmem>>, vector<8x16x128xbf16>
    tpu.vector_store %arg13[%c0_100, %c0_101, %c128_102], %76 {strides = array<i32>} : memref<10x16x1152xbf16, #tpu.memory_space<vmem>>, vector<8x16x128xbf16>,
    %c0_103 = arith.constant 0 : index
    %c2_104 = arith.constant 2 : index
    %c0_105 = arith.constant 0 : index
    %78 = vector.load %arg12[%c0_103, %c2_104, %c0_105] : memref<10x18x128xbf16, #tpu.memory_space<vmem>>, vector<8x16x128xbf16>
    %c0_106 = arith.constant 0 : index
    %c0_107 = arith.constant 0 : index
    %c256_108 = arith.constant 256 : index
    %79 = vector.load %arg13[%c0_106, %c0_107, %c256_108] : memref<10x16x1152xbf16, #tpu.memory_space<vmem>>, vector<8x16x128xbf16>
    tpu.vector_store %arg13[%c0_106, %c0_107, %c256_108], %78 {strides = array<i32>} : memref<10x16x1152xbf16, #tpu.memory_space<vmem>>, vector<8x16x128xbf16>,
    %c1_109 = arith.constant 1 : index
    %c0_110 = arith.constant 0 : index
    %c0_111 = arith.constant 0 : index
    %80 = vector.load %arg12[%c1_109, %c0_110, %c0_111] : memref<10x18x128xbf16, #tpu.memory_space<vmem>>, vector<8x16x128xbf16>
    %c0_112 = arith.constant 0 : index
    %c0_113 = arith.constant 0 : index
    %c384_114 = arith.constant 384 : index
    %81 = vector.load %arg13[%c0_112, %c0_113, %c384_114] : memref<10x16x1152xbf16, #tpu.memory_space<vmem>>, vector<8x16x128xbf16>
    tpu.vector_store %arg13[%c0_112, %c0_113, %c384_114], %80 {strides = array<i32>} : memref<10x16x1152xbf16, #tpu.memory_space<vmem>>, vector<8x16x128xbf16>,
    %c1_115 = arith.constant 1 : index
    %c1_116 = arith.constant 1 : index
    %c0_117 = arith.constant 0 : index
    %82 = vector.load %arg12[%c1_115, %c1_116, %c0_117] : memref<10x18x128xbf16, #tpu.memory_space<vmem>>, vector<8x16x128xbf16>
    %c0_118 = arith.constant 0 : index
    %c0_119 = arith.constant 0 : index
    %c512_120 = arith.constant 512 : index
    %83 = vector.load %arg13[%c0_118, %c0_119, %c512_120] : memref<10x16x1152xbf16, #tpu.memory_space<vmem>>, vector<8x16x128xbf16>
    tpu.vector_store %arg13[%c0_118, %c0_119, %c512_120], %82 {strides = array<i32>} : memref<10x16x1152xbf16, #tpu.memory_space<vmem>>, vector<8x16x128xbf16>,
    %c1_121 = arith.constant 1 : index
    %c2_122 = arith.constant 2 : index
    %c0_123 = arith.constant 0 : index
    %84 = vector.load %arg12[%c1_121, %c2_122, %c0_123] : memref<10x18x128xbf16, #tpu.memory_space<vmem>>, vector<8x16x128xbf16>
    %c0_124 = arith.constant 0 : index
    %c0_125 = arith.constant 0 : index
    %c640_126 = arith.constant 640 : index
    %85 = vector.load %arg13[%c0_124, %c0_125, %c640_126] : memref<10x16x1152xbf16, #tpu.memory_space<vmem>>, vector<8x16x128xbf16>
    tpu.vector_store %arg13[%c0_124, %c0_125, %c640_126], %84 {strides = array<i32>} : memref<10x16x1152xbf16, #tpu.memory_space<vmem>>, vector<8x16x128xbf16>,
    %c2_127 = arith.constant 2 : index
    %c0_128 = arith.constant 0 : index
    %c0_129 = arith.constant 0 : index
    %86 = vector.load %arg12[%c2_127, %c0_128, %c0_129] : memref<10x18x128xbf16, #tpu.memory_space<vmem>>, vector<8x16x128xbf16>
    %c0_130 = arith.constant 0 : index
    %c0_131 = arith.constant 0 : index
    %c768_132 = arith.constant 768 : index
    %87 = vector.load %arg13[%c0_130, %c0_131, %c768_132] : memref<10x16x1152xbf16, #tpu.memory_space<vmem>>, vector<8x16x128xbf16>
    tpu.vector_store %arg13[%c0_130, %c0_131, %c768_132], %86 {strides = array<i32>} : memref<10x16x1152xbf16, #tpu.memory_space<vmem>>, vector<8x16x128xbf16>,
    %c2_133 = arith.constant 2 : index
    %c1_134 = arith.constant 1 : index
    %c0_135 = arith.constant 0 : index
    %88 = vector.load %arg12[%c2_133, %c1_134, %c0_135] : memref<10x18x128xbf16, #tpu.memory_space<vmem>>, vector<8x16x128xbf16>
    %c0_136 = arith.constant 0 : index
    %c0_137 = arith.constant 0 : index
    %c896_138 = arith.constant 896 : index
    %89 = vector.load %arg13[%c0_136, %c0_137, %c896_138] : memref<10x16x1152xbf16, #tpu.memory_space<vmem>>, vector<8x16x128xbf16>
    tpu.vector_store %arg13[%c0_136, %c0_137, %c896_138], %88 {strides = array<i32>} : memref<10x16x1152xbf16, #tpu.memory_space<vmem>>, vector<8x16x128xbf16>,
    %c2_139 = arith.constant 2 : index
    %c2_140 = arith.constant 2 : index
    %c0_141 = arith.constant 0 : index
    %90 = vector.load %arg12[%c2_139, %c2_140, %c0_141] : memref<10x18x128xbf16, #tpu.memory_space<vmem>>, vector<8x16x128xbf16>
    %c0_142 = arith.constant 0 : index
    %c0_143 = arith.constant 0 : index
    %c1024_144 = arith.constant 1024 : index
    %91 = vector.load %arg13[%c0_142, %c0_143, %c1024_144] : memref<10x16x1152xbf16, #tpu.memory_space<vmem>>, vector<8x16x128xbf16>
    tpu.vector_store %arg13[%c0_142, %c0_143, %c1024_144], %90 {strides = array<i32>} : memref<10x16x1152xbf16, #tpu.memory_space<vmem>>, vector<8x16x128xbf16>,
    %c0_145 = arith.constant 0 : index
    %c0_146 = arith.constant 0 : index
    %c0_147 = arith.constant 0 : index
    %92 = vector.load %arg13[%c0_145, %c0_146, %c0_147] : memref<10x16x1152xbf16, #tpu.memory_space<vmem>>, vector<8x16x1152xbf16>
    %93 = vector.shape_cast %92 : vector<8x16x1152xbf16> to vector<128x1152xbf16>
    %c0_148 = arith.constant 0 : index
    %c0_149 = arith.constant 0 : index
    %94 = vector.load %arg4[%c0_148, %c0_149] : memref<1152x128xbf16, #tpu.memory_space<vmem>>, vector<1152x128xbf16>
    %cst_150 = arith.constant dense<0.000000e+00> : vector<128x128xf32>
    %95 = tpu.matmul %93, %94, %cst_150 {dimension_numbers = #tpu.dot_dimension_numbers<[1], [0], [0], [1], [0, 0, 1, 1], [], []>} : vector<128x1152xbf16>, vector<1152x128xbf16>, vector<128x128xf32> -> vector<128x128xf32>
    %c0_151 = arith.constant 0 : index
    %96 = arith.index_cast %0 : i32 to index
    %c0_152 = arith.constant 0 : index
    %c0_153 = arith.constant 0 : index
    %97 = vector.load %arg2[%c0_151, %96, %c0_152, %c0_153] : memref<1x16x16x128xf32, #tpu.memory_space<vmem>>, vector<1x8x16x128xf32>
    %98 = vector.shape_cast %97 : vector<1x8x16x128xf32> to vector<8x16x128xf32>
    %99 = vector.shape_cast %95 : vector<128x128xf32> to vector<8x16x128xf32>
    %c0_154 = arith.constant 0 : index
    %c0_155 = arith.constant 0 : index
    %100 = vector.load %arg8[%c0_154, %c0_155] : memref<1x128xf32, #tpu.memory_space<vmem>>, vector<1x128xf32>
    %101 = vector.shape_cast %100 : vector<1x128xf32> to vector<1x1x128xf32>
    %102 = vector.broadcast %101 : vector<1x1x128xf32> to vector<8x16x128xf32>
    %103 = arith.addf %99, %102 : vector<8x16x128xf32>
    %104 = arith.addf %103, %98 : vector<8x16x128xf32>
    %c0_156 = arith.constant 0 : index
    %c0_157 = arith.constant 0 : index
    %c0_158 = arith.constant 0 : index
    %c0_159 = arith.constant 0 : index
    %105 = vector.load %arg10[%c0_156, %c0_157, %c0_158, %c0_159] : memref<1x8x16x128xf32, #tpu.memory_space<vmem>>, vector<1x8x16x128xf32>
    %106 = vector.shape_cast %105 : vector<1x8x16x128xf32> to vector<8x16x128xf32>
    %107 = vector.shape_cast %104 : vector<8x16x128xf32> to vector<1x8x16x128xf32>
    tpu.vector_store %arg10[%c0_156, %c0_157, %c0_158, %c0_159], %107 {strides = array<i32>} : memref<1x8x16x128xf32, #tpu.memory_space<vmem>>, vector<1x8x16x128xf32>,
    return
  }
  func.func @transform_0(%arg0: i32, %arg1: i32) -> (i32, i32, i32, i32) {
    %c0_i32 = arith.constant 0 : i32
    %c0_i32_0 = arith.constant 0 : i32
    %c0_i32_1 = arith.constant 0 : i32
    %c0_i32_2 = arith.constant 0 : i32
    return %arg0, %c0_i32, %c0_i32_0, %c0_i32_1 : i32, i32, i32, i32
  }
  func.func @transform_1(%arg0: i32, %arg1: i32) -> (i32, i32) {
    %c0_i32 = arith.constant 0 : i32
    %c0_i32_0 = arith.constant 0 : i32
    %c0_i32_1 = arith.constant 0 : i32
    return %c0_i32, %c0_i32_0 : i32, i32
  }
  func.func @transform_2(%arg0: i32, %arg1: i32) -> (i32, i32) {
    %c0_i32 = arith.constant 0 : i32
    %c0_i32_0 = arith.constant 0 : i32
    %c0_i32_1 = arith.constant 0 : i32
    return %c0_i32, %c0_i32_0 : i32, i32
  }
  func.func @transform_3(%arg0: i32, %arg1: i32) -> (i32, i32) {
    %c0_i32 = arith.constant 0 : i32
    %c0_i32_0 = arith.constant 0 : i32
    %c0_i32_1 = arith.constant 0 : i32
    return %c0_i32, %c0_i32_0 : i32, i32
  }
  func.func @transform_4(%arg0: i32, %arg1: i32) -> (i32, i32) {
    %c0_i32 = arith.constant 0 : i32
    %c0_i32_0 = arith.constant 0 : i32
    %c0_i32_1 = arith.constant 0 : i32
    return %c0_i32, %c0_i32_0 : i32, i32
  }
  func.func @transform_5(%arg0: i32, %arg1: i32) -> (i32, i32) {
    %c0_i32 = arith.constant 0 : i32
    %c0_i32_0 = arith.constant 0 : i32
    %c0_i32_1 = arith.constant 0 : i32
    return %c0_i32, %c0_i32_0 : i32, i32
  }
  func.func @transform_6(%arg0: i32, %arg1: i32) -> (i32, i32) {
    %c0_i32 = arith.constant 0 : i32
    %c0_i32_0 = arith.constant 0 : i32
    %c0_i32_1 = arith.constant 0 : i32
    return %c0_i32, %c0_i32_0 : i32, i32
  }
  func.func @transform_7(%arg0: i32, %arg1: i32) -> (i32, i32) {
    %c0_i32 = arith.constant 0 : i32
    %c0_i32_0 = arith.constant 0 : i32
    %c0_i32_1 = arith.constant 0 : i32
    return %c0_i32, %c0_i32_0 : i32, i32
  }
  func.func @transform_8(%arg0: i32, %arg1: i32) -> (i32, i32, i32, i32) {
    %c0_i32 = arith.constant 0 : i32
    %c0_i32_0 = arith.constant 0 : i32
    %c0_i32_1 = arith.constant 0 : i32
    return %arg0, %arg1, %c0_i32, %c0_i32_0 : i32, i32, i32, i32
  }
}

</mosaic_0001>

<llo_original>
// kernel: ibasic_block_pallas.1
$region0: #{ibasic_block_pallas.1}
  #allocation0 [shape = 'u32[]', space=smem, size = 0x4, offset = 0x4, fixed_abs, tag = 'smem constant byte address 0x4 - core index']
  #allocation1 [shape = 'u32[144,128]{1,0:T(1,128)}', space=vmem, size = 0x12000, scoped, tag = 'internal scratch']
  #allocation2 [shape = 'bf16[12,18,128]{2,1,0:T(8,128)(2,1)}', space=vmem, size = 0x12000, scoped, tag = 'scratch operand']
  #allocation3 [shape = 'bf16[10,18,128]{2,1,0:T(8,128)(2,1)}', space=vmem, size = 0xf000, scoped, tag = 'scratch operand']
  #allocation4 [shape = 'bf16[10,16,1152]{2,1,0:T(16,128)(2,1)}', space=vmem, size = 0x5a000, scoped, tag = 'scratch operand']
  %s0 = inlined_call_operand.vmem [shape: f32[2,16,16,128], index: 0, kind: input, shape index: {}]
  %s1 = inlined_call_operand.vmem [shape: bf16[1152,128], index: 1, kind: input, shape index: {}]
  %s2 = inlined_call_operand.vmem [shape: bf16[1152,128], index: 2, kind: input, shape index: {}]
  %s3 = inlined_call_operand.vmem [shape: f32[1,128], index: 3, kind: input, shape index: {}]
  %s4 = inlined_call_operand.vmem [shape: f32[1,128], index: 4, kind: input, shape index: {}]
  %s5 = inlined_call_operand.vmem [shape: f32[1,128], index: 5, kind: input, shape index: {}]
  %s6 = inlined_call_operand.vmem [shape: f32[1,128], index: 6, kind: input, shape index: {}]
  %s7 = inlined_call_operand.vmem [shape: f32[1,128], index: 7, kind: input, shape index: {}]
  %s8 = inlined_call_operand.vmem [shape: f32[2,16,16,128], index: 8, kind: output, shape index: {}]
  %s9 = sld [smem:[#allocation0]]
  $region89: #{ibasic_block_pallas.1} parent=0
    _
  %s11 = ssub.s32 1, %s9
  %s12 = scalar_select 0, %s11, %s9
  loop: start=0, step=1, limit=6
  $region2: #{ibasic_block_pallas.1} parent=0 // loop_pre_header
    _
  $region3: #{ibasic_block_pallas.1} parent=0 // loop_header
    %s14 = sphi 0, %s18
    %p15 = scmp.ge.s32.totalorder %s14, 6
    %s21 = sphi 0, %s33
    %s22 = sphi 0, %s29
    %s23 = sphi 0, %s21
    %s24 = sphi 0, %s22
    %s25 = sphi 0, %s23
    %s26 = sphi 0, %s24
    %s36 = sphi 0, %s38
    %s39 = sphi 0, %s36
    %s40 = sphi 0, %s39
    %s56 = sphi 0, %s40
    %s60 = sphi 0, %s60
    %s62 = sphi 0, %s60
    %s63 = sphi 0, %s62
    %s77 = sphi 0, %s63
    %s81 = sphi 0, %s81
    %s83 = sphi 0, %s81
    %s84 = sphi 0, %s83
    %s98 = sphi 0, %s84
    %s102 = sphi 0, %s102
    %s104 = sphi 0, %s102
    %s105 = sphi 0, %s104
    %s119 = sphi 0, %s105
    %s123 = sphi 0, %s123
    %s125 = sphi 0, %s123
    %s126 = sphi 0, %s125
    %s140 = sphi 0, %s126
    %s144 = sphi 0, %s144
    %s146 = sphi 0, %s144
    %s147 = sphi 0, %s146
    %s161 = sphi 0, %s147
    %s165 = sphi 0, %s165
    %s167 = sphi 0, %s165
    %s168 = sphi 0, %s167
    %s182 = sphi 0, %s168
    %s186 = sphi 0, %s186
    %s188 = sphi 0, %s186
    %s189 = sphi 0, %s188
    %s203 = sphi 0, %s189
    %s211 = sphi 0, %s213
    %s214 = sphi 0, %s211
    %s215 = sphi 0, %s214
    %s231 = sphi 0, %s215
  $region4: #{ibasic_block_pallas.1} parent=0 // loop_header_branch
    %17 = sbr.rel (%p15) target = $region8
  $region5: #{ibasic_block_pallas.1} parent=0 // loop_body
    %s19 = ssub.s32 %s14, 1
    %s20 = ssub.s32 %s14, 2
    %s27 = sadd.s32 1, %s22
    %p28 = scmp.ge.s32.totalorder %s27, 2
    %s29 = scalar_select %p28, 0, %s27
    %s30 = sadd.s32 1, %s21
    %s31 = scalar_select %p28, %s30, %s21
    %p32 = scmp.ge.s32.totalorder %s31, 2
    %s33 = scalar_select %p32, 0, %s31
    %s34 = ssub.s32 %s21, %s33
    %p35 = scmp.eq.s32.totalorder %s34, 0
    %s37 = sadd.s32 %s36, 1
    %s38 = scalar_select %p35, %s36, %s37
    %p41 = pneg %p35
    %p42 = scmp.eq.s32.totalorder %s14, 3
    %p43 = por %p41, %p42
    %p44 = scmp.ne.s32.totalorder %s36, %s39
    %p45 = scmp.eq.s32.totalorder %s14, 0
    %p46 = por %p44, %p45
    %p47 = scmp.ne.s32.totalorder %s36, %s39
    %p48 = scmp.eq.s32.totalorder %s19, 3
    %p49 = por %p47, %p48
    %p50 = scmp.ne.s32.totalorder %s39, %s40
    %p51 = scmp.eq.s32.totalorder %s19, 0
    %p52 = por %p50, %p51
    %p53 = scmp.ne.s32.totalorder %s39, %s40
    %p54 = scmp.eq.s32.totalorder %s20, 3
    %p55 = por %p53, %p54
    %p57 = scmp.ne.s32.totalorder %s40, %s56
    %p58 = scmp.eq.s32.totalorder %s20, 0
    %p59 = por %p57, %p58
    %s61 = sadd.s32 %s60, 1
    %p64 = scmp.eq.s32.totalorder %s14, 3
    %p65 = scmp.ne.s32.totalorder %s60, %s62
    %p66 = scmp.eq.s32.totalorder %s14, 0
    %p67 = por %p65, %p66
    %p68 = scmp.ne.s32.totalorder %s60, %s62
    %p69 = scmp.eq.s32.totalorder %s19, 3
    %p70 = por %p68, %p69
    %p71 = scmp.ne.s32.totalorder %s62, %s63
    %p72 = scmp.eq.s32.totalorder %s19, 0
    %p73 = por %p71, %p72
    %p74 = scmp.ne.s32.totalorder %s62, %s63
    %p75 = scmp.eq.s32.totalorder %s20, 3
    %p76 = por %p74, %p75
    %p78 = scmp.ne.s32.totalorder %s63, %s77
    %p79 = scmp.eq.s32.totalorder %s20, 0
    %p80 = por %p78, %p79
    %s82 = sadd.s32 %s81, 1
    %p85 = scmp.eq.s32.totalorder %s14, 3
    %p86 = scmp.ne.s32.totalorder %s81, %s83
    %p87 = scmp.eq.s32.totalorder %s14, 0
    %p88 = por %p86, %p87
    %p89 = scmp.ne.s32.totalorder %s81, %s83
    %p90 = scmp.eq.s32.totalorder %s19, 3
    %p91 = por %p89, %p90
    %p92 = scmp.ne.s32.totalorder %s83, %s84
    %p93 = scmp.eq.s32.totalorder %s19, 0
    %p94 = por %p92, %p93
    %p95 = scmp.ne.s32.totalorder %s83, %s84
    %p96 = scmp.eq.s32.totalorder %s20, 3
    %p97 = por %p95, %p96
    %p99 = scmp.ne.s32.totalorder %s84, %s98
    %p100 = scmp.eq.s32.totalorder %s20, 0
    %p101 = por %p99, %p100
    %s103 = sadd.s32 %s102, 1
    %p106 = scmp.eq.s32.totalorder %s14, 3
    %p107 = scmp.ne.s32.totalorder %s102, %s104
    %p108 = scmp.eq.s32.totalorder %s14, 0
    %p109 = por %p107, %p108
    %p110 = scmp.ne.s32.totalorder %s102, %s104
    %p111 = scmp.eq.s32.totalorder %s19, 3
    %p112 = por %p110, %p111
    %p113 = scmp.ne.s32.totalorder %s104, %s105
    %p114 = scmp.eq.s32.totalorder %s19, 0
    %p115 = por %p113, %p114
    %p116 = scmp.ne.s32.totalorder %s104, %s105
    %p117 = scmp.eq.s32.totalorder %s20, 3
    %p118 = por %p116, %p117
    %p120 = scmp.ne.s32.totalorder %s105, %s119
    %p121 = scmp.eq.s32.totalorder %s20, 0
    %p122 = por %p120, %p121
    %s124 = sadd.s32 %s123, 1
    %p127 = scmp.eq.s32.totalorder %s14, 3
    %p128 = scmp.ne.s32.totalorder %s123, %s125
    %p129 = scmp.eq.s32.totalorder %s14, 0
    %p130 = por %p128, %p129
    %p131 = scmp.ne.s32.totalorder %s123, %s125
    %p132 = scmp.eq.s32.totalorder %s19, 3
    %p133 = por %p131, %p132
    %p134 = scmp.ne.s32.totalorder %s125, %s126
    %p135 = scmp.eq.s32.totalorder %s19, 0
    %p136 = por %p134, %p135
    %p137 = scmp.ne.s32.totalorder %s125, %s126
    %p138 = scmp.eq.s32.totalorder %s20, 3
    %p139 = por %p137, %p138
    %p141 = scmp.ne.s32.totalorder %s126, %s140
    %p142 = scmp.eq.s32.totalorder %s20, 0
    %p143 = por %p141, %p142
    %s145 = sadd.s32 %s144, 1
    %p148 = scmp.eq.s32.totalorder %s14, 3
    %p149 = scmp.ne.s32.totalorder %s144, %s146
    %p150 = scmp.eq.s32.totalorder %s14, 0
    %p151 = por %p149, %p150
    %p152 = scmp.ne.s32.totalorder %s144, %s146
    %p153 = scmp.eq.s32.totalorder %s19, 3
    %p154 = por %p152, %p153
    %p155 = scmp.ne.s32.totalorder %s146, %s147
    %p156 = scmp.eq.s32.totalorder %s19, 0
    %p157 = por %p155, %p156
    %p158 = scmp.ne.s32.totalorder %s146, %s147
    %p159 = scmp.eq.s32.totalorder %s20, 3
    %p160 = por %p158, %p159
    %p162 = scmp.ne.s32.totalorder %s147, %s161
    %p163 = scmp.eq.s32.totalorder %s20, 0
    %p164 = por %p162, %p163
    %s166 = sadd.s32 %s165, 1
    %p169 = scmp.eq.s32.totalorder %s14, 3
    %p170 = scmp.ne.s32.totalorder %s165, %s167
    %p171 = scmp.eq.s32.totalorder %s14, 0
    %p172 = por %p170, %p171
    %p173 = scmp.ne.s32.totalorder %s165, %s167
    %p174 = scmp.eq.s32.totalorder %s19, 3
    %p175 = por %p173, %p174
    %p176 = scmp.ne.s32.totalorder %s167, %s168
    %p177 = scmp.eq.s32.totalorder %s19, 0
    %p178 = por %p176, %p177
    %p179 = scmp.ne.s32.totalorder %s167, %s168
    %p180 = scmp.eq.s32.totalorder %s20, 3
    %p181 = por %p179, %p180
    %p183 = scmp.ne.s32.totalorder %s168, %s182
    %p184 = scmp.eq.s32.totalorder %s20, 0
    %p185 = por %p183, %p184
    %s187 = sadd.s32 %s186, 1
    %p190 = scmp.eq.s32.totalorder %s14, 3
    %p191 = scmp.ne.s32.totalorder %s186, %s188
    %p192 = scmp.eq.s32.totalorder %s14, 0
    %p193 = por %p191, %p192
    %p194 = scmp.ne.s32.totalorder %s186, %s188
    %p195 = scmp.eq.s32.totalorder %s19, 3
    %p196 = por %p194, %p195
    %p197 = scmp.ne.s32.totalorder %s188, %s189
    %p198 = scmp.eq.s32.totalorder %s19, 0
    %p199 = por %p197, %p198
    %p200 = scmp.ne.s32.totalorder %s188, %s189
    %p201 = scmp.eq.s32.totalorder %s20, 3
    %p202 = por %p200, %p201
    %p204 = scmp.ne.s32.totalorder %s189, %s203
    %p205 = scmp.eq.s32.totalorder %s20, 0
    %p206 = por %p204, %p205
    %s207 = ssub.s32 %s21, %s33
    %s208 = ssub.s32 %s22, %s29
    %s209 = sor.u32 %s207, %s208
    %p210 = scmp.eq.s32.totalorder %s209, 0
    %s212 = sadd.s32 %s211, 1
    %s213 = scalar_select %p210, %s211, %s212
    %p216 = pneg %p210
    %p217 = scmp.eq.s32.totalorder %s14, 3
    %p218 = por %p216, %p217
    %p219 = scmp.ne.s32.totalorder %s211, %s214
    %p220 = scmp.eq.s32.totalorder %s14, 0
    %p221 = por %p219, %p220
    %p222 = scmp.ne.s32.totalorder %s211, %s214
    %p223 = scmp.eq.s32.totalorder %s19, 3
    %p224 = por %p222, %p223
    %p225 = scmp.ne.s32.totalorder %s214, %s215
    %p226 = scmp.eq.s32.totalorder %s19, 0
    %p227 = por %p225, %p226
    %p228 = scmp.ne.s32.totalorder %s214, %s215
    %p229 = scmp.eq.s32.totalorder %s20, 3
    %p230 = por %p228, %p229
    %p232 = scmp.ne.s32.totalorder %s215, %s231
    %p233 = scmp.eq.s32.totalorder %s20, 0
    %p234 = por %p232, %p233
    %p235 = scmp.le.s32.totalorder 1, %s14
    %p236 = scmp.lt.s32.totalorder %s14, 5
    %p237 = pnand %p235, %p236
    %p238 = pneg %p237
    // Predicated region
    $region9: #{ibasic_block_pallas.1} parent=5 // pred_check
      _
    $region10: #{ibasic_block_pallas.1} parent=5 // pred_check_branch
      %240 = sbr.rel (%p237) target = $region12
    $region11: #{ibasic_block_pallas.1} parent=5 // pred_region
      %s241 = ssub.s32 %s14, 1
      // Predicated region
      $region13: #{ibasic_block_pallas.1} parent=11 // pred_check
        %p242 = pneg %p73
      $region14: #{ibasic_block_pallas.1} parent=11 // pred_check_branch
        %244 = sbr.rel (%p242) target = $region16
      $region15: #{ibasic_block_pallas.1} parent=11 // pred_region
        _
      $region16: #{ibasic_block_pallas.1} parent=11 // pred_fallthru
        _
      // Predicated region
      $region17: #{ibasic_block_pallas.1} parent=11 // pred_check
        %p245 = pneg %p94
      $region18: #{ibasic_block_pallas.1} parent=11 // pred_check_branch
        %247 = sbr.rel (%p245) target = $region20
      $region19: #{ibasic_block_pallas.1} parent=11 // pred_region
        _
      $region20: #{ibasic_block_pallas.1} parent=11 // pred_fallthru
        _
      // Predicated region
      $region21: #{ibasic_block_pallas.1} parent=11 // pred_check
        %p248 = pneg %p115
      $region22: #{ibasic_block_pallas.1} parent=11 // pred_check_branch
        %250 = sbr.rel (%p248) target = $region24
      $region23: #{ibasic_block_pallas.1} parent=11 // pred_region
        _
      $region24: #{ibasic_block_pallas.1} parent=11 // pred_fallthru
        _
      // Predicated region
      $region25: #{ibasic_block_pallas.1} parent=11 // pred_check
        %p251 = pneg %p136
      $region26: #{ibasic_block_pallas.1} parent=11 // pred_check_branch
        %253 = sbr.rel (%p251) target = $region28
      $region27: #{ibasic_block_pallas.1} parent=11 // pred_region
        _
      $region28: #{ibasic_block_pallas.1} parent=11 // pred_fallthru
        _
      // Predicated region
      $region29: #{ibasic_block_pallas.1} parent=11 // pred_check
        %p254 = pneg %p157
      $region30: #{ibasic_block_pallas.1} parent=11 // pred_check_branch
        %256 = sbr.rel (%p254) target = $region32
      $region31: #{ibasic_block_pallas.1} parent=11 // pred_region
        _
      $region32: #{ibasic_block_pallas.1} parent=11 // pred_fallthru
        _
      // Predicated region
      $region33: #{ibasic_block_pallas.1} parent=11 // pred_check
        %p257 = pneg %p178
      $region34: #{ibasic_block_pallas.1} parent=11 // pred_check_branch
        %259 = sbr.rel (%p257) target = $region36
      $region35: #{ibasic_block_pallas.1} parent=11 // pred_region
        _
      $region36: #{ibasic_block_pallas.1} parent=11 // pred_fallthru
        _
      // Predicated region
      $region37: #{ibasic_block_pallas.1} parent=11 // pred_check
        %p260 = pneg %p199
      $region38: #{ibasic_block_pallas.1} parent=11 // pred_check_branch
        %262 = sbr.rel (%p260) target = $region40
      $region39: #{ibasic_block_pallas.1} parent=11 // pred_region
        _
      $region40: #{ibasic_block_pallas.1} parent=11 // pred_fallthru
        _
    $region12: #{ibasic_block_pallas.1} parent=5 // pred_fallthru
      _
    %p263 = scmp.lt.s32.totalorder %s14, 4
    // Predicated region
    $region41: #{ibasic_block_pallas.1} parent=5 // pred_check
      %p264 = pneg %p263
    $region42: #{ibasic_block_pallas.1} parent=5 // pred_check_branch
      %266 = sbr.rel (%p264) target = $region44
    $region43: #{ibasic_block_pallas.1} parent=5 // pred_region
      // Predicated region
      $region45: #{ibasic_block_pallas.1} parent=43 // pred_check
        %p267 = pneg %p46
      $region46: #{ibasic_block_pallas.1} parent=43 // pred_check_branch
        %269 = sbr.rel (%p267) target = $region48
      $region47: #{ibasic_block_pallas.1} parent=43 // pred_region
        %p270 = scmp.lt.s32.totalorder %s21, 1
        %s271 = scalar_select %p270, %s21, 1
        %s272 = smul.addr %s271, 32
        %s273 = smul.addr %s272, 8
        %s274 = scalar_lea.vmem %s0, %s273
      $region48: #{ibasic_block_pallas.1} parent=43 // pred_fallthru
        _
    $region44: #{ibasic_block_pallas.1} parent=5 // pred_fallthru
      _
    %p275 = scmp.le.s32.totalorder 1, %s14
    %p276 = scmp.lt.s32.totalorder %s14, 5
    %p277 = pnand %p275, %p276
    %p278 = pneg %p277
    // Predicated region
    $region49: #{ibasic_block_pallas.1} parent=5 // pred_check
      _
    $region50: #{ibasic_block_pallas.1} parent=5 // pred_check_branch
      %280 = sbr.rel (%p277) target = $region52
    $region51: #{ibasic_block_pallas.1} parent=5 // pred_region
      %s281 = ssub.s32 %s14, 1
      %p282 = scmp.lt.s32.totalorder %s23, 1
      %s283 = scalar_select %p282, %s23, 1
      %s284 = smul.addr %s283, 32
      %s285 = smul.addr %s284, 8
      %s286 = scalar_lea.vmem %s0, %s285
      %p287 = pneg %p52
      %p288 = pneg %p49
      %p289 = pneg %p73
      %p290 = pneg %p70
      %p291 = pneg %p94
      %p292 = pneg %p91
      %p293 = pneg %p115
      %p294 = pneg %p112
      %p295 = pneg %p136
      %p296 = pneg %p133
      %p297 = pneg %p157
      %p298 = pneg %p154
      %p299 = pneg %p178
      %p300 = pneg %p175
      %p301 = pneg %p199
      %p302 = pneg %p196
      %p303 = pneg %p227
      %p304 = pneg %p224
      %s305 = smul.u32 8, %s24
      %p306 = scmp.lt.s32.totalorder %s23, 1
      %s307 = scalar_select %p306, %s23, 1
      %p308 = scmp.lt.s32.totalorder %s305, 15
      %s309 = scalar_select %p308, %s305, 15
      %s310 = smul.addr %s309, 2
      %s311 = smul.addr %s307, 32
      %s312 = sadd.s32 %s310, %s311
      %s313 = smul.addr %s312, 8
      %s314 = scalar_lea.vmem %s8, %s313
      %p315 = scmp.lt.s32.totalorder %s23, 1
      %s316 = scalar_select %p315, %s23, 1
      %s317 = smul.addr %s316, 32
      %s318 = smul.addr %s317, 8
      %s319 = scalar_lea.vmem %s0, %s318
      %s320 = smul.u32 8, %s24
      %p321 = scmp.lt.s32.totalorder %s23, 1
      %s322 = scalar_select %p321, %s23, 1
      %p323 = scmp.lt.s32.totalorder %s320, 15
      %s324 = scalar_select %p323, %s320, 15
      %s325 = smul.addr %s324, 2
      %s326 = smul.addr %s322, 32
      %s327 = sadd.s32 %s325, %s326
      %s328 = smul.addr %s327, 8
      %s329 = scalar_lea.vmem %s8, %s328
      %s330 = smul.u32 8, %s24
      %s332 = smul.u32 %s24, 8
      %v333 = vld [vmem:[%s3] sm:$0x1]
      %v334 = vld [vmem:[%s4] sm:$0x1]
      %vm335 = vcmask 1040384
      %vm336 = vsmask.f32 256
      %vm337 = vmand %vm335, %vm336
      %v338 = vld [vmem:[#allocation2] sm:$0x1]
      %v339 = vsel %vm337, 0, %v338
      %340 = vst [vmem:[#allocation2] sm:$0x1] %v339
      %v341 = vld [vmem:[#allocation2 + $0xc] sm:$0x1]
      %v342 = vsel %vm337, 0, %v341
      %343 = vst [vmem:[#allocation2 + $0xc] sm:$0x1] %v342
      %v344 = vld [vmem:[#allocation2 + $0x18] sm:$0x1]
      %v345 = vsel %vm337, 0, %v344
      %346 = vst [vmem:[#allocation2 + $0x18] sm:$0x1] %v345
      %v347 = vld [vmem:[#allocation2 + $0x24] sm:$0x1]
      %v348 = vsel %vm337, 0, %v347
      %349 = vst [vmem:[#allocation2 + $0x24] sm:$0x1] %v348
      %v350 = vld [vmem:[#allocation2 + $0x30] sm:$0x1]
      %v351 = vsel %vm337, 0, %v350
      %352 = vst [vmem:[#allocation2 + $0x30] sm:$0x1] %v351
      %v353 = vld [vmem:[#allocation2 + $0x3c] sm:$0x1]
      %v354 = vsel %vm337, 0, %v353
      %355 = vst [vmem:[#allocation2 + $0x3c] sm:$0x1] %v354
      %v356 = vld [vmem:[#allocation2 + $0x48] sm:$0x1]
      %v357 = vsel %vm337, 0, %v356
      %358 = vst [vmem:[#allocation2 + $0x48] sm:$0x1] %v357
      %v359 = vld [vmem:[#allocation2 + $0x54] sm:$0x1]
      %v360 = vsel %vm337, 0, %v359
      %361 = vst [vmem:[#allocation2 + $0x54] sm:$0x1] %v360
      %v362 = vld [vmem:[#allocation2 + $0x60] sm:$0x1]
      %v363 = vsel %vm337, 0, %v362
      %364 = vst [vmem:[#allocation2 + $0x60] sm:$0x1] %v363
      %v365 = vld [vmem:[#allocation2 + $0x6c] sm:$0x1]
      %v366 = vsel %vm337, 0, %v365
      %367 = vst [vmem:[#allocation2 + $0x6c] sm:$0x1] %v366
      %v368 = vld [vmem:[#allocation2 + $0x78] sm:$0x1]
      %v369 = vsel %vm337, 0, %v368
      %370 = vst [vmem:[#allocation2 + $0x78] sm:$0x1] %v369
      %v371 = vld [vmem:[#allocation2 + $0x84] sm:$0x1]
      %v372 = vsel %vm337, 0, %v371
      %373 = vst [vmem:[#allocation2 + $0x84] sm:$0x1] %v372
      %vm374 = vsmask.f32 7938
      %vm375 = vmand %vm335, %vm374
      %v376 = vld [vmem:[#allocation2 + $0x8] sm:$0x1]
      %v377 = vsel %vm375, 0, %v376
      %378 = vst [vmem:[#allocation2 + $0x8] sm:$0x1] %v377
      %v379 = vld [vmem:[#allocation2 + $0x14] sm:$0x1]
      %v380 = vsel %vm375, 0, %v379
      %381 = vst [vmem:[#allocation2 + $0x14] sm:$0x1] %v380
      %v382 = vld [vmem:[#allocation2 + $0x20] sm:$0x1]
      %v383 = vsel %vm375, 0, %v382
      %384 = vst [vmem:[#allocation2 + $0x20] sm:$0x1] %v383
      %v385 = vld [vmem:[#allocation2 + $0x2c] sm:$0x1]
      %v386 = vsel %vm375, 0, %v385
      %387 = vst [vmem:[#allocation2 + $0x2c] sm:$0x1] %v386
      %v388 = vld [vmem:[#allocation2 + $0x38] sm:$0x1]
      %v389 = vsel %vm375, 0, %v388
      %390 = vst [vmem:[#allocation2 + $0x38] sm:$0x1] %v389
      %v391 = vld [vmem:[#allocation2 + $0x44] sm:$0x1]
      %v392 = vsel %vm375, 0, %v391
      %393 = vst [vmem:[#allocation2 + $0x44] sm:$0x1] %v392
      %v394 = vld [vmem:[#allocation2 + $0x50] sm:$0x1]
      %v395 = vsel %vm375, 0, %v394
      %396 = vst [vmem:[#allocation2 + $0x50] sm:$0x1] %v395
      %v397 = vld [vmem:[#allocation2 + $0x5c] sm:$0x1]
      %v398 = vsel %vm375, 0, %v397
      %399 = vst [vmem:[#allocation2 + $0x5c] sm:$0x1] %v398
      %v400 = vld [vmem:[#allocation2 + $0x68] sm:$0x1]
      %v401 = vsel %vm375, 0, %v400
      %402 = vst [vmem:[#allocation2 + $0x68] sm:$0x1] %v401
      %v403 = vld [vmem:[#allocation2 + $0x74] sm:$0x1]
      %v404 = vsel %vm375, 0, %v403
      %405 = vst [vmem:[#allocation2 + $0x74] sm:$0x1] %v404
      %v406 = vld [vmem:[#allocation2 + $0x80] sm:$0x1]
      %v407 = vsel %vm375, 0, %v406
      %408 = vst [vmem:[#allocation2 + $0x80] sm:$0x1] %v407
      %v409 = vld [vmem:[#allocation2 + $0x8c] sm:$0x1]
      %v410 = vsel %vm375, 0, %v409
      %411 = vst [vmem:[#allocation2 + $0x8c] sm:$0x1] %v410
      %s412 = smul.u32 %s332, 16
      %s413 = scalar_lea.vmem %s319, %s412
      %v414 = vld [vmem:[%s413] sm:$0xff]
      %v415 = vld [vmem:[%s413 + $0x8] sm:$0xff]
      %v416 = vld [vmem:[%s413 + $0x10] sm:$0xff]
      %v417 = vld [vmem:[%s413 + $0x18] sm:$0xff]
      %v418 = vld [vmem:[%s413 + $0x20] sm:$0xff]
      %v419 = vld [vmem:[%s413 + $0x28] sm:$0xff]
      %v420 = vld [vmem:[%s413 + $0x30] sm:$0xff]
      %v421 = vld [vmem:[%s413 + $0x38] sm:$0xff]
      %v422 = vld [vmem:[%s413 + $0x40] sm:$0xff]
      %v423 = vld [vmem:[%s413 + $0x48] sm:$0xff]
      %v424 = vld [vmem:[%s413 + $0x50] sm:$0xff]
      %v425 = vld [vmem:[%s413 + $0x58] sm:$0xff]
      %v426 = vld [vmem:[%s413 + $0x60] sm:$0xff]
      %v427 = vld [vmem:[%s413 + $0x68] sm:$0xff]
      %v428 = vld [vmem:[%s413 + $0x70] sm:$0xff]
      %v429 = vld [vmem:[%s413 + $0x78] sm:$0xff]
      %v431 = vlaneseq
      %v432 = vshrl.u32 %v431, 7
      %v433 = vsub.s32 0, %v432
      %v434 = vrot.slane %v333, %v433
      %v436 = vmul.f32 %v414, %v434
      %v437 = vmul.f32 %v415, %v434
      %v438 = vmul.f32 %v416, %v434
      %v439 = vmul.f32 %v417, %v434
      %v440 = vmul.f32 %v418, %v434
      %v441 = vmul.f32 %v419, %v434
      %v442 = vmul.f32 %v420, %v434
      %v443 = vmul.f32 %v421, %v434
      %v444 = vmul.f32 %v422, %v434
      %v445 = vmul.f32 %v423, %v434
      %v446 = vmul.f32 %v424, %v434
      %v447 = vmul.f32 %v425, %v434
      %v448 = vmul.f32 %v426, %v434
      %v449 = vmul.f32 %v427, %v434
      %v450 = vmul.f32 %v428, %v434
      %v451 = vmul.f32 %v429, %v434
      %v453 = vlaneseq
      %v454 = vshrl.u32 %v453, 7
      %v455 = vsub.s32 0, %v454
      %v456 = vrot.slane %v334, %v455
      %v458 = vadd.f32 %v436, %v456
      %v459 = vadd.f32 %v437, %v456
      %v460 = vadd.f32 %v438, %v456
      %v461 = vadd.f32 %v439, %v456
      %v462 = vadd.f32 %v440, %v456
      %v463 = vadd.f32 %v441, %v456
      %v464 = vadd.f32 %v442, %v456
      %v465 = vadd.f32 %v443, %v456
      %v466 = vadd.f32 %v444, %v456
      %v467 = vadd.f32 %v445, %v456
      %v468 = vadd.f32 %v446, %v456
      %v469 = vadd.f32 %v447, %v456
      %v470 = vadd.f32 %v448, %v456
      %v471 = vadd.f32 %v449, %v456
      %v472 = vadd.f32 %v450, %v456
      %v473 = vadd.f32 %v451, %v456
      %v474 = vpack.c.bf16 %v459, %v458
      %v475 = vpack.c.bf16 %v461, %v460
      %v476 = vpack.c.bf16 %v463, %v462
      %v477 = vpack.c.bf16 %v465, %v464
      %v478 = vpack.c.bf16 %v467, %v466
      %v479 = vpack.c.bf16 %v469, %v468
      %v480 = vpack.c.bf16 %v471, %v470
      %v481 = vpack.c.bf16 %v473, %v472
      %v490 = vunpack.c.l.b16 %v474
      %v491 = vunpack.c.h.b16 %v474
      %v492 = vunpack.c.l.b16 %v475
      %v493 = vunpack.c.h.b16 %v475
      %v494 = vunpack.c.l.b16 %v476
      %v495 = vunpack.c.h.b16 %v476
      %v496 = vunpack.c.l.b16 %v477
      %v497 = vunpack.c.h.b16 %v477
      %v498 = vunpack.c.l.b16 %v478
      %v499 = vunpack.c.h.b16 %v478
      %v500 = vunpack.c.l.b16 %v479
      %v501 = vunpack.c.h.b16 %v479
      %v502 = vunpack.c.l.b16 %v480
      %v503 = vunpack.c.h.b16 %v480
      %v504 = vunpack.c.l.b16 %v481
      %v505 = vunpack.c.h.b16 %v481
      %v506 = vpack.c.b16 %v490, %v490
      %v507 = vpack.c.b16 %v491, %v491
      %v508 = vpack.c.b16 %v492, %v492
      %v509 = vpack.c.b16 %v493, %v493
      %v510 = vpack.c.b16 %v494, %v494
      %v511 = vpack.c.b16 %v495, %v495
      %v512 = vpack.c.b16 %v496, %v496
      %v513 = vpack.c.b16 %v497, %v497
      %v514 = vpack.c.b16 %v498, %v498
      %v515 = vpack.c.b16 %v499, %v499
      %v516 = vpack.c.b16 %v500, %v500
      %v517 = vpack.c.b16 %v501, %v501
      %v518 = vpack.c.b16 %v502, %v502
      %v519 = vpack.c.b16 %v503, %v503
      %v520 = vpack.c.b16 %v504, %v504
      %v521 = vpack.c.b16 %v505, %v505
      %vm522 = vsmask.f32 4368
      %vm523 = vmor %vm336, %vm522
      %v525 = vshrl.u32 %v506, 16
      %v527 = vrot.slane %v525, 7
      %v528 = vshll.u32 %v506, 16
      %v530 = vor.u32 %v527, %v528
      %v531 = vrot.slane %v527, 4
      %v533 = vshrl.u32 %v507, 16
      %v535 = vrot.slane %v533, 7
      %v536 = vshll.u32 %v507, 16
      %v538 = vor.u32 %v535, %v536
      %v539 = vsel %vm523, %v531, %v538
      %v540 = vrot.slane %v535, 4
      %v542 = vshrl.u32 %v508, 16
      %v544 = vrot.slane %v542, 7
      %v545 = vshll.u32 %v508, 16
      %v547 = vor.u32 %v544, %v545
      %v548 = vrot.slane %v544, 4
      %v550 = vshrl.u32 %v509, 16
      %v552 = vrot.slane %v550, 7
      %v553 = vshll.u32 %v509, 16
      %v555 = vor.u32 %v552, %v553
      %v556 = vsel %vm523, %v548, %v555
      %v557 = vrot.slane %v552, 4
      %v559 = vshrl.u32 %v510, 16
      %v561 = vrot.slane %v559, 7
      %v562 = vshll.u32 %v510, 16
      %v564 = vor.u32 %v561, %v562
      %v565 = vrot.slane %v561, 4
      %v567 = vshrl.u32 %v511, 16
      %v569 = vrot.slane %v567, 7
      %v570 = vshll.u32 %v511, 16
      %v572 = vor.u32 %v569, %v570
      %v573 = vsel %vm523, %v565, %v572
      %v574 = vrot.slane %v569, 4
      %v576 = vshrl.u32 %v512, 16
      %v578 = vrot.slane %v576, 7
      %v579 = vshll.u32 %v512, 16
      %v581 = vor.u32 %v578, %v579
      %v582 = vrot.slane %v578, 4
      %v584 = vshrl.u32 %v513, 16
      %v586 = vrot.slane %v584, 7
      %v587 = vshll.u32 %v513, 16
      %v589 = vor.u32 %v586, %v587
      %v590 = vsel %vm523, %v582, %v589
      %v591 = vrot.slane %v586, 4
      %v593 = vshrl.u32 %v514, 16
      %v595 = vrot.slane %v593, 7
      %v596 = vshll.u32 %v514, 16
      %v598 = vor.u32 %v595, %v596
      %v599 = vrot.slane %v595, 4
      %v601 = vshrl.u32 %v515, 16
      %v603 = vrot.slane %v601, 7
      %v604 = vshll.u32 %v515, 16
      %v606 = vor.u32 %v603, %v604
      %v607 = vsel %vm523, %v599, %v606
      %v608 = vrot.slane %v603, 4
      %v610 = vshrl.u32 %v516, 16
      %v612 = vrot.slane %v610, 7
      %v613 = vshll.u32 %v516, 16
      %v615 = vor.u32 %v612, %v613
      %v616 = vrot.slane %v612, 4
      %v618 = vshrl.u32 %v517, 16
      %v620 = vrot.slane %v618, 7
      %v621 = vshll.u32 %v517, 16
      %v623 = vor.u32 %v620, %v621
      %v624 = vsel %vm523, %v616, %v623
      %v625 = vrot.slane %v620, 4
      %v627 = vshrl.u32 %v518, 16
      %v629 = vrot.slane %v627, 7
      %v630 = vshll.u32 %v518, 16
      %v632 = vor.u32 %v629, %v630
      %v633 = vrot.slane %v629, 4
      %v635 = vshrl.u32 %v519, 16
      %v637 = vrot.slane %v635, 7
      %v638 = vshll.u32 %v519, 16
      %v640 = vor.u32 %v637, %v638
      %v641 = vsel %vm523, %v633, %v640
      %v642 = vrot.slane %v637, 4
      %v644 = vshrl.u32 %v520, 16
      %v646 = vrot.slane %v644, 7
      %v647 = vshll.u32 %v520, 16
      %v649 = vor.u32 %v646, %v647
      %v650 = vrot.slane %v646, 4
      %v652 = vshrl.u32 %v521, 16
      %v654 = vrot.slane %v652, 7
      %v655 = vshll.u32 %v521, 16
      %v657 = vor.u32 %v654, %v655
      %v658 = vsel %vm523, %v650, %v657
      %v659 = vrot.slane %v654, 4
      %s684 = scalar_lea.vmem [#allocation2], 24
      %vm685 = vcmask 1043456
      %vm686 = vmand %vm685, %vm374
      %v687 = vld [vmem:[%s684] sm:$0xf]
      %v688 = vsel %vm686, %v530, %v687
      %689 = vst [vmem:[%s684] sm:$0xf] %v688
      %690 = vst [vmem:[%s684 + $0x4] sm:$0xf] %v539
      %v691 = vld [vmem:[%s684 + $0x8] sm:$0x1]
      %v692 = vsel %vm337, %v540, %v691
      %693 = vst [vmem:[%s684 + $0x8] sm:$0x1] %v692
      %v694 = vld [vmem:[%s684 + $0xc] sm:$0xf]
      %v695 = vsel %vm686, %v547, %v694
      %696 = vst [vmem:[%s684 + $0xc] sm:$0xf] %v695
      %697 = vst [vmem:[%s684 + $0x10] sm:$0xf] %v556
      %v698 = vld [vmem:[%s684 + $0x14] sm:$0x1]
      %v699 = vsel %vm337, %v557, %v698
      %700 = vst [vmem:[%s684 + $0x14] sm:$0x1] %v699
      %v701 = vld [vmem:[%s684 + $0x18] sm:$0xf]
      %v702 = vsel %vm686, %v564, %v701
      %703 = vst [vmem:[%s684 + $0x18] sm:$0xf] %v702
      %704 = vst [vmem:[%s684 + $0x1c] sm:$0xf] %v573
      %v705 = vld [vmem:[%s684 + $0x20] sm:$0x1]
      %v706 = vsel %vm337, %v574, %v705
      %707 = vst [vmem:[%s684 + $0x20] sm:$0x1] %v706
      %v708 = vld [vmem:[%s684 + $0x24] sm:$0xf]
      %v709 = vsel %vm686, %v581, %v708
      %710 = vst [vmem:[%s684 + $0x24] sm:$0xf] %v709
      %711 = vst [vmem:[%s684 + $0x28] sm:$0xf] %v590
      %v712 = vld [vmem:[%s684 + $0x2c] sm:$0x1]
      %v713 = vsel %vm337, %v591, %v712
      %714 = vst [vmem:[%s684 + $0x2c] sm:$0x1] %v713
      %v715 = vld [vmem:[%s684 + $0x30] sm:$0xf]
      %v716 = vsel %vm686, %v598, %v715
      %717 = vst [vmem:[%s684 + $0x30] sm:$0xf] %v716
      %718 = vst [vmem:[%s684 + $0x34] sm:$0xf] %v607
      %v719 = vld [vmem:[%s684 + $0x38] sm:$0x1]
      %v720 = vsel %vm337, %v608, %v719
      %721 = vst [vmem:[%s684 + $0x38] sm:$0x1] %v720
      %v722 = vld [vmem:[%s684 + $0x3c] sm:$0xf]
      %v723 = vsel %vm686, %v615, %v722
      %724 = vst [vmem:[%s684 + $0x3c] sm:$0xf] %v723
      %725 = vst [vmem:[%s684 + $0x40] sm:$0xf] %v624
      %v726 = vld [vmem:[%s684 + $0x44] sm:$0x1]
      %v727 = vsel %vm337, %v625, %v726
      %728 = vst [vmem:[%s684 + $0x44] sm:$0x1] %v727
      %v729 = vld [vmem:[%s684 + $0x48] sm:$0xf]
      %v730 = vsel %vm686, %v632, %v729
      %731 = vst [vmem:[%s684 + $0x48] sm:$0xf] %v730
      %732 = vst [vmem:[%s684 + $0x4c] sm:$0xf] %v641
      %v733 = vld [vmem:[%s684 + $0x50] sm:$0x1]
      %v734 = vsel %vm337, %v642, %v733
      %735 = vst [vmem:[%s684 + $0x50] sm:$0x1] %v734
      %v736 = vld [vmem:[%s684 + $0x54] sm:$0xf]
      %v737 = vsel %vm686, %v649, %v736
      %738 = vst [vmem:[%s684 + $0x54] sm:$0xf] %v737
      %739 = vst [vmem:[%s684 + $0x58] sm:$0xf] %v658
      %v740 = vld [vmem:[%s684 + $0x5c] sm:$0x1]
      %v741 = vsel %vm337, %v659, %v740
      %742 = vst [vmem:[%s684 + $0x5c] sm:$0x1] %v741
      %p743 = scmp.gt.s32.totalorder %s24, 0
      // Predicated region
      $region53: #{ibasic_block_pallas.1} parent=51 // pred_check
        %p744 = pneg %p743
      $region54: #{ibasic_block_pallas.1} parent=51 // pred_check_branch
        %746 = sbr.rel (%p744) target = $region56
      $region55: #{ibasic_block_pallas.1} parent=51 // pred_region
        %s747 = ssub.s32 %s332, 2
        %s748 = smul.u32 %s747, 16
        %s749 = scalar_lea.vmem %s319, %s748
        %v750 = vld [vmem:[%s749] sm:$0xff]
        %v751 = vld [vmem:[%s749 + $0x8] sm:$0xff]
        %v752 = vld [vmem:[%s749 + $0x10] sm:$0xff]
        %v753 = vld [vmem:[%s749 + $0x18] sm:$0xff]
        %v754 = vmul.f32 %v750, %v434
        %v755 = vmul.f32 %v751, %v434
        %v756 = vmul.f32 %v752, %v434
        %v757 = vmul.f32 %v753, %v434
        %v758 = vadd.f32 %v754, %v456
        %v759 = vadd.f32 %v755, %v456
        %v760 = vadd.f32 %v756, %v456
        %v761 = vadd.f32 %v757, %v456
        %v762 = vpack.c.bf16 %v759, %v758
        %v763 = vpack.c.bf16 %v761, %v760
        %v766 = vunpack.c.l.b16 %v762
        %v767 = vunpack.c.h.b16 %v762
        %v768 = vunpack.c.l.b16 %v763
        %v769 = vunpack.c.h.b16 %v763
        %v770 = vpack.c.b16 %v766, %v766
        %v771 = vpack.c.b16 %v767, %v767
        %v772 = vpack.c.b16 %v768, %v768
        %v773 = vpack.c.b16 %v769, %v769
        %v775 = vshrl.u32 %v770, 16
        %v777 = vrot.slane %v775, 7
        %v778 = vshll.u32 %v770, 16
        %v780 = vor.u32 %v777, %v778
        %v781 = vrot.slane %v777, 4
        %v783 = vshrl.u32 %v771, 16
        %v785 = vrot.slane %v783, 7
        %v786 = vshll.u32 %v771, 16
        %v788 = vor.u32 %v785, %v786
        %v789 = vsel %vm523, %v781, %v788
        %v790 = vrot.slane %v785, 4
        %v792 = vshrl.u32 %v772, 16
        %v794 = vrot.slane %v792, 7
        %v795 = vshll.u32 %v772, 16
        %v797 = vor.u32 %v794, %v795
        %v798 = vrot.slane %v794, 4
        %v800 = vshrl.u32 %v773, 16
        %v802 = vrot.slane %v800, 7
        %v803 = vshll.u32 %v773, 16
        %v805 = vor.u32 %v802, %v803
        %v806 = vsel %vm523, %v798, %v805
        %v807 = vrot.slane %v802, 4
        %v814 = vld [vmem:[#allocation2] sm:$0xf]
        %v815 = vsel %vm686, %v780, %v814
        %816 = vst [vmem:[#allocation2] sm:$0xf] %v815
        %817 = vst [vmem:[#allocation2 + $0x4] sm:$0xf] %v789
        %v818 = vld [vmem:[#allocation2 + $0x8] sm:$0x1]
        %v819 = vsel %vm337, %v790, %v818
        %820 = vst [vmem:[#allocation2 + $0x8] sm:$0x1] %v819
        %v821 = vld [vmem:[#allocation2 + $0xc] sm:$0xf]
        %v822 = vsel %vm686, %v797, %v821
        %823 = vst [vmem:[#allocation2 + $0xc] sm:$0xf] %v822
        %824 = vst [vmem:[#allocation2 + $0x10] sm:$0xf] %v806
        %v825 = vld [vmem:[#allocation2 + $0x14] sm:$0x1]
        %v826 = vsel %vm337, %v807, %v825
        %827 = vst [vmem:[#allocation2 + $0x14] sm:$0x1] %v826
      $region56: #{ibasic_block_pallas.1} parent=51 // pred_fallthru
        _
      %p828 = scmp.eq.s32.totalorder %s24, 0
      // Predicated region
      $region57: #{ibasic_block_pallas.1} parent=51 // pred_check
        %p829 = pneg %p828
      $region58: #{ibasic_block_pallas.1} parent=51 // pred_check_branch
        %831 = sbr.rel (%p829) target = $region60
      $region59: #{ibasic_block_pallas.1} parent=51 // pred_region
        %832 = vst [vmem:[#allocation2] sm:$0xf] 0
        %833 = vst [vmem:[#allocation2 + $0x4] sm:$0xf] 0
        %834 = vst [vmem:[#allocation2 + $0x8] sm:$0x1] 0
        %835 = vst [vmem:[#allocation2 + $0xc] sm:$0xf] 0
        %836 = vst [vmem:[#allocation2 + $0x10] sm:$0xf] 0
        %837 = vst [vmem:[#allocation2 + $0x14] sm:$0x1] 0
      $region60: #{ibasic_block_pallas.1} parent=51 // pred_fallthru
        _
      %p838 = scmp.lt.s32.totalorder %s24, 1
      // Predicated region
      $region61: #{ibasic_block_pallas.1} parent=51 // pred_check
        %p839 = pneg %p838
      $region62: #{ibasic_block_pallas.1} parent=51 // pred_check_branch
        %841 = sbr.rel (%p839) target = $region64
      $region63: #{ibasic_block_pallas.1} parent=51 // pred_region
        %s842 = sadd.s32 %s332, 8
        %s843 = smul.u32 %s842, 16
        %s844 = scalar_lea.vmem %s319, %s843
        %v845 = vld [vmem:[%s844] sm:$0xff]
        %v846 = vld [vmem:[%s844 + $0x8] sm:$0xff]
        %v847 = vld [vmem:[%s844 + $0x10] sm:$0xff]
        %v848 = vld [vmem:[%s844 + $0x18] sm:$0xff]
        %v849 = vmul.f32 %v845, %v434
        %v850 = vmul.f32 %v846, %v434
        %v851 = vmul.f32 %v847, %v434
        %v852 = vmul.f32 %v848, %v434
        %v853 = vadd.f32 %v849, %v456
        %v854 = vadd.f32 %v850, %v456
        %v855 = vadd.f32 %v851, %v456
        %v856 = vadd.f32 %v852, %v456
        %v857 = vpack.c.bf16 %v854, %v853
        %v858 = vpack.c.bf16 %v856, %v855
        %v861 = vunpack.c.l.b16 %v857
        %v862 = vunpack.c.h.b16 %v857
        %v863 = vunpack.c.l.b16 %v858
        %v864 = vunpack.c.h.b16 %v858
        %v865 = vpack.c.b16 %v861, %v861
        %v866 = vpack.c.b16 %v862, %v862
        %v867 = vpack.c.b16 %v863, %v863
        %v868 = vpack.c.b16 %v864, %v864
        %v870 = vshrl.u32 %v865, 16
        %v872 = vrot.slane %v870, 7
        %v873 = vshll.u32 %v865, 16
        %v875 = vor.u32 %v872, %v873
        %v876 = vrot.slane %v872, 4
        %v878 = vshrl.u32 %v866, 16
        %v880 = vrot.slane %v878, 7
        %v881 = vshll.u32 %v866, 16
        %v883 = vor.u32 %v880, %v881
        %v884 = vsel %vm523, %v876, %v883
        %v885 = vrot.slane %v880, 4
        %v887 = vshrl.u32 %v867, 16
        %v889 = vrot.slane %v887, 7
        %v890 = vshll.u32 %v867, 16
        %v892 = vor.u32 %v889, %v890
        %v893 = vrot.slane %v889, 4
        %v895 = vshrl.u32 %v868, 16
        %v897 = vrot.slane %v895, 7
        %v898 = vshll.u32 %v868, 16
        %v900 = vor.u32 %v897, %v898
        %v901 = vsel %vm523, %v893, %v900
        %v902 = vrot.slane %v897, 4
        %s909 = scalar_lea.vmem [#allocation2], 120
        %v910 = vld [vmem:[%s909] sm:$0xf]
        %v911 = vsel %vm686, %v875, %v910
        %912 = vst [vmem:[%s909] sm:$0xf] %v911
        %913 = vst [vmem:[%s909 + $0x4] sm:$0xf] %v884
        %v914 = vld [vmem:[%s909 + $0x8] sm:$0x1]
        %v915 = vsel %vm337, %v885, %v914
        %916 = vst [vmem:[%s909 + $0x8] sm:$0x1] %v915
        %v917 = vld [vmem:[%s909 + $0xc] sm:$0xf]
        %v918 = vsel %vm686, %v892, %v917
        %919 = vst [vmem:[%s909 + $0xc] sm:$0xf] %v918
        %920 = vst [vmem:[%s909 + $0x10] sm:$0xf] %v901
        %v921 = vld [vmem:[%s909 + $0x14] sm:$0x1]
        %v922 = vsel %vm337, %v902, %v921
        %923 = vst [vmem:[%s909 + $0x14] sm:$0x1] %v922
      $region64: #{ibasic_block_pallas.1} parent=51 // pred_fallthru
        _
      %p924 = scmp.eq.s32.totalorder %s24, 1
      // Predicated region
      $region65: #{ibasic_block_pallas.1} parent=51 // pred_check
        %p925 = pneg %p924
      $region66: #{ibasic_block_pallas.1} parent=51 // pred_check_branch
        %927 = sbr.rel (%p925) target = $region68
      $region67: #{ibasic_block_pallas.1} parent=51 // pred_region
        %s928 = scalar_lea.vmem [#allocation2], 120
        %929 = vst [vmem:[%s928] sm:$0xf] 0
        %930 = vst [vmem:[%s928 + $0x4] sm:$0xf] 0
        %931 = vst [vmem:[%s928 + $0x8] sm:$0x1] 0
        %932 = vst [vmem:[%s928 + $0xc] sm:$0xf] 0
        %933 = vst [vmem:[%s928 + $0x10] sm:$0xf] 0
        %934 = vst [vmem:[%s928 + $0x14] sm:$0x1] 0
      $region68: #{ibasic_block_pallas.1} parent=51 // pred_fallthru
        _
      %v935 = vld [vmem:[#allocation2] sm:$0xf]
      %v936 = vld [vmem:[#allocation2 + $0x4] sm:$0xf]
      %v937 = vld [vmem:[#allocation2 + $0xc] sm:$0xf]
      %v938 = vld [vmem:[#allocation2 + $0x10] sm:$0xf]
      %v939 = vld [vmem:[#allocation2 + $0x18] sm:$0xf]
      %v940 = vld [vmem:[#allocation2 + $0x1c] sm:$0xf]
      %v941 = vld [vmem:[#allocation2 + $0x24] sm:$0xf]
      %v942 = vld [vmem:[#allocation2 + $0x28] sm:$0xf]
      %v943 = vld [vmem:[#allocation2 + $0x30] sm:$0xf]
      %v944 = vld [vmem:[#allocation2 + $0x34] sm:$0xf]
      %v945 = vld [vmem:[#allocation2 + $0x3c] sm:$0xf]
      %v946 = vld [vmem:[#allocation2 + $0x40] sm:$0xf]
      %v947 = vld [vmem:[#allocation2 + $0x48] sm:$0xf]
      %v948 = vld [vmem:[#allocation2 + $0x4c] sm:$0xf]
      %v949 = vld [vmem:[#allocation2 + $0x54] sm:$0xf]
      %v950 = vld [vmem:[#allocation2 + $0x58] sm:$0xf]
      %v951 = vld [vmem:[#allocation2 + $0x60] sm:$0xf]
      %v952 = vld [vmem:[#allocation2 + $0x64] sm:$0xf]
      %v953 = vld [vmem:[#allocation2 + $0x6c] sm:$0xf]
      %v954 = vld [vmem:[#allocation2 + $0x70] sm:$0xf]
      %v975 = vunpack.c.l.b16 %v935
      %v976 = vunpack.c.l.b16 %v936
      %v977 = vunpack.c.l.b16 %v937
      %v978 = vunpack.c.l.b16 %v938
      %v979 = vunpack.c.l.b16 %v939
      %v980 = vunpack.c.l.b16 %v940
      %v981 = vunpack.c.l.b16 %v941
      %v982 = vunpack.c.l.b16 %v942
      %v983 = vunpack.c.l.b16 %v943
      %v984 = vunpack.c.l.b16 %v944
      %v985 = vunpack.c.l.b16 %v945
      %v986 = vunpack.c.l.b16 %v946
      %v987 = vunpack.c.l.b16 %v947
      %v988 = vunpack.c.l.b16 %v948
      %v989 = vunpack.c.l.b16 %v949
      %v990 = vunpack.c.l.b16 %v950
      %v991 = vunpack.c.l.b16 %v951
      %v992 = vunpack.c.l.b16 %v952
      %v993 = vunpack.c.l.b16 %v953
      %v994 = vunpack.c.l.b16 %v954
      %v995 = vpack.c.b16 %v976, %v975
      %v996 = vpack.c.b16 %v978, %v977
      %v997 = vpack.c.b16 %v980, %v979
      %v998 = vpack.c.b16 %v982, %v981
      %v999 = vpack.c.b16 %v984, %v983
      %v1000 = vpack.c.b16 %v986, %v985
      %v1001 = vpack.c.b16 %v988, %v987
      %v1002 = vpack.c.b16 %v990, %v989
      %v1003 = vpack.c.b16 %v992, %v991
      %v1004 = vpack.c.b16 %v994, %v993
      %1015 = vst [vmem:[#allocation4] sm:$0xff] %v995
      %1016 = vst [vmem:[#allocation4 + $0x48] sm:$0xff] %v996
      %1017 = vst [vmem:[#allocation4 + $0x90] sm:$0xff] %v997
      %1018 = vst [vmem:[#allocation4 + $0xd8] sm:$0xff] %v998
      %1019 = vst [vmem:[#allocation4 + $0x120] sm:$0xff] %v999
      %1020 = vst [vmem:[#allocation4 + $0x168] sm:$0xff] %v1000
      %1021 = vst [vmem:[#allocation4 + $0x1b0] sm:$0xff] %v1001
      %1022 = vst [vmem:[#allocation4 + $0x1f8] sm:$0xff] %v1002
      %1023 = vst [vmem:[#allocation4 + $0x240] sm:$0xff] %v1003
      %1024 = vst [vmem:[#allocation4 + $0x288] sm:$0xff] %v1004
      %v1025 = vld [vmem:[#allocation2] sm:$0xf]
      %v1026 = vld [vmem:[#allocation2 + $0x4] sm:$0xf]
      %v1027 = vld [vmem:[#allocation2 + $0x8] sm:$0x1]
      %v1028 = vld [vmem:[#allocation2 + $0xc] sm:$0xf]
      %v1029 = vld [vmem:[#allocation2 + $0x10] sm:$0xf]
      %v1030 = vld [vmem:[#allocation2 + $0x14] sm:$0x1]
      %v1031 = vld [vmem:[#allocation2 + $0x18] sm:$0xf]
      %v1032 = vld [vmem:[#allocation2 + $0x1c] sm:$0xf]
      %v1033 = vld [vmem:[#allocation2 + $0x20] sm:$0x1]
      %v1034 = vld [vmem:[#allocation2 + $0x24] sm:$0xf]
      %v1035 = vld [vmem:[#allocation2 + $0x28] sm:$0xf]
      %v1036 = vld [vmem:[#allocation2 + $0x2c] sm:$0x1]
      %v1037 = vld [vmem:[#allocation2 + $0x30] sm:$0xf]
      %v1038 = vld [vmem:[#allocation2 + $0x34] sm:$0xf]
      %v1039 = vld [vmem:[#allocation2 + $0x38] sm:$0x1]
      %v1040 = vld [vmem:[#allocation2 + $0x3c] sm:$0xf]
      %v1041 = vld [vmem:[#allocation2 + $0x40] sm:$0xf]
      %v1042 = vld [vmem:[#allocation2 + $0x44] sm:$0x1]
      %v1043 = vld [vmem:[#allocation2 + $0x48] sm:$0xf]
      %v1044 = vld [vmem:[#allocation2 + $0x4c] sm:$0xf]
      %v1045 = vld [vmem:[#allocation2 + $0x50] sm:$0x1]
      %v1046 = vld [vmem:[#allocation2 + $0x54] sm:$0xf]
      %v1047 = vld [vmem:[#allocation2 + $0x58] sm:$0xf]
      %v1048 = vld [vmem:[#allocation2 + $0x5c] sm:$0x1]
      %v1049 = vld [vmem:[#allocation2 + $0x60] sm:$0xf]
      %v1050 = vld [vmem:[#allocation2 + $0x64] sm:$0xf]
      %v1051 = vld [vmem:[#allocation2 + $0x68] sm:$0x1]
      %v1052 = vld [vmem:[#allocation2 + $0x6c] sm:$0xf]
      %v1053 = vld [vmem:[#allocation2 + $0x70] sm:$0xf]
      %v1054 = vld [vmem:[#allocation2 + $0x74] sm:$0x1]
      %v1085 = vunpack.c.l.b16 %v1025
      %v1086 = vunpack.c.l.b16 %v1026
      %v1087 = vunpack.c.l.b16 %v1027
      %v1088 = vunpack.c.l.b16 %v1028
      %v1089 = vunpack.c.l.b16 %v1029
      %v1090 = vunpack.c.l.b16 %v1030
      %v1091 = vunpack.c.l.b16 %v1031
      %v1092 = vunpack.c.l.b16 %v1032
      %v1093 = vunpack.c.l.b16 %v1033
      %v1094 = vunpack.c.l.b16 %v1034
      %v1095 = vunpack.c.l.b16 %v1035
      %v1096 = vunpack.c.l.b16 %v1036
      %v1097 = vunpack.c.l.b16 %v1037
      %v1098 = vunpack.c.l.b16 %v1038
      %v1099 = vunpack.c.l.b16 %v1039
      %v1100 = vunpack.c.l.b16 %v1040
      %v1101 = vunpack.c.l.b16 %v1041
      %v1102 = vunpack.c.l.b16 %v1042
      %v1103 = vunpack.c.l.b16 %v1043
      %v1104 = vunpack.c.l.b16 %v1044
      %v1105 = vunpack.c.l.b16 %v1045
      %v1106 = vunpack.c.l.b16 %v1046
      %v1107 = vunpack.c.l.b16 %v1047
      %v1108 = vunpack.c.l.b16 %v1048
      %v1109 = vunpack.c.l.b16 %v1049
      %v1110 = vunpack.c.l.b16 %v1050
      %v1111 = vunpack.c.l.b16 %v1051
      %v1112 = vunpack.c.l.b16 %v1052
      %v1113 = vunpack.c.l.b16 %v1053
      %v1114 = vunpack.c.l.b16 %v1054
      %v1115 = vpack.c.b16 %v1086, %v1085
      %v1116 = vpack.c.b16 %v1087, %v1087
      %v1117 = vpack.c.b16 %v1089, %v1088
      %v1118 = vpack.c.b16 %v1090, %v1090
      %v1119 = vpack.c.b16 %v1092, %v1091
      %v1120 = vpack.c.b16 %v1093, %v1093
      %v1121 = vpack.c.b16 %v1095, %v1094
      %v1122 = vpack.c.b16 %v1096, %v1096
      %v1123 = vpack.c.b16 %v1098, %v1097
      %v1124 = vpack.c.b16 %v1099, %v1099
      %v1125 = vpack.c.b16 %v1101, %v1100
      %v1126 = vpack.c.b16 %v1102, %v1102
      %v1127 = vpack.c.b16 %v1104, %v1103
      %v1128 = vpack.c.b16 %v1105, %v1105
      %v1129 = vpack.c.b16 %v1107, %v1106
      %v1130 = vpack.c.b16 %v1108, %v1108
      %v1131 = vpack.c.b16 %v1110, %v1109
      %v1132 = vpack.c.b16 %v1111, %v1111
      %v1133 = vpack.c.b16 %v1113, %v1112
      %v1134 = vpack.c.b16 %v1114, %v1114
      %vm1135 = vsmask.f32 7424
      %v1137 = vshrl.u32 %v1115, 16
      %v1139 = vshll.u32 %v1115, 16
      %v1141 = vrot.slane %v1139, 1
      %v1142 = vor.u32 %v1137, %v1141
      %v1144 = vshll.u32 %v1116, 16
      %v1146 = vrot.slane %v1144, 1
      %v1147 = vsel %vm1135, %v1142, %v1146
      %v1149 = vshrl.u32 %v1117, 16
      %v1151 = vshll.u32 %v1117, 16
      %v1153 = vrot.slane %v1151, 1
      %v1154 = vor.u32 %v1149, %v1153
      %v1156 = vshll.u32 %v1118, 16
      %v1158 = vrot.slane %v1156, 1
      %v1159 = vsel %vm1135, %v1154, %v1158
      %v1161 = vshrl.u32 %v1119, 16
      %v1163 = vshll.u32 %v1119, 16
      %v1165 = vrot.slane %v1163, 1
      %v1166 = vor.u32 %v1161, %v1165
      %v1168 = vshll.u32 %v1120, 16
      %v1170 = vrot.slane %v1168, 1
      %v1171 = vsel %vm1135, %v1166, %v1170
      %v1173 = vshrl.u32 %v1121, 16
      %v1175 = vshll.u32 %v1121, 16
      %v1177 = vrot.slane %v1175, 1
      %v1178 = vor.u32 %v1173, %v1177
      %v1180 = vshll.u32 %v1122, 16
      %v1182 = vrot.slane %v1180, 1
      %v1183 = vsel %vm1135, %v1178, %v1182
      %v1185 = vshrl.u32 %v1123, 16
      %v1187 = vshll.u32 %v1123, 16
      %v1189 = vrot.slane %v1187, 1
      %v1190 = vor.u32 %v1185, %v1189
      %v1192 = vshll.u32 %v1124, 16
      %v1194 = vrot.slane %v1192, 1
      %v1195 = vsel %vm1135, %v1190, %v1194
      %v1197 = vshrl.u32 %v1125, 16
      %v1199 = vshll.u32 %v1125, 16
      %v1201 = vrot.slane %v1199, 1
      %v1202 = vor.u32 %v1197, %v1201
      %v1204 = vshll.u32 %v1126, 16
      %v1206 = vrot.slane %v1204, 1
      %v1207 = vsel %vm1135, %v1202, %v1206
      %v1209 = vshrl.u32 %v1127, 16
      %v1211 = vshll.u32 %v1127, 16
      %v1213 = vrot.slane %v1211, 1
      %v1214 = vor.u32 %v1209, %v1213
      %v1216 = vshll.u32 %v1128, 16
      %v1218 = vrot.slane %v1216, 1
      %v1219 = vsel %vm1135, %v1214, %v1218
      %v1221 = vshrl.u32 %v1129, 16
      %v1223 = vshll.u32 %v1129, 16
      %v1225 = vrot.slane %v1223, 1
      %v1226 = vor.u32 %v1221, %v1225
      %v1228 = vshll.u32 %v1130, 16
      %v1230 = vrot.slane %v1228, 1
      %v1231 = vsel %vm1135, %v1226, %v1230
      %v1233 = vshrl.u32 %v1131, 16
      %v1235 = vshll.u32 %v1131, 16
      %v1237 = vrot.slane %v1235, 1
      %v1238 = vor.u32 %v1233, %v1237
      %v1240 = vshll.u32 %v1132, 16
      %v1242 = vrot.slane %v1240, 1
      %v1243 = vsel %vm1135, %v1238, %v1242
      %v1245 = vshrl.u32 %v1133, 16
      %v1247 = vshll.u32 %v1133, 16
      %v1249 = vrot.slane %v1247, 1
      %v1250 = vor.u32 %v1245, %v1249
      %v1252 = vshll.u32 %v1134, 16
      %v1254 = vrot.slane %v1252, 1
      %v1255 = vsel %vm1135, %v1250, %v1254
      %1266 = vst [vmem:[#allocation4 + $0x8] sm:$0xff] %v1147
      %1267 = vst [vmem:[#allocation4 + $0x50] sm:$0xff] %v1159
      %1268 = vst [vmem:[#allocation4 + $0x98] sm:$0xff] %v1171
      %1269 = vst [vmem:[#allocation4 + $0xe0] sm:$0xff] %v1183
      %1270 = vst [vmem:[#allocation4 + $0x128] sm:$0xff] %v1195
      %1271 = vst [vmem:[#allocation4 + $0x170] sm:$0xff] %v1207
      %1272 = vst [vmem:[#allocation4 + $0x1b8] sm:$0xff] %v1219
      %1273 = vst [vmem:[#allocation4 + $0x200] sm:$0xff] %v1231
      %1274 = vst [vmem:[#allocation4 + $0x248] sm:$0xff] %v1243
      %1275 = vst [vmem:[#allocation4 + $0x290] sm:$0xff] %v1255
      %v1276 = vld [vmem:[#allocation2] sm:$0xe]
      %v1277 = vld [vmem:[#allocation2 + $0x4] sm:$0xf]
      %v1278 = vld [vmem:[#allocation2 + $0x8] sm:$0x1]
      %v1279 = vld [vmem:[#allocation2 + $0xc] sm:$0xe]
      %v1280 = vld [vmem:[#allocation2 + $0x10] sm:$0xf]
      %v1281 = vld [vmem:[#allocation2 + $0x14] sm:$0x1]
      %v1282 = vld [vmem:[#allocation2 + $0x18] sm:$0xe]
      %v1283 = vld [vmem:[#allocation2 + $0x1c] sm:$0xf]
      %v1284 = vld [vmem:[#allocation2 + $0x20] sm:$0x1]
      %v1285 = vld [vmem:[#allocation2 + $0x24] sm:$0xe]
      %v1286 = vld [vmem:[#allocation2 + $0x28] sm:$0xf]
      %v1287 = vld [vmem:[#allocation2 + $0x2c] sm:$0x1]
      %v1288 = vld [vmem:[#allocation2 + $0x30] sm:$0xe]
      %v1289 = vld [vmem:[#allocation2 + $0x34] sm:$0xf]
      %v1290 = vld [vmem:[#allocation2 + $0x38] sm:$0x1]
      %v1291 = vld [vmem:[#allocation2 + $0x3c] sm:$0xe]
      %v1292 = vld [vmem:[#allocation2 + $0x40] sm:$0xf]
      %v1293 = vld [vmem:[#allocation2 + $0x44] sm:$0x1]
      %v1294 = vld [vmem:[#allocation2 + $0x48] sm:$0xe]
      %v1295 = vld [vmem:[#allocation2 + $0x4c] sm:$0xf]
      %v1296 = vld [vmem:[#allocation2 + $0x50] sm:$0x1]
      %v1297 = vld [vmem:[#allocation2 + $0x54] sm:$0xe]
      %v1298 = vld [vmem:[#allocation2 + $0x58] sm:$0xf]
      %v1299 = vld [vmem:[#allocation2 + $0x5c] sm:$0x1]
      %v1300 = vld [vmem:[#allocation2 + $0x60] sm:$0xe]
      %v1301 = vld [vmem:[#allocation2 + $0x64] sm:$0xf]
      %v1302 = vld [vmem:[#allocation2 + $0x68] sm:$0x1]
      %v1303 = vld [vmem:[#allocation2 + $0x6c] sm:$0xe]
      %v1304 = vld [vmem:[#allocation2 + $0x70] sm:$0xf]
      %v1305 = vld [vmem:[#allocation2 + $0x74] sm:$0x1]
      %v1336 = vunpack.c.l.b16 %v1276
      %v1337 = vunpack.c.l.b16 %v1277
      %v1338 = vunpack.c.l.b16 %v1278
      %v1339 = vunpack.c.l.b16 %v1279
      %v1340 = vunpack.c.l.b16 %v1280
      %v1341 = vunpack.c.l.b16 %v1281
      %v1342 = vunpack.c.l.b16 %v1282
      %v1343 = vunpack.c.l.b16 %v1283
      %v1344 = vunpack.c.l.b16 %v1284
      %v1345 = vunpack.c.l.b16 %v1285
      %v1346 = vunpack.c.l.b16 %v1286
      %v1347 = vunpack.c.l.b16 %v1287
      %v1348 = vunpack.c.l.b16 %v1288
      %v1349 = vunpack.c.l.b16 %v1289
      %v1350 = vunpack.c.l.b16 %v1290
      %v1351 = vunpack.c.l.b16 %v1291
      %v1352 = vunpack.c.l.b16 %v1292
      %v1353 = vunpack.c.l.b16 %v1293
      %v1354 = vunpack.c.l.b16 %v1294
      %v1355 = vunpack.c.l.b16 %v1295
      %v1356 = vunpack.c.l.b16 %v1296
      %v1357 = vunpack.c.l.b16 %v1297
      %v1358 = vunpack.c.l.b16 %v1298
      %v1359 = vunpack.c.l.b16 %v1299
      %v1360 = vunpack.c.l.b16 %v1300
      %v1361 = vunpack.c.l.b16 %v1301
      %v1362 = vunpack.c.l.b16 %v1302
      %v1363 = vunpack.c.l.b16 %v1303
      %v1364 = vunpack.c.l.b16 %v1304
      %v1365 = vunpack.c.l.b16 %v1305
      %v1366 = vpack.c.b16 %v1337, %v1336
      %v1367 = vpack.c.b16 %v1338, %v1338
      %v1368 = vpack.c.b16 %v1340, %v1339
      %v1369 = vpack.c.b16 %v1341, %v1341
      %v1370 = vpack.c.b16 %v1343, %v1342
      %v1371 = vpack.c.b16 %v1344, %v1344
      %v1372 = vpack.c.b16 %v1346, %v1345
      %v1373 = vpack.c.b16 %v1347, %v1347
      %v1374 = vpack.c.b16 %v1349, %v1348
      %v1375 = vpack.c.b16 %v1350, %v1350
      %v1376 = vpack.c.b16 %v1352, %v1351
      %v1377 = vpack.c.b16 %v1353, %v1353
      %v1378 = vpack.c.b16 %v1355, %v1354
      %v1379 = vpack.c.b16 %v1356, %v1356
      %v1380 = vpack.c.b16 %v1358, %v1357
      %v1381 = vpack.c.b16 %v1359, %v1359
      %v1382 = vpack.c.b16 %v1361, %v1360
      %v1383 = vpack.c.b16 %v1362, %v1362
      %v1384 = vpack.c.b16 %v1364, %v1363
      %v1385 = vpack.c.b16 %v1365, %v1365
      %vm1386 = vcmask 1046528
      %v1387 = vrot.slane %v1366, 1
      %v1388 = vrot.slane %v1367, 1
      %v1389 = vsel %vm1386, %v1387, %v1388
      %v1390 = vrot.slane %v1368, 1
      %v1391 = vrot.slane %v1369, 1
      %v1392 = vsel %vm1386, %v1390, %v1391
      %v1393 = vrot.slane %v1370, 1
      %v1394 = vrot.slane %v1371, 1
      %v1395 = vsel %vm1386, %v1393, %v1394
      %v1396 = vrot.slane %v1372, 1
      %v1397 = vrot.slane %v1373, 1
      %v1398 = vsel %vm1386, %v1396, %v1397
      %v1399 = vrot.slane %v1374, 1
      %v1400 = vrot.slane %v1375, 1
      %v1401 = vsel %vm1386, %v1399, %v1400
      %v1402 = vrot.slane %v1376, 1
      %v1403 = vrot.slane %v1377, 1
      %v1404 = vsel %vm1386, %v1402, %v1403
      %v1405 = vrot.slane %v1378, 1
      %v1406 = vrot.slane %v1379, 1
      %v1407 = vsel %vm1386, %v1405, %v1406
      %v1408 = vrot.slane %v1380, 1
      %v1409 = vrot.slane %v1381, 1
      %v1410 = vsel %vm1386, %v1408, %v1409
      %v1411 = vrot.slane %v1382, 1
      %v1412 = vrot.slane %v1383, 1
      %v1413 = vsel %vm1386, %v1411, %v1412
      %v1414 = vrot.slane %v1384, 1
      %v1415 = vrot.slane %v1385, 1
      %v1416 = vsel %vm1386, %v1414, %v1415
      %1427 = vst [vmem:[#allocation4 + $0x10] sm:$0xff] %v1389
      %1428 = vst [vmem:[#allocation4 + $0x58] sm:$0xff] %v1392
      %1429 = vst [vmem:[#allocation4 + $0xa0] sm:$0xff] %v1395
      %1430 = vst [vmem:[#allocation4 + $0xe8] sm:$0xff] %v1398
      %1431 = vst [vmem:[#allocation4 + $0x130] sm:$0xff] %v1401
      %1432 = vst [vmem:[#allocation4 + $0x178] sm:$0xff] %v1404
      %1433 = vst [vmem:[#allocation4 + $0x1c0] sm:$0xff] %v1407
      %1434 = vst [vmem:[#allocation4 + $0x208] sm:$0xff] %v1410
      %1435 = vst [vmem:[#allocation4 + $0x250] sm:$0xff] %v1413
      %1436 = vst [vmem:[#allocation4 + $0x298] sm:$0xff] %v1416
      %s1437 = scalar_lea.vmem [#allocation2], 12
      %v1438 = vld [vmem:[%s1437] sm:$0xf]
      %v1439 = vld [vmem:[%s1437 + $0x4] sm:$0xf]
      %v1440 = vld [vmem:[%s1437 + $0xc] sm:$0xf]
      %v1441 = vld [vmem:[%s1437 + $0x10] sm:$0xf]
      %v1442 = vld [vmem:[%s1437 + $0x18] sm:$0xf]
      %v1443 = vld [vmem:[%s1437 + $0x1c] sm:$0xf]
      %v1444 = vld [vmem:[%s1437 + $0x24] sm:$0xf]
      %v1445 = vld [vmem:[%s1437 + $0x28] sm:$0xf]
      %v1446 = vld [vmem:[%s1437 + $0x30] sm:$0xf]
      %v1447 = vld [vmem:[%s1437 + $0x34] sm:$0xf]
      %v1448 = vld [vmem:[%s1437 + $0x3c] sm:$0xf]
      %v1449 = vld [vmem:[%s1437 + $0x40] sm:$0xf]
      %v1450 = vld [vmem:[%s1437 + $0x48] sm:$0xf]
      %v1451 = vld [vmem:[%s1437 + $0x4c] sm:$0xf]
      %v1452 = vld [vmem:[%s1437 + $0x54] sm:$0xf]
      %v1453 = vld [vmem:[%s1437 + $0x58] sm:$0xf]
      %v1454 = vld [vmem:[%s1437 + $0x60] sm:$0xf]
      %v1455 = vld [vmem:[%s1437 + $0x64] sm:$0xf]
      %v1456 = vld [vmem:[%s1437 + $0x6c] sm:$0xf]
      %v1457 = vld [vmem:[%s1437 + $0x70] sm:$0xf]
      %v1478 = vunpack.c.l.b16 %v1438
      %v1479 = vunpack.c.l.b16 %v1439
      %v1480 = vunpack.c.l.b16 %v1440
      %v1481 = vunpack.c.l.b16 %v1441
      %v1482 = vunpack.c.l.b16 %v1442
      %v1483 = vunpack.c.l.b16 %v1443
      %v1484 = vunpack.c.l.b16 %v1444
      %v1485 = vunpack.c.l.b16 %v1445
      %v1486 = vunpack.c.l.b16 %v1446
      %v1487 = vunpack.c.l.b16 %v1447
      %v1488 = vunpack.c.l.b16 %v1448
      %v1489 = vunpack.c.l.b16 %v1449
      %v1490 = vunpack.c.l.b16 %v1450
      %v1491 = vunpack.c.l.b16 %v1451
      %v1492 = vunpack.c.l.b16 %v1452
      %v1493 = vunpack.c.l.b16 %v1453
      %v1494 = vunpack.c.l.b16 %v1454
      %v1495 = vunpack.c.l.b16 %v1455
      %v1496 = vunpack.c.l.b16 %v1456
      %v1497 = vunpack.c.l.b16 %v1457
      %v1498 = vpack.c.b16 %v1479, %v1478
      %v1499 = vpack.c.b16 %v1481, %v1480
      %v1500 = vpack.c.b16 %v1483, %v1482
      %v1501 = vpack.c.b16 %v1485, %v1484
      %v1502 = vpack.c.b16 %v1487, %v1486
      %v1503 = vpack.c.b16 %v1489, %v1488
      %v1504 = vpack.c.b16 %v1491, %v1490
      %v1505 = vpack.c.b16 %v1493, %v1492
      %v1506 = vpack.c.b16 %v1495, %v1494
      %v1507 = vpack.c.b16 %v1497, %v1496
      %1518 = vst [vmem:[#allocation4 + $0x18] sm:$0xff] %v1498
      %1519 = vst [vmem:[#allocation4 + $0x60] sm:$0xff] %v1499
      %1520 = vst [vmem:[#allocation4 + $0xa8] sm:$0xff] %v1500
      %1521 = vst [vmem:[#allocation4 + $0xf0] sm:$0xff] %v1501
      %1522 = vst [vmem:[#allocation4 + $0x138] sm:$0xff] %v1502
      %1523 = vst [vmem:[#allocation4 + $0x180] sm:$0xff] %v1503
      %1524 = vst [vmem:[#allocation4 + $0x1c8] sm:$0xff] %v1504
      %1525 = vst [vmem:[#allocation4 + $0x210] sm:$0xff] %v1505
      %1526 = vst [vmem:[#allocation4 + $0x258] sm:$0xff] %v1506
      %1527 = vst [vmem:[#allocation4 + $0x2a0] sm:$0xff] %v1507
      %v1528 = vld [vmem:[%s1437] sm:$0xf]
      %v1529 = vld [vmem:[%s1437 + $0x4] sm:$0xf]
      %v1530 = vld [vmem:[%s1437 + $0x8] sm:$0x1]
      %v1531 = vld [vmem:[%s1437 + $0xc] sm:$0xf]
      %v1532 = vld [vmem:[%s1437 + $0x10] sm:$0xf]
      %v1533 = vld [vmem:[%s1437 + $0x14] sm:$0x1]
      %v1534 = vld [vmem:[%s1437 + $0x18] sm:$0xf]
      %v1535 = vld [vmem:[%s1437 + $0x1c] sm:$0xf]
      %v1536 = vld [vmem:[%s1437 + $0x20] sm:$0x1]
      %v1537 = vld [vmem:[%s1437 + $0x24] sm:$0xf]
      %v1538 = vld [vmem:[%s1437 + $0x28] sm:$0xf]
      %v1539 = vld [vmem:[%s1437 + $0x2c] sm:$0x1]
      %v1540 = vld [vmem:[%s1437 + $0x30] sm:$0xf]
      %v1541 = vld [vmem:[%s1437 + $0x34] sm:$0xf]
      %v1542 = vld [vmem:[%s1437 + $0x38] sm:$0x1]
      %v1543 = vld [vmem:[%s1437 + $0x3c] sm:$0xf]
      %v1544 = vld [vmem:[%s1437 + $0x40] sm:$0xf]
      %v1545 = vld [vmem:[%s1437 + $0x44] sm:$0x1]
      %v1546 = vld [vmem:[%s1437 + $0x48] sm:$0xf]
      %v1547 = vld [vmem:[%s1437 + $0x4c] sm:$0xf]
      %v1548 = vld [vmem:[%s1437 + $0x50] sm:$0x1]
      %v1549 = vld [vmem:[%s1437 + $0x54] sm:$0xf]
      %v1550 = vld [vmem:[%s1437 + $0x58] sm:$0xf]
      %v1551 = vld [vmem:[%s1437 + $0x5c] sm:$0x1]
      %v1552 = vld [vmem:[%s1437 + $0x60] sm:$0xf]
      %v1553 = vld [vmem:[%s1437 + $0x64] sm:$0xf]
      %v1554 = vld [vmem:[%s1437 + $0x68] sm:$0x1]
      %v1555 = vld [vmem:[%s1437 + $0x6c] sm:$0xf]
      %v1556 = vld [vmem:[%s1437 + $0x70] sm:$0xf]
      %v1557 = vld [vmem:[%s1437 + $0x74] sm:$0x1]
      %v1588 = vunpack.c.l.b16 %v1528
      %v1589 = vunpack.c.l.b16 %v1529
      %v1590 = vunpack.c.l.b16 %v1530
      %v1591 = vunpack.c.l.b16 %v1531
      %v1592 = vunpack.c.l.b16 %v1532
      %v1593 = vunpack.c.l.b16 %v1533
      %v1594 = vunpack.c.l.b16 %v1534
      %v1595 = vunpack.c.l.b16 %v1535
      %v1596 = vunpack.c.l.b16 %v1536
      %v1597 = vunpack.c.l.b16 %v1537
      %v1598 = vunpack.c.l.b16 %v1538
      %v1599 = vunpack.c.l.b16 %v1539
      %v1600 = vunpack.c.l.b16 %v1540
      %v1601 = vunpack.c.l.b16 %v1541
      %v1602 = vunpack.c.l.b16 %v1542
      %v1603 = vunpack.c.l.b16 %v1543
      %v1604 = vunpack.c.l.b16 %v1544
      %v1605 = vunpack.c.l.b16 %v1545
      %v1606 = vunpack.c.l.b16 %v1546
      %v1607 = vunpack.c.l.b16 %v1547
      %v1608 = vunpack.c.l.b16 %v1548
      %v1609 = vunpack.c.l.b16 %v1549
      %v1610 = vunpack.c.l.b16 %v1550
      %v1611 = vunpack.c.l.b16 %v1551
      %v1612 = vunpack.c.l.b16 %v1552
      %v1613 = vunpack.c.l.b16 %v1553
      %v1614 = vunpack.c.l.b16 %v1554
      %v1615 = vunpack.c.l.b16 %v1555
      %v1616 = vunpack.c.l.b16 %v1556
      %v1617 = vunpack.c.l.b16 %v1557
      %v1618 = vpack.c.b16 %v1589, %v1588
      %v1619 = vpack.c.b16 %v1590, %v1590
      %v1620 = vpack.c.b16 %v1592, %v1591
      %v1621 = vpack.c.b16 %v1593, %v1593
      %v1622 = vpack.c.b16 %v1595, %v1594
      %v1623 = vpack.c.b16 %v1596, %v1596
      %v1624 = vpack.c.b16 %v1598, %v1597
      %v1625 = vpack.c.b16 %v1599, %v1599
      %v1626 = vpack.c.b16 %v1601, %v1600
      %v1627 = vpack.c.b16 %v1602, %v1602
      %v1628 = vpack.c.b16 %v1604, %v1603
      %v1629 = vpack.c.b16 %v1605, %v1605
      %v1630 = vpack.c.b16 %v1607, %v1606
      %v1631 = vpack.c.b16 %v1608, %v1608
      %v1632 = vpack.c.b16 %v1610, %v1609
      %v1633 = vpack.c.b16 %v1611, %v1611
      %v1634 = vpack.c.b16 %v1613, %v1612
      %v1635 = vpack.c.b16 %v1614, %v1614
      %v1636 = vpack.c.b16 %v1616, %v1615
      %v1637 = vpack.c.b16 %v1617, %v1617
      %v1639 = vshrl.u32 %v1618, 16
      %v1641 = vshll.u32 %v1618, 16
      %v1643 = vrot.slane %v1641, 1
      %v1644 = vor.u32 %v1639, %v1643
      %v1646 = vshll.u32 %v1619, 16
      %v1648 = vrot.slane %v1646, 1
      %v1649 = vsel %vm1135, %v1644, %v1648
      %v1651 = vshrl.u32 %v1620, 16
      %v1653 = vshll.u32 %v1620, 16
      %v1655 = vrot.slane %v1653, 1
      %v1656 = vor.u32 %v1651, %v1655
      %v1658 = vshll.u32 %v1621, 16
      %v1660 = vrot.slane %v1658, 1
      %v1661 = vsel %vm1135, %v1656, %v1660
      %v1663 = vshrl.u32 %v1622, 16
      %v1665 = vshll.u32 %v1622, 16
      %v1667 = vrot.slane %v1665, 1
      %v1668 = vor.u32 %v1663, %v1667
      %v1670 = vshll.u32 %v1623, 16
      %v1672 = vrot.slane %v1670, 1
      %v1673 = vsel %vm1135, %v1668, %v1672
      %v1675 = vshrl.u32 %v1624, 16
      %v1677 = vshll.u32 %v1624, 16
      %v1679 = vrot.slane %v1677, 1
      %v1680 = vor.u32 %v1675, %v1679
      %v1682 = vshll.u32 %v1625, 16
      %v1684 = vrot.slane %v1682, 1
      %v1685 = vsel %vm1135, %v1680, %v1684
      %v1687 = vshrl.u32 %v1626, 16
      %v1689 = vshll.u32 %v1626, 16
      %v1691 = vrot.slane %v1689, 1
      %v1692 = vor.u32 %v1687, %v1691
      %v1694 = vshll.u32 %v1627, 16
      %v1696 = vrot.slane %v1694, 1
      %v1697 = vsel %vm1135, %v1692, %v1696
      %v1699 = vshrl.u32 %v1628, 16
      %v1701 = vshll.u32 %v1628, 16
      %v1703 = vrot.slane %v1701, 1
      %v1704 = vor.u32 %v1699, %v1703
      %v1706 = vshll.u32 %v1629, 16
      %v1708 = vrot.slane %v1706, 1
      %v1709 = vsel %vm1135, %v1704, %v1708
      %v1711 = vshrl.u32 %v1630, 16
      %v1713 = vshll.u32 %v1630, 16
      %v1715 = vrot.slane %v1713, 1
      %v1716 = vor.u32 %v1711, %v1715
      %v1718 = vshll.u32 %v1631, 16
      %v1720 = vrot.slane %v1718, 1
      %v1721 = vsel %vm1135, %v1716, %v1720
      %v1723 = vshrl.u32 %v1632, 16
      %v1725 = vshll.u32 %v1632, 16
      %v1727 = vrot.slane %v1725, 1
      %v1728 = vor.u32 %v1723, %v1727
      %v1730 = vshll.u32 %v1633, 16
      %v1732 = vrot.slane %v1730, 1
      %v1733 = vsel %vm1135, %v1728, %v1732
      %v1735 = vshrl.u32 %v1634, 16
      %v1737 = vshll.u32 %v1634, 16
      %v1739 = vrot.slane %v1737, 1
      %v1740 = vor.u32 %v1735, %v1739
      %v1742 = vshll.u32 %v1635, 16
      %v1744 = vrot.slane %v1742, 1
      %v1745 = vsel %vm1135, %v1740, %v1744
      %v1747 = vshrl.u32 %v1636, 16
      %v1749 = vshll.u32 %v1636, 16
      %v1751 = vrot.slane %v1749, 1
      %v1752 = vor.u32 %v1747, %v1751
      %v1754 = vshll.u32 %v1637, 16
      %v1756 = vrot.slane %v1754, 1
      %v1757 = vsel %vm1135, %v1752, %v1756
      %1768 = vst [vmem:[#allocation4 + $0x20] sm:$0xff] %v1649
      %1769 = vst [vmem:[#allocation4 + $0x68] sm:$0xff] %v1661
      %1770 = vst [vmem:[#allocation4 + $0xb0] sm:$0xff] %v1673
      %1771 = vst [vmem:[#allocation4 + $0xf8] sm:$0xff] %v1685
      %1772 = vst [vmem:[#allocation4 + $0x140] sm:$0xff] %v1697
      %1773 = vst [vmem:[#allocation4 + $0x188] sm:$0xff] %v1709
      %1774 = vst [vmem:[#allocation4 + $0x1d0] sm:$0xff] %v1721
      %1775 = vst [vmem:[#allocation4 + $0x218] sm:$0xff] %v1733
      %1776 = vst [vmem:[#allocation4 + $0x260] sm:$0xff] %v1745
      %1777 = vst [vmem:[#allocation4 + $0x2a8] sm:$0xff] %v1757
      %v1778 = vld [vmem:[%s1437] sm:$0xe]
      %v1779 = vld [vmem:[%s1437 + $0x4] sm:$0xf]
      %v1780 = vld [vmem:[%s1437 + $0x8] sm:$0x1]
      %v1781 = vld [vmem:[%s1437 + $0xc] sm:$0xe]
      %v1782 = vld [vmem:[%s1437 + $0x10] sm:$0xf]
      %v1783 = vld [vmem:[%s1437 + $0x14] sm:$0x1]
      %v1784 = vld [vmem:[%s1437 + $0x18] sm:$0xe]
      %v1785 = vld [vmem:[%s1437 + $0x1c] sm:$0xf]
      %v1786 = vld [vmem:[%s1437 + $0x20] sm:$0x1]
      %v1787 = vld [vmem:[%s1437 + $0x24] sm:$0xe]
      %v1788 = vld [vmem:[%s1437 + $0x28] sm:$0xf]
      %v1789 = vld [vmem:[%s1437 + $0x2c] sm:$0x1]
      %v1790 = vld [vmem:[%s1437 + $0x30] sm:$0xe]
      %v1791 = vld [vmem:[%s1437 + $0x34] sm:$0xf]
      %v1792 = vld [vmem:[%s1437 + $0x38] sm:$0x1]
      %v1793 = vld [vmem:[%s1437 + $0x3c] sm:$0xe]
      %v1794 = vld [vmem:[%s1437 + $0x40] sm:$0xf]
      %v1795 = vld [vmem:[%s1437 + $0x44] sm:$0x1]
      %v1796 = vld [vmem:[%s1437 + $0x48] sm:$0xe]
      %v1797 = vld [vmem:[%s1437 + $0x4c] sm:$0xf]
      %v1798 = vld [vmem:[%s1437 + $0x50] sm:$0x1]
      %v1799 = vld [vmem:[%s1437 + $0x54] sm:$0xe]
      %v1800 = vld [vmem:[%s1437 + $0x58] sm:$0xf]
      %v1801 = vld [vmem:[%s1437 + $0x5c] sm:$0x1]
      %v1802 = vld [vmem:[%s1437 + $0x60] sm:$0xe]
      %v1803 = vld [vmem:[%s1437 + $0x64] sm:$0xf]
      %v1804 = vld [vmem:[%s1437 + $0x68] sm:$0x1]
      %v1805 = vld [vmem:[%s1437 + $0x6c] sm:$0xe]
      %v1806 = vld [vmem:[%s1437 + $0x70] sm:$0xf]
      %v1807 = vld [vmem:[%s1437 + $0x74] sm:$0x1]
      %v1838 = vunpack.c.l.b16 %v1778
      %v1839 = vunpack.c.l.b16 %v1779
      %v1840 = vunpack.c.l.b16 %v1780
      %v1841 = vunpack.c.l.b16 %v1781
      %v1842 = vunpack.c.l.b16 %v1782
      %v1843 = vunpack.c.l.b16 %v1783
      %v1844 = vunpack.c.l.b16 %v1784
      %v1845 = vunpack.c.l.b16 %v1785
      %v1846 = vunpack.c.l.b16 %v1786
      %v1847 = vunpack.c.l.b16 %v1787
      %v1848 = vunpack.c.l.b16 %v1788
      %v1849 = vunpack.c.l.b16 %v1789
      %v1850 = vunpack.c.l.b16 %v1790
      %v1851 = vunpack.c.l.b16 %v1791
      %v1852 = vunpack.c.l.b16 %v1792
      %v1853 = vunpack.c.l.b16 %v1793
      %v1854 = vunpack.c.l.b16 %v1794
      %v1855 = vunpack.c.l.b16 %v1795
      %v1856 = vunpack.c.l.b16 %v1796
      %v1857 = vunpack.c.l.b16 %v1797
      %v1858 = vunpack.c.l.b16 %v1798
      %v1859 = vunpack.c.l.b16 %v1799
      %v1860 = vunpack.c.l.b16 %v1800
      %v1861 = vunpack.c.l.b16 %v1801
      %v1862 = vunpack.c.l.b16 %v1802
      %v1863 = vunpack.c.l.b16 %v1803
      %v1864 = vunpack.c.l.b16 %v1804
      %v1865 = vunpack.c.l.b16 %v1805
      %v1866 = vunpack.c.l.b16 %v1806
      %v1867 = vunpack.c.l.b16 %v1807
      %v1868 = vpack.c.b16 %v1839, %v1838
      %v1869 = vpack.c.b16 %v1840, %v1840
      %v1870 = vpack.c.b16 %v1842, %v1841
      %v1871 = vpack.c.b16 %v1843, %v1843
      %v1872 = vpack.c.b16 %v1845, %v1844
      %v1873 = vpack.c.b16 %v1846, %v1846
      %v1874 = vpack.c.b16 %v1848, %v1847
      %v1875 = vpack.c.b16 %v1849, %v1849
      %v1876 = vpack.c.b16 %v1851, %v1850
      %v1877 = vpack.c.b16 %v1852, %v1852
      %v1878 = vpack.c.b16 %v1854, %v1853
      %v1879 = vpack.c.b16 %v1855, %v1855
      %v1880 = vpack.c.b16 %v1857, %v1856
      %v1881 = vpack.c.b16 %v1858, %v1858
      %v1882 = vpack.c.b16 %v1860, %v1859
      %v1883 = vpack.c.b16 %v1861, %v1861
      %v1884 = vpack.c.b16 %v1863, %v1862
      %v1885 = vpack.c.b16 %v1864, %v1864
      %v1886 = vpack.c.b16 %v1866, %v1865
      %v1887 = vpack.c.b16 %v1867, %v1867
      %v1888 = vrot.slane %v1868, 1
      %v1889 = vrot.slane %v1869, 1
      %v1890 = vsel %vm1386, %v1888, %v1889
      %v1891 = vrot.slane %v1870, 1
      %v1892 = vrot.slane %v1871, 1
      %v1893 = vsel %vm1386, %v1891, %v1892
      %v1894 = vrot.slane %v1872, 1
      %v1895 = vrot.slane %v1873, 1
      %v1896 = vsel %vm1386, %v1894, %v1895
      %v1897 = vrot.slane %v1874, 1
      %v1898 = vrot.slane %v1875, 1
      %v1899 = vsel %vm1386, %v1897, %v1898
      %v1900 = vrot.slane %v1876, 1
      %v1901 = vrot.slane %v1877, 1
      %v1902 = vsel %vm1386, %v1900, %v1901
      %v1903 = vrot.slane %v1878, 1
      %v1904 = vrot.slane %v1879, 1
      %v1905 = vsel %vm1386, %v1903, %v1904
      %v1906 = vrot.slane %v1880, 1
      %v1907 = vrot.slane %v1881, 1
      %v1908 = vsel %vm1386, %v1906, %v1907
      %v1909 = vrot.slane %v1882, 1
      %v1910 = vrot.slane %v1883, 1
      %v1911 = vsel %vm1386, %v1909, %v1910
      %v1912 = vrot.slane %v1884, 1
      %v1913 = vrot.slane %v1885, 1
      %v1914 = vsel %vm1386, %v1912, %v1913
      %v1915 = vrot.slane %v1886, 1
      %v1916 = vrot.slane %v1887, 1
      %v1917 = vsel %vm1386, %v1915, %v1916
      %1928 = vst [vmem:[#allocation4 + $0x28] sm:$0xff] %v1890
      %1929 = vst [vmem:[#allocation4 + $0x70] sm:$0xff] %v1893
      %1930 = vst [vmem:[#allocation4 + $0xb8] sm:$0xff] %v1896
      %1931 = vst [vmem:[#allocation4 + $0x100] sm:$0xff] %v1899
      %1932 = vst [vmem:[#allocation4 + $0x148] sm:$0xff] %v1902
      %1933 = vst [vmem:[#allocation4 + $0x190] sm:$0xff] %v1905
      %1934 = vst [vmem:[#allocation4 + $0x1d8] sm:$0xff] %v1908
      %1935 = vst [vmem:[#allocation4 + $0x220] sm:$0xff] %v1911
      %1936 = vst [vmem:[#allocation4 + $0x268] sm:$0xff] %v1914
      %1937 = vst [vmem:[#allocation4 + $0x2b0] sm:$0xff] %v1917
      %v1938 = vld [vmem:[%s684] sm:$0xf]
      %v1939 = vld [vmem:[%s684 + $0x4] sm:$0xf]
      %v1940 = vld [vmem:[%s684 + $0xc] sm:$0xf]
      %v1941 = vld [vmem:[%s684 + $0x10] sm:$0xf]
      %v1942 = vld [vmem:[%s684 + $0x18] sm:$0xf]
      %v1943 = vld [vmem:[%s684 + $0x1c] sm:$0xf]
      %v1944 = vld [vmem:[%s684 + $0x24] sm:$0xf]
      %v1945 = vld [vmem:[%s684 + $0x28] sm:$0xf]
      %v1946 = vld [vmem:[%s684 + $0x30] sm:$0xf]
      %v1947 = vld [vmem:[%s684 + $0x34] sm:$0xf]
      %v1948 = vld [vmem:[%s684 + $0x3c] sm:$0xf]
      %v1949 = vld [vmem:[%s684 + $0x40] sm:$0xf]
      %v1950 = vld [vmem:[%s684 + $0x48] sm:$0xf]
      %v1951 = vld [vmem:[%s684 + $0x4c] sm:$0xf]
      %v1952 = vld [vmem:[%s684 + $0x54] sm:$0xf]
      %v1953 = vld [vmem:[%s684 + $0x58] sm:$0xf]
      %v1954 = vld [vmem:[%s684 + $0x60] sm:$0xf]
      %v1955 = vld [vmem:[%s684 + $0x64] sm:$0xf]
      %v1956 = vld [vmem:[%s684 + $0x6c] sm:$0xf]
      %v1957 = vld [vmem:[%s684 + $0x70] sm:$0xf]
      %v1978 = vunpack.c.l.b16 %v1938
      %v1979 = vunpack.c.l.b16 %v1939
      %v1980 = vunpack.c.l.b16 %v1940
      %v1981 = vunpack.c.l.b16 %v1941
      %v1982 = vunpack.c.l.b16 %v1942
      %v1983 = vunpack.c.l.b16 %v1943
      %v1984 = vunpack.c.l.b16 %v1944
      %v1985 = vunpack.c.l.b16 %v1945
      %v1986 = vunpack.c.l.b16 %v1946
      %v1987 = vunpack.c.l.b16 %v1947
      %v1988 = vunpack.c.l.b16 %v1948
      %v1989 = vunpack.c.l.b16 %v1949
      %v1990 = vunpack.c.l.b16 %v1950
      %v1991 = vunpack.c.l.b16 %v1951
      %v1992 = vunpack.c.l.b16 %v1952
      %v1993 = vunpack.c.l.b16 %v1953
      %v1994 = vunpack.c.l.b16 %v1954
      %v1995 = vunpack.c.l.b16 %v1955
      %v1996 = vunpack.c.l.b16 %v1956
      %v1997 = vunpack.c.l.b16 %v1957
      %v1998 = vpack.c.b16 %v1979, %v1978
      %v1999 = vpack.c.b16 %v1981, %v1980
      %v2000 = vpack.c.b16 %v1983, %v1982
      %v2001 = vpack.c.b16 %v1985, %v1984
      %v2002 = vpack.c.b16 %v1987, %v1986
      %v2003 = vpack.c.b16 %v1989, %v1988
      %v2004 = vpack.c.b16 %v1991, %v1990
      %v2005 = vpack.c.b16 %v1993, %v1992
      %v2006 = vpack.c.b16 %v1995, %v1994
      %v2007 = vpack.c.b16 %v1997, %v1996
      %2018 = vst [vmem:[#allocation4 + $0x30] sm:$0xff] %v1998
      %2019 = vst [vmem:[#allocation4 + $0x78] sm:$0xff] %v1999
      %2020 = vst [vmem:[#allocation4 + $0xc0] sm:$0xff] %v2000
      %2021 = vst [vmem:[#allocation4 + $0x108] sm:$0xff] %v2001
      %2022 = vst [vmem:[#allocation4 + $0x150] sm:$0xff] %v2002
      %2023 = vst [vmem:[#allocation4 + $0x198] sm:$0xff] %v2003
      %2024 = vst [vmem:[#allocation4 + $0x1e0] sm:$0xff] %v2004
      %2025 = vst [vmem:[#allocation4 + $0x228] sm:$0xff] %v2005
      %2026 = vst [vmem:[#allocation4 + $0x270] sm:$0xff] %v2006
      %2027 = vst [vmem:[#allocation4 + $0x2b8] sm:$0xff] %v2007
      %v2028 = vld [vmem:[%s684] sm:$0xf]
      %v2029 = vld [vmem:[%s684 + $0x4] sm:$0xf]
      %v2030 = vld [vmem:[%s684 + $0x8] sm:$0x1]
      %v2031 = vld [vmem:[%s684 + $0xc] sm:$0xf]
      %v2032 = vld [vmem:[%s684 + $0x10] sm:$0xf]
      %v2033 = vld [vmem:[%s684 + $0x14] sm:$0x1]
      %v2034 = vld [vmem:[%s684 + $0x18] sm:$0xf]
      %v2035 = vld [vmem:[%s684 + $0x1c] sm:$0xf]
      %v2036 = vld [vmem:[%s684 + $0x20] sm:$0x1]
      %v2037 = vld [vmem:[%s684 + $0x24] sm:$0xf]
      %v2038 = vld [vmem:[%s684 + $0x28] sm:$0xf]
      %v2039 = vld [vmem:[%s684 + $0x2c] sm:$0x1]
      %v2040 = vld [vmem:[%s684 + $0x30] sm:$0xf]
      %v2041 = vld [vmem:[%s684 + $0x34] sm:$0xf]
      %v2042 = vld [vmem:[%s684 + $0x38] sm:$0x1]
      %v2043 = vld [vmem:[%s684 + $0x3c] sm:$0xf]
      %v2044 = vld [vmem:[%s684 + $0x40] sm:$0xf]
      %v2045 = vld [vmem:[%s684 + $0x44] sm:$0x1]
      %v2046 = vld [vmem:[%s684 + $0x48] sm:$0xf]
      %v2047 = vld [vmem:[%s684 + $0x4c] sm:$0xf]
      %v2048 = vld [vmem:[%s684 + $0x50] sm:$0x1]
      %v2049 = vld [vmem:[%s684 + $0x54] sm:$0xf]
      %v2050 = vld [vmem:[%s684 + $0x58] sm:$0xf]
      %v2051 = vld [vmem:[%s684 + $0x5c] sm:$0x1]
      %v2052 = vld [vmem:[%s684 + $0x60] sm:$0xf]
      %v2053 = vld [vmem:[%s684 + $0x64] sm:$0xf]
      %v2054 = vld [vmem:[%s684 + $0x68] sm:$0x1]
      %v2055 = vld [vmem:[%s684 + $0x6c] sm:$0xf]
      %v2056 = vld [vmem:[%s684 + $0x70] sm:$0xf]
      %v2057 = vld [vmem:[%s684 + $0x74] sm:$0x1]
      %v2088 = vunpack.c.l.b16 %v2028
      %v2089 = vunpack.c.l.b16 %v2029
      %v2090 = vunpack.c.l.b16 %v2030
      %v2091 = vunpack.c.l.b16 %v2031
      %v2092 = vunpack.c.l.b16 %v2032
      %v2093 = vunpack.c.l.b16 %v2033
      %v2094 = vunpack.c.l.b16 %v2034
      %v2095 = vunpack.c.l.b16 %v2035
      %v2096 = vunpack.c.l.b16 %v2036
      %v2097 = vunpack.c.l.b16 %v2037
      %v2098 = vunpack.c.l.b16 %v2038
      %v2099 = vunpack.c.l.b16 %v2039
      %v2100 = vunpack.c.l.b16 %v2040
      %v2101 = vunpack.c.l.b16 %v2041
      %v2102 = vunpack.c.l.b16 %v2042
      %v2103 = vunpack.c.l.b16 %v2043
      %v2104 = vunpack.c.l.b16 %v2044
      %v2105 = vunpack.c.l.b16 %v2045
      %v2106 = vunpack.c.l.b16 %v2046
      %v2107 = vunpack.c.l.b16 %v2047
      %v2108 = vunpack.c.l.b16 %v2048
      %v2109 = vunpack.c.l.b16 %v2049
      %v2110 = vunpack.c.l.b16 %v2050
      %v2111 = vunpack.c.l.b16 %v2051
      %v2112 = vunpack.c.l.b16 %v2052
      %v2113 = vunpack.c.l.b16 %v2053
      %v2114 = vunpack.c.l.b16 %v2054
      %v2115 = vunpack.c.l.b16 %v2055
      %v2116 = vunpack.c.l.b16 %v2056
      %v2117 = vunpack.c.l.b16 %v2057
      %v2118 = vpack.c.b16 %v2089, %v2088
      %v2119 = vpack.c.b16 %v2090, %v2090
      %v2120 = vpack.c.b16 %v2092, %v2091
      %v2121 = vpack.c.b16 %v2093, %v2093
      %v2122 = vpack.c.b16 %v2095, %v2094
      %v2123 = vpack.c.b16 %v2096, %v2096
      %v2124 = vpack.c.b16 %v2098, %v2097
      %v2125 = vpack.c.b16 %v2099, %v2099
      %v2126 = vpack.c.b16 %v2101, %v2100
      %v2127 = vpack.c.b16 %v2102, %v2102
      %v2128 = vpack.c.b16 %v2104, %v2103
      %v2129 = vpack.c.b16 %v2105, %v2105
      %v2130 = vpack.c.b16 %v2107, %v2106
      %v2131 = vpack.c.b16 %v2108, %v2108
      %v2132 = vpack.c.b16 %v2110, %v2109
      %v2133 = vpack.c.b16 %v2111, %v2111
      %v2134 = vpack.c.b16 %v2113, %v2112
      %v2135 = vpack.c.b16 %v2114, %v2114
      %v2136 = vpack.c.b16 %v2116, %v2115
      %v2137 = vpack.c.b16 %v2117, %v2117
      %v2139 = vshrl.u32 %v2118, 16
      %v2141 = vshll.u32 %v2118, 16
      %v2143 = vrot.slane %v2141, 1
      %v2144 = vor.u32 %v2139, %v2143
      %v2146 = vshll.u32 %v2119, 16
      %v2148 = vrot.slane %v2146, 1
      %v2149 = vsel %vm1135, %v2144, %v2148
      %v2151 = vshrl.u32 %v2120, 16
      %v2153 = vshll.u32 %v2120, 16
      %v2155 = vrot.slane %v2153, 1
      %v2156 = vor.u32 %v2151, %v2155
      %v2158 = vshll.u32 %v2121, 16
      %v2160 = vrot.slane %v2158, 1
      %v2161 = vsel %vm1135, %v2156, %v2160
      %v2163 = vshrl.u32 %v2122, 16
      %v2165 = vshll.u32 %v2122, 16
      %v2167 = vrot.slane %v2165, 1
      %v2168 = vor.u32 %v2163, %v2167
      %v2170 = vshll.u32 %v2123, 16
      %v2172 = vrot.slane %v2170, 1
      %v2173 = vsel %vm1135, %v2168, %v2172
      %v2175 = vshrl.u32 %v2124, 16
      %v2177 = vshll.u32 %v2124, 16
      %v2179 = vrot.slane %v2177, 1
      %v2180 = vor.u32 %v2175, %v2179
      %v2182 = vshll.u32 %v2125, 16
      %v2184 = vrot.slane %v2182, 1
      %v2185 = vsel %vm1135, %v2180, %v2184
      %v2187 = vshrl.u32 %v2126, 16
      %v2189 = vshll.u32 %v2126, 16
      %v2191 = vrot.slane %v2189, 1
      %v2192 = vor.u32 %v2187, %v2191
      %v2194 = vshll.u32 %v2127, 16
      %v2196 = vrot.slane %v2194, 1
      %v2197 = vsel %vm1135, %v2192, %v2196
      %v2199 = vshrl.u32 %v2128, 16
      %v2201 = vshll.u32 %v2128, 16
      %v2203 = vrot.slane %v2201, 1
      %v2204 = vor.u32 %v2199, %v2203
      %v2206 = vshll.u32 %v2129, 16
      %v2208 = vrot.slane %v2206, 1
      %v2209 = vsel %vm1135, %v2204, %v2208
      %v2211 = vshrl.u32 %v2130, 16
      %v2213 = vshll.u32 %v2130, 16
      %v2215 = vrot.slane %v2213, 1
      %v2216 = vor.u32 %v2211, %v2215
      %v2218 = vshll.u32 %v2131, 16
      %v2220 = vrot.slane %v2218, 1
      %v2221 = vsel %vm1135, %v2216, %v2220
      %v2223 = vshrl.u32 %v2132, 16
      %v2225 = vshll.u32 %v2132, 16
      %v2227 = vrot.slane %v2225, 1
      %v2228 = vor.u32 %v2223, %v2227
      %v2230 = vshll.u32 %v2133, 16
      %v2232 = vrot.slane %v2230, 1
      %v2233 = vsel %vm1135, %v2228, %v2232
      %v2235 = vshrl.u32 %v2134, 16
      %v2237 = vshll.u32 %v2134, 16
      %v2239 = vrot.slane %v2237, 1
      %v2240 = vor.u32 %v2235, %v2239
      %v2242 = vshll.u32 %v2135, 16
      %v2244 = vrot.slane %v2242, 1
      %v2245 = vsel %vm1135, %v2240, %v2244
      %v2247 = vshrl.u32 %v2136, 16
      %v2249 = vshll.u32 %v2136, 16
      %v2251 = vrot.slane %v2249, 1
      %v2252 = vor.u32 %v2247, %v2251
      %v2254 = vshll.u32 %v2137, 16
      %v2256 = vrot.slane %v2254, 1
      %v2257 = vsel %vm1135, %v2252, %v2256
      %2268 = vst [vmem:[#allocation4 + $0x38] sm:$0xff] %v2149
      %2269 = vst [vmem:[#allocation4 + $0x80] sm:$0xff] %v2161
      %2270 = vst [vmem:[#allocation4 + $0xc8] sm:$0xff] %v2173
      %2271 = vst [vmem:[#allocation4 + $0x110] sm:$0xff] %v2185
      %2272 = vst [vmem:[#allocation4 + $0x158] sm:$0xff] %v2197
      %2273 = vst [vmem:[#allocation4 + $0x1a0] sm:$0xff] %v2209
      %2274 = vst [vmem:[#allocation4 + $0x1e8] sm:$0xff] %v2221
      %2275 = vst [vmem:[#allocation4 + $0x230] sm:$0xff] %v2233
      %2276 = vst [vmem:[#allocation4 + $0x278] sm:$0xff] %v2245
      %2277 = vst [vmem:[#allocation4 + $0x2c0] sm:$0xff] %v2257
      %v2278 = vld [vmem:[%s684] sm:$0xe]
      %v2279 = vld [vmem:[%s684 + $0x4] sm:$0xf]
      %v2280 = vld [vmem:[%s684 + $0x8] sm:$0x1]
      %v2281 = vld [vmem:[%s684 + $0xc] sm:$0xe]
      %v2282 = vld [vmem:[%s684 + $0x10] sm:$0xf]
      %v2283 = vld [vmem:[%s684 + $0x14] sm:$0x1]
      %v2284 = vld [vmem:[%s684 + $0x18] sm:$0xe]
      %v2285 = vld [vmem:[%s684 + $0x1c] sm:$0xf]
      %v2286 = vld [vmem:[%s684 + $0x20] sm:$0x1]
      %v2287 = vld [vmem:[%s684 + $0x24] sm:$0xe]
      %v2288 = vld [vmem:[%s684 + $0x28] sm:$0xf]
      %v2289 = vld [vmem:[%s684 + $0x2c] sm:$0x1]
      %v2290 = vld [vmem:[%s684 + $0x30] sm:$0xe]
      %v2291 = vld [vmem:[%s684 + $0x34] sm:$0xf]
      %v2292 = vld [vmem:[%s684 + $0x38] sm:$0x1]
      %v2293 = vld [vmem:[%s684 + $0x3c] sm:$0xe]
      %v2294 = vld [vmem:[%s684 + $0x40] sm:$0xf]
      %v2295 = vld [vmem:[%s684 + $0x44] sm:$0x1]
      %v2296 = vld [vmem:[%s684 + $0x48] sm:$0xe]
      %v2297 = vld [vmem:[%s684 + $0x4c] sm:$0xf]
      %v2298 = vld [vmem:[%s684 + $0x50] sm:$0x1]
      %v2299 = vld [vmem:[%s684 + $0x54] sm:$0xe]
      %v2300 = vld [vmem:[%s684 + $0x58] sm:$0xf]
      %v2301 = vld [vmem:[%s684 + $0x5c] sm:$0x1]
      %v2302 = vld [vmem:[%s684 + $0x60] sm:$0xe]
      %v2303 = vld [vmem:[%s684 + $0x64] sm:$0xf]
      %v2304 = vld [vmem:[%s684 + $0x68] sm:$0x1]
      %v2305 = vld [vmem:[%s684 + $0x6c] sm:$0xe]
      %v2306 = vld [vmem:[%s684 + $0x70] sm:$0xf]
      %v2307 = vld [vmem:[%s684 + $0x74] sm:$0x1]
      %v2338 = vunpack.c.l.b16 %v2278
      %v2339 = vunpack.c.l.b16 %v2279
      %v2340 = vunpack.c.l.b16 %v2280
      %v2341 = vunpack.c.l.b16 %v2281
      %v2342 = vunpack.c.l.b16 %v2282
      %v2343 = vunpack.c.l.b16 %v2283
      %v2344 = vunpack.c.l.b16 %v2284
      %v2345 = vunpack.c.l.b16 %v2285
      %v2346 = vunpack.c.l.b16 %v2286
      %v2347 = vunpack.c.l.b16 %v2287
      %v2348 = vunpack.c.l.b16 %v2288
      %v2349 = vunpack.c.l.b16 %v2289
      %v2350 = vunpack.c.l.b16 %v2290
      %v2351 = vunpack.c.l.b16 %v2291
      %v2352 = vunpack.c.l.b16 %v2292
      %v2353 = vunpack.c.l.b16 %v2293
      %v2354 = vunpack.c.l.b16 %v2294
      %v2355 = vunpack.c.l.b16 %v2295
      %v2356 = vunpack.c.l.b16 %v2296
      %v2357 = vunpack.c.l.b16 %v2297
      %v2358 = vunpack.c.l.b16 %v2298
      %v2359 = vunpack.c.l.b16 %v2299
      %v2360 = vunpack.c.l.b16 %v2300
      %v2361 = vunpack.c.l.b16 %v2301
      %v2362 = vunpack.c.l.b16 %v2302
      %v2363 = vunpack.c.l.b16 %v2303
      %v2364 = vunpack.c.l.b16 %v2304
      %v2365 = vunpack.c.l.b16 %v2305
      %v2366 = vunpack.c.l.b16 %v2306
      %v2367 = vunpack.c.l.b16 %v2307
      %v2368 = vpack.c.b16 %v2339, %v2338
      %v2369 = vpack.c.b16 %v2340, %v2340
      %v2370 = vpack.c.b16 %v2342, %v2341
      %v2371 = vpack.c.b16 %v2343, %v2343
      %v2372 = vpack.c.b16 %v2345, %v2344
      %v2373 = vpack.c.b16 %v2346, %v2346
      %v2374 = vpack.c.b16 %v2348, %v2347
      %v2375 = vpack.c.b16 %v2349, %v2349
      %v2376 = vpack.c.b16 %v2351, %v2350
      %v2377 = vpack.c.b16 %v2352, %v2352
      %v2378 = vpack.c.b16 %v2354, %v2353
      %v2379 = vpack.c.b16 %v2355, %v2355
      %v2380 = vpack.c.b16 %v2357, %v2356
      %v2381 = vpack.c.b16 %v2358, %v2358
      %v2382 = vpack.c.b16 %v2360, %v2359
      %v2383 = vpack.c.b16 %v2361, %v2361
      %v2384 = vpack.c.b16 %v2363, %v2362
      %v2385 = vpack.c.b16 %v2364, %v2364
      %v2386 = vpack.c.b16 %v2366, %v2365
      %v2387 = vpack.c.b16 %v2367, %v2367
      %v2388 = vrot.slane %v2368, 1
      %v2389 = vrot.slane %v2369, 1
      %v2390 = vsel %vm1386, %v2388, %v2389
      %v2391 = vrot.slane %v2370, 1
      %v2392 = vrot.slane %v2371, 1
      %v2393 = vsel %vm1386, %v2391, %v2392
      %v2394 = vrot.slane %v2372, 1
      %v2395 = vrot.slane %v2373, 1
      %v2396 = vsel %vm1386, %v2394, %v2395
      %v2397 = vrot.slane %v2374, 1
      %v2398 = vrot.slane %v2375, 1
      %v2399 = vsel %vm1386, %v2397, %v2398
      %v2400 = vrot.slane %v2376, 1
      %v2401 = vrot.slane %v2377, 1
      %v2402 = vsel %vm1386, %v2400, %v2401
      %v2403 = vrot.slane %v2378, 1
      %v2404 = vrot.slane %v2379, 1
      %v2405 = vsel %vm1386, %v2403, %v2404
      %v2406 = vrot.slane %v2380, 1
      %v2407 = vrot.slane %v2381, 1
      %v2408 = vsel %vm1386, %v2406, %v2407
      %v2409 = vrot.slane %v2382, 1
      %v2410 = vrot.slane %v2383, 1
      %v2411 = vsel %vm1386, %v2409, %v2410
      %v2412 = vrot.slane %v2384, 1
      %v2413 = vrot.slane %v2385, 1
      %v2414 = vsel %vm1386, %v2412, %v2413
      %v2415 = vrot.slane %v2386, 1
      %v2416 = vrot.slane %v2387, 1
      %v2417 = vsel %vm1386, %v2415, %v2416
      %2428 = vst [vmem:[#allocation4 + $0x40] sm:$0xff] %v2390
      %2429 = vst [vmem:[#allocation4 + $0x88] sm:$0xff] %v2393
      %2430 = vst [vmem:[#allocation4 + $0xd0] sm:$0xff] %v2396
      %2431 = vst [vmem:[#allocation4 + $0x118] sm:$0xff] %v2399
      %2432 = vst [vmem:[#allocation4 + $0x160] sm:$0xff] %v2402
      %2433 = vst [vmem:[#allocation4 + $0x1a8] sm:$0xff] %v2405
      %2434 = vst [vmem:[#allocation4 + $0x1f0] sm:$0xff] %v2408
      %2435 = vst [vmem:[#allocation4 + $0x238] sm:$0xff] %v2411
      %2436 = vst [vmem:[#allocation4 + $0x280] sm:$0xff] %v2414
      %2437 = vst [vmem:[#allocation4 + $0x2c8] sm:$0xff] %v2417
      %v2438 = vld [vmem:[#allocation4] sm:$0xff]
      %v2439 = vld [vmem:[#allocation4 + $0x8] sm:$0xff]
      %v2440 = vld [vmem:[#allocation4 + $0x10] sm:$0xff]
      %v2441 = vld [vmem:[#allocation4 + $0x18] sm:$0xff]
      %v2442 = vld [vmem:[#allocation4 + $0x20] sm:$0xff]
      %v2443 = vld [vmem:[#allocation4 + $0x28] sm:$0xff]
      %v2444 = vld [vmem:[#allocation4 + $0x30] sm:$0xff]
      %v2445 = vld [vmem:[#allocation4 + $0x38] sm:$0xff]
      %v2446 = vld [vmem:[#allocation4 + $0x40] sm:$0xff]
      %v2447 = vld [vmem:[#allocation4 + $0x48] sm:$0xff]
      %v2448 = vld [vmem:[#allocation4 + $0x50] sm:$0xff]
      %v2449 = vld [vmem:[#allocation4 + $0x58] sm:$0xff]
      %v2450 = vld [vmem:[#allocation4 + $0x60] sm:$0xff]
      %v2451 = vld [vmem:[#allocation4 + $0x68] sm:$0xff]
      %v2452 = vld [vmem:[#allocation4 + $0x70] sm:$0xff]
      %v2453 = vld [vmem:[#allocation4 + $0x78] sm:$0xff]
      %v2454 = vld [vmem:[#allocation4 + $0x80] sm:$0xff]
      %v2455 = vld [vmem:[#allocation4 + $0x88] sm:$0xff]
      %v2456 = vld [vmem:[#allocation4 + $0x90] sm:$0xff]
      %v2457 = vld [vmem:[#allocation4 + $0x98] sm:$0xff]
      %v2458 = vld [vmem:[#allocation4 + $0xa0] sm:$0xff]
      %v2459 = vld [vmem:[#allocation4 + $0xa8] sm:$0xff]
      %v2460 = vld [vmem:[#allocation4 + $0xb0] sm:$0xff]
      %v2461 = vld [vmem:[#allocation4 + $0xb8] sm:$0xff]
      %v2462 = vld [vmem:[#allocation4 + $0xc0] sm:$0xff]
      %v2463 = vld [vmem:[#allocation4 + $0xc8] sm:$0xff]
      %v2464 = vld [vmem:[#allocation4 + $0xd0] sm:$0xff]
      %v2465 = vld [vmem:[#allocation4 + $0xd8] sm:$0xff]
      %v2466 = vld [vmem:[#allocation4 + $0xe0] sm:$0xff]
      %v2467 = vld [vmem:[#allocation4 + $0xe8] sm:$0xff]
      %v2468 = vld [vmem:[#allocation4 + $0xf0] sm:$0xff]
      %v2469 = vld [vmem:[#allocation4 + $0xf8] sm:$0xff]
      %v2470 = vld [vmem:[#allocation4 + $0x100] sm:$0xff]
      %v2471 = vld [vmem:[#allocation4 + $0x108] sm:$0xff]
      %v2472 = vld [vmem:[#allocation4 + $0x110] sm:$0xff]
      %v2473 = vld [vmem:[#allocation4 + $0x118] sm:$0xff]
      %v2474 = vld [vmem:[#allocation4 + $0x120] sm:$0xff]
      %v2475 = vld [vmem:[#allocation4 + $0x128] sm:$0xff]
      %v2476 = vld [vmem:[#allocation4 + $0x130] sm:$0xff]
      %v2477 = vld [vmem:[#allocation4 + $0x138] sm:$0xff]
      %v2478 = vld [vmem:[#allocation4 + $0x140] sm:$0xff]
      %v2479 = vld [vmem:[#allocation4 + $0x148] sm:$0xff]
      %v2480 = vld [vmem:[#allocation4 + $0x150] sm:$0xff]
      %v2481 = vld [vmem:[#allocation4 + $0x158] sm:$0xff]
      %v2482 = vld [vmem:[#allocation4 + $0x160] sm:$0xff]
      %v2483 = vld [vmem:[#allocation4 + $0x168] sm:$0xff]
      %v2484 = vld [vmem:[#allocation4 + $0x170] sm:$0xff]
      %v2485 = vld [vmem:[#allocation4 + $0x178] sm:$0xff]
      %v2486 = vld [vmem:[#allocation4 + $0x180] sm:$0xff]
      %v2487 = vld [vmem:[#allocation4 + $0x188] sm:$0xff]
      %v2488 = vld [vmem:[#allocation4 + $0x190] sm:$0xff]
      %v2489 = vld [vmem:[#allocation4 + $0x198] sm:$0xff]
      %v2490 = vld [vmem:[#allocation4 + $0x1a0] sm:$0xff]
      %v2491 = vld [vmem:[#allocation4 + $0x1a8] sm:$0xff]
      %v2492 = vld [vmem:[#allocation4 + $0x1b0] sm:$0xff]
      %v2493 = vld [vmem:[#allocation4 + $0x1b8] sm:$0xff]
      %v2494 = vld [vmem:[#allocation4 + $0x1c0] sm:$0xff]
      %v2495 = vld [vmem:[#allocation4 + $0x1c8] sm:$0xff]
      %v2496 = vld [vmem:[#allocation4 + $0x1d0] sm:$0xff]
      %v2497 = vld [vmem:[#allocation4 + $0x1d8] sm:$0xff]
      %v2498 = vld [vmem:[#allocation4 + $0x1e0] sm:$0xff]
      %v2499 = vld [vmem:[#allocation4 + $0x1e8] sm:$0xff]
      %v2500 = vld [vmem:[#allocation4 + $0x1f0] sm:$0xff]
      %v2501 = vld [vmem:[#allocation4 + $0x1f8] sm:$0xff]
      %v2502 = vld [vmem:[#allocation4 + $0x200] sm:$0xff]
      %v2503 = vld [vmem:[#allocation4 + $0x208] sm:$0xff]
      %v2504 = vld [vmem:[#allocation4 + $0x210] sm:$0xff]
      %v2505 = vld [vmem:[#allocation4 + $0x218] sm:$0xff]
      %v2506 = vld [vmem:[#allocation4 + $0x220] sm:$0xff]
      %v2507 = vld [vmem:[#allocation4 + $0x228] sm:$0xff]
      %v2508 = vld [vmem:[#allocation4 + $0x230] sm:$0xff]
      %v2509 = vld [vmem:[#allocation4 + $0x238] sm:$0xff]
      %v2510 = vld [vmem:[#allocation4 + $0x240] sm:$0xff]
      %v2511 = vld [vmem:[#allocation4 + $0x248] sm:$0xff]
      %v2512 = vld [vmem:[#allocation4 + $0x250] sm:$0xff]
      %v2513 = vld [vmem:[#allocation4 + $0x258] sm:$0xff]
      %v2514 = vld [vmem:[#allocation4 + $0x260] sm:$0xff]
      %v2515 = vld [vmem:[#allocation4 + $0x268] sm:$0xff]
      %v2516 = vld [vmem:[#allocation4 + $0x270] sm:$0xff]
      %v2517 = vld [vmem:[#allocation4 + $0x278] sm:$0xff]
      %v2518 = vld [vmem:[#allocation4 + $0x280] sm:$0xff]
      %v2519 = vld [vmem:[#allocation4 + $0x288] sm:$0xff]
      %v2520 = vld [vmem:[#allocation4 + $0x290] sm:$0xff]
      %v2521 = vld [vmem:[#allocation4 + $0x298] sm:$0xff]
      %v2522 = vld [vmem:[#allocation4 + $0x2a0] sm:$0xff]
      %v2523 = vld [vmem:[#allocation4 + $0x2a8] sm:$0xff]
      %v2524 = vld [vmem:[#allocation4 + $0x2b0] sm:$0xff]
      %v2525 = vld [vmem:[#allocation4 + $0x2b8] sm:$0xff]
      %v2526 = vld [vmem:[#allocation4 + $0x2c0] sm:$0xff]
      %v2527 = vld [vmem:[#allocation4 + $0x2c8] sm:$0xff]
      %v2528 = vld [vmem:[%s1] sm:$0xf]
      %v2529 = vld [vmem:[%s1 + $0x4] sm:$0xf]
      %v2530 = vld [vmem:[%s1 + $0x8] sm:$0xf]
      %v2531 = vld [vmem:[%s1 + $0xc] sm:$0xf]
      %v2532 = vld [vmem:[%s1 + $0x10] sm:$0xf]
      %v2533 = vld [vmem:[%s1 + $0x14] sm:$0xf]
      %v2534 = vld [vmem:[%s1 + $0x18] sm:$0xf]
      %v2535 = vld [vmem:[%s1 + $0x1c] sm:$0xf]
      %v2536 = vld [vmem:[%s1 + $0x20] sm:$0xf]
      %v2537 = vld [vmem:[%s1 + $0x24] sm:$0xf]
      %v2538 = vld [vmem:[%s1 + $0x28] sm:$0xf]
      %v2539 = vld [vmem:[%s1 + $0x2c] sm:$0xf]
      %v2540 = vld [vmem:[%s1 + $0x30] sm:$0xf]
      %v2541 = vld [vmem:[%s1 + $0x34] sm:$0xf]
      %v2542 = vld [vmem:[%s1 + $0x38] sm:$0xf]
      %v2543 = vld [vmem:[%s1 + $0x3c] sm:$0xf]
      %v2544 = vld [vmem:[%s1 + $0x40] sm:$0xf]
      %v2545 = vld [vmem:[%s1 + $0x44] sm:$0xf]
      %v2546 = vld [vmem:[%s1 + $0x48] sm:$0xf]
      %v2547 = vld [vmem:[%s1 + $0x4c] sm:$0xf]
      %v2548 = vld [vmem:[%s1 + $0x50] sm:$0xf]
      %v2549 = vld [vmem:[%s1 + $0x54] sm:$0xf]
      %v2550 = vld [vmem:[%s1 + $0x58] sm:$0xf]
      %v2551 = vld [vmem:[%s1 + $0x5c] sm:$0xf]
      %v2552 = vld [vmem:[%s1 + $0x60] sm:$0xf]
      %v2553 = vld [vmem:[%s1 + $0x64] sm:$0xf]
      %v2554 = vld [vmem:[%s1 + $0x68] sm:$0xf]
      %v2555 = vld [vmem:[%s1 + $0x6c] sm:$0xf]
      %v2556 = vld [vmem:[%s1 + $0x70] sm:$0xf]
      %v2557 = vld [vmem:[%s1 + $0x74] sm:$0xf]
      %v2558 = vld [vmem:[%s1 + $0x78] sm:$0xf]
      %v2559 = vld [vmem:[%s1 + $0x7c] sm:$0xf]
      %v2560 = vld [vmem:[%s1 + $0x80] sm:$0xf]
      %v2561 = vld [vmem:[%s1 + $0x84] sm:$0xf]
      %v2562 = vld [vmem:[%s1 + $0x88] sm:$0xf]
      %v2563 = vld [vmem:[%s1 + $0x8c] sm:$0xf]
      %v2564 = vld [vmem:[%s1 + $0x90] sm:$0xf]
      %v2565 = vld [vmem:[%s1 + $0x94] sm:$0xf]
      %v2566 = vld [vmem:[%s1 + $0x98] sm:$0xf]
      %v2567 = vld [vmem:[%s1 + $0x9c] sm:$0xf]
      %v2568 = vld [vmem:[%s1 + $0xa0] sm:$0xf]
      %v2569 = vld [vmem:[%s1 + $0xa4] sm:$0xf]
      %v2570 = vld [vmem:[%s1 + $0xa8] sm:$0xf]
      %v2571 = vld [vmem:[%s1 + $0xac] sm:$0xf]
      %v2572 = vld [vmem:[%s1 + $0xb0] sm:$0xf]
      %v2573 = vld [vmem:[%s1 + $0xb4] sm:$0xf]
      %v2574 = vld [vmem:[%s1 + $0xb8] sm:$0xf]
      %v2575 = vld [vmem:[%s1 + $0xbc] sm:$0xf]
      %v2576 = vld [vmem:[%s1 + $0xc0] sm:$0xf]
      %v2577 = vld [vmem:[%s1 + $0xc4] sm:$0xf]
      %v2578 = vld [vmem:[%s1 + $0xc8] sm:$0xf]
      %v2579 = vld [vmem:[%s1 + $0xcc] sm:$0xf]
      %v2580 = vld [vmem:[%s1 + $0xd0] sm:$0xf]
      %v2581 = vld [vmem:[%s1 + $0xd4] sm:$0xf]
      %v2582 = vld [vmem:[%s1 + $0xd8] sm:$0xf]
      %v2583 = vld [vmem:[%s1 + $0xdc] sm:$0xf]
      %v2584 = vld [vmem:[%s1 + $0xe0] sm:$0xf]
      %v2585 = vld [vmem:[%s1 + $0xe4] sm:$0xf]
      %v2586 = vld [vmem:[%s1 + $0xe8] sm:$0xf]
      %v2587 = vld [vmem:[%s1 + $0xec] sm:$0xf]
      %v2588 = vld [vmem:[%s1 + $0xf0] sm:$0xf]
      %v2589 = vld [vmem:[%s1 + $0xf4] sm:$0xf]
      %v2590 = vld [vmem:[%s1 + $0xf8] sm:$0xf]
      %v2591 = vld [vmem:[%s1 + $0xfc] sm:$0xf]
      %v2592 = vld [vmem:[%s1 + $0x100] sm:$0xf]
      %v2593 = vld [vmem:[%s1 + $0x104] sm:$0xf]
      %v2594 = vld [vmem:[%s1 + $0x108] sm:$0xf]
      %v2595 = vld [vmem:[%s1 + $0x10c] sm:$0xf]
      %v2596 = vld [vmem:[%s1 + $0x110] sm:$0xf]
      %v2597 = vld [vmem:[%s1 + $0x114] sm:$0xf]
      %v2598 = vld [vmem:[%s1 + $0x118] sm:$0xf]
      %v2599 = vld [vmem:[%s1 + $0x11c] sm:$0xf]
      %v2600 = vld [vmem:[%s1 + $0x120] sm:$0xf]
      %v2601 = vld [vmem:[%s1 + $0x124] sm:$0xf]
      %v2602 = vld [vmem:[%s1 + $0x128] sm:$0xf]
      %v2603 = vld [vmem:[%s1 + $0x12c] sm:$0xf]
      %v2604 = vld [vmem:[%s1 + $0x130] sm:$0xf]
      %v2605 = vld [vmem:[%s1 + $0x134] sm:$0xf]
      %v2606 = vld [vmem:[%s1 + $0x138] sm:$0xf]
      %v2607 = vld [vmem:[%s1 + $0x13c] sm:$0xf]
      %v2608 = vld [vmem:[%s1 + $0x140] sm:$0xf]
      %v2609 = vld [vmem:[%s1 + $0x144] sm:$0xf]
      %v2610 = vld [vmem:[%s1 + $0x148] sm:$0xf]
      %v2611 = vld [vmem:[%s1 + $0x14c] sm:$0xf]
      %v2612 = vld [vmem:[%s1 + $0x150] sm:$0xf]
      %v2613 = vld [vmem:[%s1 + $0x154] sm:$0xf]
      %v2614 = vld [vmem:[%s1 + $0x158] sm:$0xf]
      %v2615 = vld [vmem:[%s1 + $0x15c] sm:$0xf]
      %v2616 = vld [vmem:[%s1 + $0x160] sm:$0xf]
      %v2617 = vld [vmem:[%s1 + $0x164] sm:$0xf]
      %v2618 = vld [vmem:[%s1 + $0x168] sm:$0xf]
      %v2619 = vld [vmem:[%s1 + $0x16c] sm:$0xf]
      %v2620 = vld [vmem:[%s1 + $0x170] sm:$0xf]
      %v2621 = vld [vmem:[%s1 + $0x174] sm:$0xf]
      %v2622 = vld [vmem:[%s1 + $0x178] sm:$0xf]
      %v2623 = vld [vmem:[%s1 + $0x17c] sm:$0xf]
      %v2624 = vld [vmem:[%s1 + $0x180] sm:$0xf]
      %v2625 = vld [vmem:[%s1 + $0x184] sm:$0xf]
      %v2626 = vld [vmem:[%s1 + $0x188] sm:$0xf]
      %v2627 = vld [vmem:[%s1 + $0x18c] sm:$0xf]
      %v2628 = vld [vmem:[%s1 + $0x190] sm:$0xf]
      %v2629 = vld [vmem:[%s1 + $0x194] sm:$0xf]
      %v2630 = vld [vmem:[%s1 + $0x198] sm:$0xf]
      %v2631 = vld [vmem:[%s1 + $0x19c] sm:$0xf]
      %v2632 = vld [vmem:[%s1 + $0x1a0] sm:$0xf]
      %v2633 = vld [vmem:[%s1 + $0x1a4] sm:$0xf]
      %v2634 = vld [vmem:[%s1 + $0x1a8] sm:$0xf]
      %v2635 = vld [vmem:[%s1 + $0x1ac] sm:$0xf]
      %v2636 = vld [vmem:[%s1 + $0x1b0] sm:$0xf]
      %v2637 = vld [vmem:[%s1 + $0x1b4] sm:$0xf]
      %v2638 = vld [vmem:[%s1 + $0x1b8] sm:$0xf]
      %v2639 = vld [vmem:[%s1 + $0x1bc] sm:$0xf]
      %v2640 = vld [vmem:[%s1 + $0x1c0] sm:$0xf]
      %v2641 = vld [vmem:[%s1 + $0x1c4] sm:$0xf]
      %v2642 = vld [vmem:[%s1 + $0x1c8] sm:$0xf]
      %v2643 = vld [vmem:[%s1 + $0x1cc] sm:$0xf]
      %v2644 = vld [vmem:[%s1 + $0x1d0] sm:$0xf]
      %v2645 = vld [vmem:[%s1 + $0x1d4] sm:$0xf]
      %v2646 = vld [vmem:[%s1 + $0x1d8] sm:$0xf]
      %v2647 = vld [vmem:[%s1 + $0x1dc] sm:$0xf]
      %v2648 = vld [vmem:[%s1 + $0x1e0] sm:$0xf]
      %v2649 = vld [vmem:[%s1 + $0x1e4] sm:$0xf]
      %v2650 = vld [vmem:[%s1 + $0x1e8] sm:$0xf]
      %v2651 = vld [vmem:[%s1 + $0x1ec] sm:$0xf]
      %v2652 = vld [vmem:[%s1 + $0x1f0] sm:$0xf]
      %v2653 = vld [vmem:[%s1 + $0x1f4] sm:$0xf]
      %v2654 = vld [vmem:[%s1 + $0x1f8] sm:$0xf]
      %v2655 = vld [vmem:[%s1 + $0x1fc] sm:$0xf]
      %v2656 = vld [vmem:[%s1 + $0x200] sm:$0xf]
      %v2657 = vld [vmem:[%s1 + $0x204] sm:$0xf]
      %v2658 = vld [vmem:[%s1 + $0x208] sm:$0xf]
      %v2659 = vld [vmem:[%s1 + $0x20c] sm:$0xf]
      %v2660 = vld [vmem:[%s1 + $0x210] sm:$0xf]
      %v2661 = vld [vmem:[%s1 + $0x214] sm:$0xf]
      %v2662 = vld [vmem:[%s1 + $0x218] sm:$0xf]
      %v2663 = vld [vmem:[%s1 + $0x21c] sm:$0xf]
      %v2664 = vld [vmem:[%s1 + $0x220] sm:$0xf]
      %v2665 = vld [vmem:[%s1 + $0x224] sm:$0xf]
      %v2666 = vld [vmem:[%s1 + $0x228] sm:$0xf]
      %v2667 = vld [vmem:[%s1 + $0x22c] sm:$0xf]
      %v2668 = vld [vmem:[%s1 + $0x230] sm:$0xf]
      %v2669 = vld [vmem:[%s1 + $0x234] sm:$0xf]
      %v2670 = vld [vmem:[%s1 + $0x238] sm:$0xf]
      %v2671 = vld [vmem:[%s1 + $0x23c] sm:$0xf]
      %v2672 = vld [vmem:[%s5] sm:$0x1]
      %v2674 = vlaneseq
      %v2675 = vshrl.u32 %v2674, 7
      %v2676 = vsub.s32 0, %v2675
      %v2677 = vrot.slane %v2672, %v2676
      %v2823 = vunpack.c.l.b16 %v2528
      %v2824 = vunpack.c.l.b16 %v2529
      %v2825 = vunpack.c.l.b16 %v2530
      %v2826 = vunpack.c.l.b16 %v2531
      %v2827 = vunpack.c.l.b16 %v2532
      %v2828 = vunpack.c.l.b16 %v2533
      %v2829 = vunpack.c.l.b16 %v2534
      %v2830 = vunpack.c.l.b16 %v2535
      %v2831 = vunpack.c.l.b16 %v2536
      %v2832 = vunpack.c.l.b16 %v2537
      %v2833 = vunpack.c.l.b16 %v2538
      %v2834 = vunpack.c.l.b16 %v2539
      %v2835 = vunpack.c.l.b16 %v2540
      %v2836 = vunpack.c.l.b16 %v2541
      %v2837 = vunpack.c.l.b16 %v2542
      %v2838 = vunpack.c.l.b16 %v2543
      %v2839 = vunpack.c.l.b16 %v2544
      %v2840 = vunpack.c.l.b16 %v2545
      %v2841 = vunpack.c.l.b16 %v2546
      %v2842 = vunpack.c.l.b16 %v2547
      %v2843 = vunpack.c.l.b16 %v2548
      %v2844 = vunpack.c.l.b16 %v2549
      %v2845 = vunpack.c.l.b16 %v2550
      %v2846 = vunpack.c.l.b16 %v2551
      %v2847 = vunpack.c.l.b16 %v2552
      %v2848 = vunpack.c.l.b16 %v2553
      %v2849 = vunpack.c.l.b16 %v2554
      %v2850 = vunpack.c.l.b16 %v2555
      %v2851 = vunpack.c.l.b16 %v2556
      %v2852 = vunpack.c.l.b16 %v2557
      %v2853 = vunpack.c.l.b16 %v2558
      %v2854 = vunpack.c.l.b16 %v2559
      %v2855 = vunpack.c.l.b16 %v2560
      %v2856 = vunpack.c.l.b16 %v2561
      %v2857 = vunpack.c.l.b16 %v2562
      %v2858 = vunpack.c.l.b16 %v2563
      %v2859 = vunpack.c.l.b16 %v2564
      %v2860 = vunpack.c.l.b16 %v2565
      %v2861 = vunpack.c.l.b16 %v2566
      %v2862 = vunpack.c.l.b16 %v2567
      %v2863 = vunpack.c.l.b16 %v2568
      %v2864 = vunpack.c.l.b16 %v2569
      %v2865 = vunpack.c.l.b16 %v2570
      %v2866 = vunpack.c.l.b16 %v2571
      %v2867 = vunpack.c.l.b16 %v2572
      %v2868 = vunpack.c.l.b16 %v2573
      %v2869 = vunpack.c.l.b16 %v2574
      %v2870 = vunpack.c.l.b16 %v2575
      %v2871 = vunpack.c.l.b16 %v2576
      %v2872 = vunpack.c.l.b16 %v2577
      %v2873 = vunpack.c.l.b16 %v2578
      %v2874 = vunpack.c.l.b16 %v2579
      %v2875 = vunpack.c.l.b16 %v2580
      %v2876 = vunpack.c.l.b16 %v2581
      %v2877 = vunpack.c.l.b16 %v2582
      %v2878 = vunpack.c.l.b16 %v2583
      %v2879 = vunpack.c.l.b16 %v2584
      %v2880 = vunpack.c.l.b16 %v2585
      %v2881 = vunpack.c.l.b16 %v2586
      %v2882 = vunpack.c.l.b16 %v2587
      %v2883 = vunpack.c.l.b16 %v2588
      %v2884 = vunpack.c.l.b16 %v2589
      %v2885 = vunpack.c.l.b16 %v2590
      %v2886 = vunpack.c.l.b16 %v2591
      %v2887 = vunpack.c.l.b16 %v2592
      %v2888 = vunpack.c.l.b16 %v2593
      %v2889 = vunpack.c.l.b16 %v2594
      %v2890 = vunpack.c.l.b16 %v2595
      %v2891 = vunpack.c.l.b16 %v2596
      %v2892 = vunpack.c.l.b16 %v2597
      %v2893 = vunpack.c.l.b16 %v2598
      %v2894 = vunpack.c.l.b16 %v2599
      %v2895 = vunpack.c.l.b16 %v2600
      %v2896 = vunpack.c.l.b16 %v2601
      %v2897 = vunpack.c.l.b16 %v2602
      %v2898 = vunpack.c.l.b16 %v2603
      %v2899 = vunpack.c.l.b16 %v2604
      %v2900 = vunpack.c.l.b16 %v2605
      %v2901 = vunpack.c.l.b16 %v2606
      %v2902 = vunpack.c.l.b16 %v2607
      %v2903 = vunpack.c.l.b16 %v2608
      %v2904 = vunpack.c.l.b16 %v2609
      %v2905 = vunpack.c.l.b16 %v2610
      %v2906 = vunpack.c.l.b16 %v2611
      %v2907 = vunpack.c.l.b16 %v2612
      %v2908 = vunpack.c.l.b16 %v2613
      %v2909 = vunpack.c.l.b16 %v2614
      %v2910 = vunpack.c.l.b16 %v2615
      %v2911 = vunpack.c.l.b16 %v2616
      %v2912 = vunpack.c.l.b16 %v2617
      %v2913 = vunpack.c.l.b16 %v2618
      %v2914 = vunpack.c.l.b16 %v2619
      %v2915 = vunpack.c.l.b16 %v2620
      %v2916 = vunpack.c.l.b16 %v2621
      %v2917 = vunpack.c.l.b16 %v2622
      %v2918 = vunpack.c.l.b16 %v2623
      %v2919 = vunpack.c.l.b16 %v2624
      %v2920 = vunpack.c.l.b16 %v2625
      %v2921 = vunpack.c.l.b16 %v2626
      %v2922 = vunpack.c.l.b16 %v2627
      %v2923 = vunpack.c.l.b16 %v2628
      %v2924 = vunpack.c.l.b16 %v2629
      %v2925 = vunpack.c.l.b16 %v2630
      %v2926 = vunpack.c.l.b16 %v2631
      %v2927 = vunpack.c.l.b16 %v2632
      %v2928 = vunpack.c.l.b16 %v2633
      %v2929 = vunpack.c.l.b16 %v2634
      %v2930 = vunpack.c.l.b16 %v2635
      %v2931 = vunpack.c.l.b16 %v2636
      %v2932 = vunpack.c.l.b16 %v2637
      %v2933 = vunpack.c.l.b16 %v2638
      %v2934 = vunpack.c.l.b16 %v2639
      %v2935 = vunpack.c.l.b16 %v2640
      %v2936 = vunpack.c.l.b16 %v2641
      %v2937 = vunpack.c.l.b16 %v2642
      %v2938 = vunpack.c.l.b16 %v2643
      %v2939 = vunpack.c.l.b16 %v2644
      %v2940 = vunpack.c.l.b16 %v2645
      %v2941 = vunpack.c.l.b16 %v2646
      %v2942 = vunpack.c.l.b16 %v2647
      %v2943 = vunpack.c.l.b16 %v2648
      %v2944 = vunpack.c.l.b16 %v2649
      %v2945 = vunpack.c.l.b16 %v2650
      %v2946 = vunpack.c.l.b16 %v2651
      %v2947 = vunpack.c.l.b16 %v2652
      %v2948 = vunpack.c.l.b16 %v2653
      %v2949 = vunpack.c.l.b16 %v2654
      %v2950 = vunpack.c.l.b16 %v2655
      %v2951 = vunpack.c.l.b16 %v2656
      %v2952 = vunpack.c.l.b16 %v2657
      %v2953 = vunpack.c.l.b16 %v2658
      %v2954 = vunpack.c.l.b16 %v2659
      %v2955 = vunpack.c.l.b16 %v2660
      %v2956 = vunpack.c.l.b16 %v2661
      %v2957 = vunpack.c.l.b16 %v2662
      %v2958 = vunpack.c.l.b16 %v2663
      %v2959 = vunpack.c.l.b16 %v2664
      %v2960 = vunpack.c.l.b16 %v2665
      %v2961 = vunpack.c.l.b16 %v2666
      %v2962 = vunpack.c.l.b16 %v2667
      %v2963 = vunpack.c.l.b16 %v2668
      %v2964 = vunpack.c.l.b16 %v2669
      %v2965 = vunpack.c.l.b16 %v2670
      %v2966 = vunpack.c.l.b16 %v2671
      %v2967 = vpack.c.b16 %v2824, %v2823
      %v2968 = vpack.c.b16 %v2826, %v2825
      %v2969 = vpack.c.b16 %v2828, %v2827
      %v2970 = vpack.c.b16 %v2830, %v2829
      %v2971 = vpack.c.b16 %v2832, %v2831
      %v2972 = vpack.c.b16 %v2834, %v2833
      %v2973 = vpack.c.b16 %v2836, %v2835
      %v2974 = vpack.c.b16 %v2838, %v2837
      %v2975 = vpack.c.b16 %v2840, %v2839
      %v2976 = vpack.c.b16 %v2842, %v2841
      %v2977 = vpack.c.b16 %v2844, %v2843
      %v2978 = vpack.c.b16 %v2846, %v2845
      %v2979 = vpack.c.b16 %v2848, %v2847
      %v2980 = vpack.c.b16 %v2850, %v2849
      %v2981 = vpack.c.b16 %v2852, %v2851
      %v2982 = vpack.c.b16 %v2854, %v2853
      %v2983 = vpack.c.b16 %v2856, %v2855
      %v2984 = vpack.c.b16 %v2858, %v2857
      %v2985 = vpack.c.b16 %v2860, %v2859
      %v2986 = vpack.c.b16 %v2862, %v2861
      %v2987 = vpack.c.b16 %v2864, %v2863
      %v2988 = vpack.c.b16 %v2866, %v2865
      %v2989 = vpack.c.b16 %v2868, %v2867
      %v2990 = vpack.c.b16 %v2870, %v2869
      %v2991 = vpack.c.b16 %v2872, %v2871
      %v2992 = vpack.c.b16 %v2874, %v2873
      %v2993 = vpack.c.b16 %v2876, %v2875
      %v2994 = vpack.c.b16 %v2878, %v2877
      %v2995 = vpack.c.b16 %v2880, %v2879
      %v2996 = vpack.c.b16 %v2882, %v2881
      %v2997 = vpack.c.b16 %v2884, %v2883
      %v2998 = vpack.c.b16 %v2886, %v2885
      %v2999 = vpack.c.b16 %v2888, %v2887
      %v3000 = vpack.c.b16 %v2890, %v2889
      %v3001 = vpack.c.b16 %v2892, %v2891
      %v3002 = vpack.c.b16 %v2894, %v2893
      %v3003 = vpack.c.b16 %v2896, %v2895
      %v3004 = vpack.c.b16 %v2898, %v2897
      %v3005 = vpack.c.b16 %v2900, %v2899
      %v3006 = vpack.c.b16 %v2902, %v2901
      %v3007 = vpack.c.b16 %v2904, %v2903
      %v3008 = vpack.c.b16 %v2906, %v2905
      %v3009 = vpack.c.b16 %v2908, %v2907
      %v3010 = vpack.c.b16 %v2910, %v2909
      %v3011 = vpack.c.b16 %v2912, %v2911
      %v3012 = vpack.c.b16 %v2914, %v2913
      %v3013 = vpack.c.b16 %v2916, %v2915
      %v3014 = vpack.c.b16 %v2918, %v2917
      %v3015 = vpack.c.b16 %v2920, %v2919
      %v3016 = vpack.c.b16 %v2922, %v2921
      %v3017 = vpack.c.b16 %v2924, %v2923
      %v3018 = vpack.c.b16 %v2926, %v2925
      %v3019 = vpack.c.b16 %v2928, %v2927
      %v3020 = vpack.c.b16 %v2930, %v2929
      %v3021 = vpack.c.b16 %v2932, %v2931
      %v3022 = vpack.c.b16 %v2934, %v2933
      %v3023 = vpack.c.b16 %v2936, %v2935
      %v3024 = vpack.c.b16 %v2938, %v2937
      %v3025 = vpack.c.b16 %v2940, %v2939
      %v3026 = vpack.c.b16 %v2942, %v2941
      %v3027 = vpack.c.b16 %v2944, %v2943
      %v3028 = vpack.c.b16 %v2946, %v2945
      %v3029 = vpack.c.b16 %v2948, %v2947
      %v3030 = vpack.c.b16 %v2950, %v2949
      %v3031 = vpack.c.b16 %v2952, %v2951
      %v3032 = vpack.c.b16 %v2954, %v2953
      %v3033 = vpack.c.b16 %v2956, %v2955
      %v3034 = vpack.c.b16 %v2958, %v2957
      %v3035 = vpack.c.b16 %v2960, %v2959
      %v3036 = vpack.c.b16 %v2962, %v2961
      %v3037 = vpack.c.b16 %v2964, %v2963
      %v3038 = vpack.c.b16 %v2966, %v2965
      %3111 = vmatprep.subr.bf16.mxu0 0
      %3112 = vmatpush1.bf16.msra.mxu0 %v2967
      %3113 = vmatprep.subr.bf16.mxu0 0
      %3114 = vmatpush1.bf16.msra.mxu0 %v2968
      %3115 = vmatprep.subr.bf16.mxu0 0
      %3116 = vmatpush1.bf16.msra.mxu0 %v2969
      %3117 = vmatprep.subr.bf16.mxu0 0
      %3118 = vmatpush1.bf16.msra.mxu0 %v2970
      %3119 = vmatprep.subr.bf16.mxu0 0
      %3120 = vmatpush1.bf16.msra.mxu0 %v2971
      %3121 = vmatprep.subr.bf16.mxu0 0
      %3122 = vmatpush1.bf16.msra.mxu0 %v2972
      %3123 = vmatprep.subr.bf16.mxu0 0
      %3124 = vmatpush1.bf16.msra.mxu0 %v2973
      %3125 = vmatprep.subr.bf16.mxu0 0
      %3126 = vmatpush1.bf16.msra.mxu0 %v2974
      %3127 = vmatprep.subr.bf16.mxu0 0
      %3128 = vmatpush1.bf16.msra.mxu0 %v2975
      %3129 = vmatprep.subr.bf16.mxu0 0
      %3130 = vmatpush1.bf16.msra.mxu0 %v2976
      %3131 = vmatprep.subr.bf16.mxu0 0
      %3132 = vmatpush1.bf16.msra.mxu0 %v2977
      %3133 = vmatprep.subr.bf16.mxu0 0
      %3134 = vmatpush1.bf16.msra.mxu0 %v2978
      %3135 = vmatprep.subr.bf16.mxu0 0
      %3136 = vmatpush1.bf16.msra.mxu0 %v2979
      %3137 = vmatprep.subr.bf16.mxu0 0
      %3138 = vmatpush1.bf16.msra.mxu0 %v2980
      %3139 = vmatprep.subr.bf16.mxu0 0
      %3140 = vmatpush1.bf16.msra.mxu0 %v2981
      %3141 = vmatprep.subr.bf16.mxu0 0
      %3142 = vmatpush1.bf16.msra.mxu0 %v2982
      %3143 = vmatprep.mubr.bf16.mxu0 %v2439
      %3144 = vmatmul.mubr.bf16.gmra.mrb[0].mxu0 %v2438
      %v3145 = vpop.f32.mrb[0].mxu0
      %v3146 = vadd.f32 %v2677, %v3145
      %v3147 = vpop.f32.mrb[0].mxu0
      %v3148 = vpop.f32.mrb[0].mxu0
      %v3149 = vadd.f32 %v2677, %v3148
      %v3150 = vpop.f32.mrb[0].mxu0
      %3151 = vmatprep.mubr.bf16.mxu0 %v2448
      %3152 = vmatmul.mubr.bf16.gmra.mrb[0].mxu0 %v2447
      %v3153 = vpop.f32.mrb[0].mxu0
      %v3154 = vadd.f32 %v2677, %v3153
      %v3155 = vpop.f32.mrb[0].mxu0
      %v3156 = vpop.f32.mrb[0].mxu0
      %v3157 = vadd.f32 %v2677, %v3156
      %v3158 = vpop.f32.mrb[0].mxu0
      %3159 = vmatprep.mubr.bf16.mxu0 %v2457
      %3160 = vmatmul.mubr.bf16.gmra.mrb[0].mxu0 %v2456
      %v3161 = vpop.f32.mrb[0].mxu0
      %v3162 = vadd.f32 %v2677, %v3161
      %v3163 = vpop.f32.mrb[0].mxu0
      %v3164 = vpop.f32.mrb[0].mxu0
      %v3165 = vadd.f32 %v2677, %v3164
      %v3166 = vpop.f32.mrb[0].mxu0
      %3167 = vmatprep.mubr.bf16.mxu0 %v2466
      %3168 = vmatmul.mubr.bf16.gmra.mrb[0].mxu0 %v2465
      %v3169 = vpop.f32.mrb[0].mxu0
      %v3170 = vadd.f32 %v2677, %v3169
      %v3171 = vpop.f32.mrb[0].mxu0
      %v3172 = vpop.f32.mrb[0].mxu0
      %v3173 = vadd.f32 %v2677, %v3172
      %v3174 = vpop.f32.mrb[0].mxu0
      %3175 = vmatprep.mubr.bf16.mxu0 %v2475
      %3176 = vmatmul.mubr.bf16.gmra.mrb[0].mxu0 %v2474
      %v3177 = vpop.f32.mrb[0].mxu0
      %v3178 = vadd.f32 %v2677, %v3177
      %v3179 = vpop.f32.mrb[0].mxu0
      %v3180 = vpop.f32.mrb[0].mxu0
      %v3181 = vadd.f32 %v2677, %v3180
      %v3182 = vpop.f32.mrb[0].mxu0
      %3183 = vmatprep.mubr.bf16.mxu0 %v2484
      %3184 = vmatmul.mubr.bf16.gmra.mrb[0].mxu0 %v2483
      %v3185 = vpop.f32.mrb[0].mxu0
      %v3186 = vadd.f32 %v2677, %v3185
      %v3187 = vpop.f32.mrb[0].mxu0
      %v3188 = vpop.f32.mrb[0].mxu0
      %v3189 = vadd.f32 %v2677, %v3188
      %v3190 = vpop.f32.mrb[0].mxu0
      %3191 = vmatprep.mubr.bf16.mxu0 %v2493
      %3192 = vmatmul.mubr.bf16.gmra.mrb[0].mxu0 %v2492
      %v3193 = vpop.f32.mrb[0].mxu0
      %v3194 = vadd.f32 %v2677, %v3193
      %v3195 = vpop.f32.mrb[0].mxu0
      %v3196 = vpop.f32.mrb[0].mxu0
      %v3197 = vadd.f32 %v2677, %v3196
      %v3198 = vpop.f32.mrb[0].mxu0
      %3199 = vmatprep.mubr.bf16.mxu0 %v2502
      %3200 = vmatmul.mubr.bf16.gmra.mrb[0].mxu0 %v2501
      %v3201 = vpop.f32.mrb[0].mxu0
      %v3202 = vadd.f32 %v2677, %v3201
      %v3203 = vpop.f32.mrb[0].mxu0
      %v3204 = vpop.f32.mrb[0].mxu0
      %v3205 = vadd.f32 %v2677, %v3204
      %v3206 = vpop.f32.mrb[0].mxu0
      %3207 = vmatprep.mubr.bf16.mxu0 %v2511
      %3208 = vmatmul.mubr.bf16.gmra.mrb[0].mxu0 %v2510
      %v3209 = vpop.f32.mrb[0].mxu0
      %v3210 = vadd.f32 %v2677, %v3209
      %v3211 = vpop.f32.mrb[0].mxu0
      %v3212 = vpop.f32.mrb[0].mxu0
      %v3213 = vadd.f32 %v2677, %v3212
      %v3214 = vpop.f32.mrb[0].mxu0
      %3215 = vmatprep.mubr.bf16.mxu0 %v2520
      %3216 = vmatmul.mubr.bf16.gmra.mrb[0].mxu0 %v2519
      %v3217 = vpop.f32.mrb[0].mxu0
      %v3218 = vadd.f32 %v2677, %v3217
      %v3219 = vpop.f32.mrb[0].mxu0
      %v3220 = vpop.f32.mrb[0].mxu0
      %v3221 = vadd.f32 %v2677, %v3220
      %v3222 = vpop.f32.mrb[0].mxu0
      %3223 = vdwg.mxu0
      %3224 = vmatprep.subr.bf16.mxu0 0
      %3225 = vmatpush1.bf16.msra.mxu0 %v2983
      %3226 = vmatprep.subr.bf16.mxu0 0
      %3227 = vmatpush1.bf16.msra.mxu0 %v2984
      %3228 = vmatprep.subr.bf16.mxu0 0
      %3229 = vmatpush1.bf16.msra.mxu0 %v2985
      %3230 = vmatprep.subr.bf16.mxu0 0
      %3231 = vmatpush1.bf16.msra.mxu0 %v2986
      %3232 = vmatprep.subr.bf16.mxu0 0
      %3233 = vmatpush1.bf16.msra.mxu0 %v2987
      %3234 = vmatprep.subr.bf16.mxu0 0
      %3235 = vmatpush1.bf16.msra.mxu0 %v2988
      %3236 = vmatprep.subr.bf16.mxu0 0
      %3237 = vmatpush1.bf16.msra.mxu0 %v2989
      %3238 = vmatprep.subr.bf16.mxu0 0
      %3239 = vmatpush1.bf16.msra.mxu0 %v2990
      %3240 = vmatprep.subr.bf16.mxu0 0
      %3241 = vmatpush1.bf16.msra.mxu0 %v2991
      %3242 = vmatprep.subr.bf16.mxu0 0
      %3243 = vmatpush1.bf16.msra.mxu0 %v2992
      %3244 = vmatprep.subr.bf16.mxu0 0
      %3245 = vmatpush1.bf16.msra.mxu0 %v2993
      %3246 = vmatprep.subr.bf16.mxu0 0
      %3247 = vmatpush1.bf16.msra.mxu0 %v2994
      %3248 = vmatprep.subr.bf16.mxu0 0
      %3249 = vmatpush1.bf16.msra.mxu0 %v2995
      %3250 = vmatprep.subr.bf16.mxu0 0
      %3251 = vmatpush1.bf16.msra.mxu0 %v2996
      %3252 = vmatprep.subr.bf16.mxu0 0
      %3253 = vmatpush1.bf16.msra.mxu0 %v2997
      %3254 = vmatprep.subr.bf16.mxu0 0
      %3255 = vmatpush1.bf16.msra.mxu0 %v2998
      %3256 = vmatprep.mubr.bf16.mxu0 %v2441
      %3257 = vmatmul.mubr.bf16.gmra.mrb[0].mxu0 %v2440
      %v3258 = vpop.f32.mrb[0].mxu0
      %v3259 = vadd.f32 %v3146, %v3258
      %v3260 = vpop.f32.mrb[0].mxu0
      %v3261 = vpop.f32.mrb[0].mxu0
      %v3262 = vadd.f32 %v3149, %v3261
      %v3263 = vpop.f32.mrb[0].mxu0
      %3264 = vmatprep.mubr.bf16.mxu0 %v2450
      %3265 = vmatmul.mubr.bf16.gmra.mrb[0].mxu0 %v2449
      %v3266 = vpop.f32.mrb[0].mxu0
      %v3267 = vadd.f32 %v3154, %v3266
      %v3268 = vpop.f32.mrb[0].mxu0
      %v3269 = vpop.f32.mrb[0].mxu0
      %v3270 = vadd.f32 %v3157, %v3269
      %v3271 = vpop.f32.mrb[0].mxu0
      %3272 = vmatprep.mubr.bf16.mxu0 %v2459
      %3273 = vmatmul.mubr.bf16.gmra.mrb[0].mxu0 %v2458
      %v3274 = vpop.f32.mrb[0].mxu0
      %v3275 = vadd.f32 %v3162, %v3274
      %v3276 = vpop.f32.mrb[0].mxu0
      %v3277 = vpop.f32.mrb[0].mxu0
      %v3278 = vadd.f32 %v3165, %v3277
      %v3279 = vpop.f32.mrb[0].mxu0
      %3280 = vmatprep.mubr.bf16.mxu0 %v2468
      %3281 = vmatmul.mubr.bf16.gmra.mrb[0].mxu0 %v2467
      %v3282 = vpop.f32.mrb[0].mxu0
      %v3283 = vadd.f32 %v3170, %v3282
      %v3284 = vpop.f32.mrb[0].mxu0
      %v3285 = vpop.f32.mrb[0].mxu0
      %v3286 = vadd.f32 %v3173, %v3285
      %v3287 = vpop.f32.mrb[0].mxu0
      %3288 = vmatprep.mubr.bf16.mxu0 %v2477
      %3289 = vmatmul.mubr.bf16.gmra.mrb[0].mxu0 %v2476
      %v3290 = vpop.f32.mrb[0].mxu0
      %v3291 = vadd.f32 %v3178, %v3290
      %v3292 = vpop.f32.mrb[0].mxu0
      %v3293 = vpop.f32.mrb[0].mxu0
      %v3294 = vadd.f32 %v3181, %v3293
      %v3295 = vpop.f32.mrb[0].mxu0
      %3296 = vmatprep.mubr.bf16.mxu0 %v2486
      %3297 = vmatmul.mubr.bf16.gmra.mrb[0].mxu0 %v2485
      %v3298 = vpop.f32.mrb[0].mxu0
      %v3299 = vadd.f32 %v3186, %v3298
      %v3300 = vpop.f32.mrb[0].mxu0
      %v3301 = vpop.f32.mrb[0].mxu0
      %v3302 = vadd.f32 %v3189, %v3301
      %v3303 = vpop.f32.mrb[0].mxu0
      %3304 = vmatprep.mubr.bf16.mxu0 %v2495
      %3305 = vmatmul.mubr.bf16.gmra.mrb[0].mxu0 %v2494
      %v3306 = vpop.f32.mrb[0].mxu0
      %v3307 = vadd.f32 %v3194, %v3306
      %v3308 = vpop.f32.mrb[0].mxu0
      %v3309 = vpop.f32.mrb[0].mxu0
      %v3310 = vadd.f32 %v3197, %v3309
      %v3311 = vpop.f32.mrb[0].mxu0
      %3312 = vmatprep.mubr.bf16.mxu0 %v2504
      %3313 = vmatmul.mubr.bf16.gmra.mrb[0].mxu0 %v2503
      %v3314 = vpop.f32.mrb[0].mxu0
      %v3315 = vadd.f32 %v3202, %v3314
      %v3316 = vpop.f32.mrb[0].mxu0
      %v3317 = vpop.f32.mrb[0].mxu0
      %v3318 = vadd.f32 %v3205, %v3317
      %v3319 = vpop.f32.mrb[0].mxu0
      %3320 = vmatprep.mubr.bf16.mxu0 %v2513
      %3321 = vmatmul.mubr.bf16.gmra.mrb[0].mxu0 %v2512
      %v3322 = vpop.f32.mrb[0].mxu0
      %v3323 = vadd.f32 %v3210, %v3322
      %v3324 = vpop.f32.mrb[0].mxu0
      %v3325 = vpop.f32.mrb[0].mxu0
      %v3326 = vadd.f32 %v3213, %v3325
      %v3327 = vpop.f32.mrb[0].mxu0
      %3328 = vmatprep.mubr.bf16.mxu0 %v2522
      %3329 = vmatmul.mubr.bf16.gmra.mrb[0].mxu0 %v2521
      %v3330 = vpop.f32.mrb[0].mxu0
      %v3331 = vadd.f32 %v3218, %v3330
      %v3332 = vpop.f32.mrb[0].mxu0
      %v3333 = vpop.f32.mrb[0].mxu0
      %v3334 = vadd.f32 %v3221, %v3333
      %v3335 = vpop.f32.mrb[0].mxu0
      %3336 = vdwg.mxu0
      %3337 = vmatprep.subr.bf16.mxu0 0
      %3338 = vmatpush1.bf16.msra.mxu0 %v2999
      %3339 = vmatprep.subr.bf16.mxu0 0
      %3340 = vmatpush1.bf16.msra.mxu0 %v3000
      %3341 = vmatprep.subr.bf16.mxu0 0
      %3342 = vmatpush1.bf16.msra.mxu0 %v3001
      %3343 = vmatprep.subr.bf16.mxu0 0
      %3344 = vmatpush1.bf16.msra.mxu0 %v3002
      %3345 = vmatprep.subr.bf16.mxu0 0
      %3346 = vmatpush1.bf16.msra.mxu0 %v3003
      %3347 = vmatprep.subr.bf16.mxu0 0
      %3348 = vmatpush1.bf16.msra.mxu0 %v3004
      %3349 = vmatprep.subr.bf16.mxu0 0
      %3350 = vmatpush1.bf16.msra.mxu0 %v3005
      %3351 = vmatprep.subr.bf16.mxu0 0
      %3352 = vmatpush1.bf16.msra.mxu0 %v3006
      %3353 = vmatprep.subr.bf16.mxu0 0
      %3354 = vmatpush1.bf16.msra.mxu0 %v3007
      %3355 = vmatprep.subr.bf16.mxu0 0
      %3356 = vmatpush1.bf16.msra.mxu0 %v3008
      %3357 = vmatprep.subr.bf16.mxu0 0
      %3358 = vmatpush1.bf16.msra.mxu0 %v3009
      %3359 = vmatprep.subr.bf16.mxu0 0
      %3360 = vmatpush1.bf16.msra.mxu0 %v3010
      %3361 = vmatprep.subr.bf16.mxu0 0
      %3362 = vmatpush1.bf16.msra.mxu0 %v3011
      %3363 = vmatprep.subr.bf16.mxu0 0
      %3364 = vmatpush1.bf16.msra.mxu0 %v3012
      %3365 = vmatprep.subr.bf16.mxu0 0
      %3366 = vmatpush1.bf16.msra.mxu0 %v3013
      %3367 = vmatprep.subr.bf16.mxu0 0
      %3368 = vmatpush1.bf16.msra.mxu0 %v3014
      %3369 = vmatprep.mubr.bf16.mxu0 %v2443
      %3370 = vmatmul.mubr.bf16.gmra.mrb[0].mxu0 %v2442
      %v3371 = vpop.f32.mrb[0].mxu0
      %v3372 = vadd.f32 %v3259, %v3371
      %v3373 = vpop.f32.mrb[0].mxu0
      %v3374 = vpop.f32.mrb[0].mxu0
      %v3375 = vadd.f32 %v3262, %v3374
      %v3376 = vpop.f32.mrb[0].mxu0
      %3377 = vmatprep.mubr.bf16.mxu0 %v2452
      %3378 = vmatmul.mubr.bf16.gmra.mrb[0].mxu0 %v2451
      %v3379 = vpop.f32.mrb[0].mxu0
      %v3380 = vadd.f32 %v3267, %v3379
      %v3381 = vpop.f32.mrb[0].mxu0
      %v3382 = vpop.f32.mrb[0].mxu0
      %v3383 = vadd.f32 %v3270, %v3382
      %v3384 = vpop.f32.mrb[0].mxu0
      %3385 = vmatprep.mubr.bf16.mxu0 %v2461
      %3386 = vmatmul.mubr.bf16.gmra.mrb[0].mxu0 %v2460
      %v3387 = vpop.f32.mrb[0].mxu0
      %v3388 = vadd.f32 %v3275, %v3387
      %v3389 = vpop.f32.mrb[0].mxu0
      %v3390 = vpop.f32.mrb[0].mxu0
      %v3391 = vadd.f32 %v3278, %v3390
      %v3392 = vpop.f32.mrb[0].mxu0
      %3393 = vmatprep.mubr.bf16.mxu0 %v2470
      %3394 = vmatmul.mubr.bf16.gmra.mrb[0].mxu0 %v2469
      %v3395 = vpop.f32.mrb[0].mxu0
      %v3396 = vadd.f32 %v3283, %v3395
      %v3397 = vpop.f32.mrb[0].mxu0
      %v3398 = vpop.f32.mrb[0].mxu0
      %v3399 = vadd.f32 %v3286, %v3398
      %v3400 = vpop.f32.mrb[0].mxu0
      %3401 = vmatprep.mubr.bf16.mxu0 %v2479
      %3402 = vmatmul.mubr.bf16.gmra.mrb[0].mxu0 %v2478
      %v3403 = vpop.f32.mrb[0].mxu0
      %v3404 = vadd.f32 %v3291, %v3403
      %v3405 = vpop.f32.mrb[0].mxu0
      %v3406 = vpop.f32.mrb[0].mxu0
      %v3407 = vadd.f32 %v3294, %v3406
      %v3408 = vpop.f32.mrb[0].mxu0
      %3409 = vmatprep.mubr.bf16.mxu0 %v2488
      %3410 = vmatmul.mubr.bf16.gmra.mrb[0].mxu0 %v2487
      %v3411 = vpop.f32.mrb[0].mxu0
      %v3412 = vadd.f32 %v3299, %v3411
      %v3413 = vpop.f32.mrb[0].mxu0
      %v3414 = vpop.f32.mrb[0].mxu0
      %v3415 = vadd.f32 %v3302, %v3414
      %v3416 = vpop.f32.mrb[0].mxu0
      %3417 = vmatprep.mubr.bf16.mxu0 %v2497
      %3418 = vmatmul.mubr.bf16.gmra.mrb[0].mxu0 %v2496
      %v3419 = vpop.f32.mrb[0].mxu0
      %v3420 = vadd.f32 %v3307, %v3419
      %v3421 = vpop.f32.mrb[0].mxu0
      %v3422 = vpop.f32.mrb[0].mxu0
      %v3423 = vadd.f32 %v3310, %v3422
      %v3424 = vpop.f32.mrb[0].mxu0
      %3425 = vmatprep.mubr.bf16.mxu0 %v2506
      %3426 = vmatmul.mubr.bf16.gmra.mrb[0].mxu0 %v2505
      %v3427 = vpop.f32.mrb[0].mxu0
      %v3428 = vadd.f32 %v3315, %v3427
      %v3429 = vpop.f32.mrb[0].mxu0
      %v3430 = vpop.f32.mrb[0].mxu0
      %v3431 = vadd.f32 %v3318, %v3430
      %v3432 = vpop.f32.mrb[0].mxu0
      %3433 = vmatprep.mubr.bf16.mxu0 %v2515
      %3434 = vmatmul.mubr.bf16.gmra.mrb[0].mxu0 %v2514
      %v3435 = vpop.f32.mrb[0].mxu0
      %v3436 = vadd.f32 %v3323, %v3435
      %v3437 = vpop.f32.mrb[0].mxu0
      %v3438 = vpop.f32.mrb[0].mxu0
      %v3439 = vadd.f32 %v3326, %v3438
      %v3440 = vpop.f32.mrb[0].mxu0
      %3441 = vmatprep.mubr.bf16.mxu0 %v2524
      %3442 = vmatmul.mubr.bf16.gmra.mrb[0].mxu0 %v2523
      %v3443 = vpop.f32.mrb[0].mxu0
      %v3444 = vadd.f32 %v3331, %v3443
      %v3445 = vpop.f32.mrb[0].mxu0
      %v3446 = vpop.f32.mrb[0].mxu0
      %v3447 = vadd.f32 %v3334, %v3446
      %v3448 = vpop.f32.mrb[0].mxu0
      %3449 = vdwg.mxu0
      %3450 = vmatprep.subr.bf16.mxu0 0
      %3451 = vmatpush1.bf16.msra.mxu0 %v3015
      %3452 = vmatprep.subr.bf16.mxu0 0
      %3453 = vmatpush1.bf16.msra.mxu0 %v3016
      %3454 = vmatprep.subr.bf16.mxu0 0
      %3455 = vmatpush1.bf16.msra.mxu0 %v3017
      %3456 = vmatprep.subr.bf16.mxu0 0
      %3457 = vmatpush1.bf16.msra.mxu0 %v3018
      %3458 = vmatprep.subr.bf16.mxu0 0
      %3459 = vmatpush1.bf16.msra.mxu0 %v3019
      %3460 = vmatprep.subr.bf16.mxu0 0
      %3461 = vmatpush1.bf16.msra.mxu0 %v3020
      %3462 = vmatprep.subr.bf16.mxu0 0
      %3463 = vmatpush1.bf16.msra.mxu0 %v3021
      %3464 = vmatprep.subr.bf16.mxu0 0
      %3465 = vmatpush1.bf16.msra.mxu0 %v3022
      %3466 = vmatprep.subr.bf16.mxu0 0
      %3467 = vmatpush1.bf16.msra.mxu0 %v3023
      %3468 = vmatprep.subr.bf16.mxu0 0
      %3469 = vmatpush1.bf16.msra.mxu0 %v3024
      %3470 = vmatprep.subr.bf16.mxu0 0
      %3471 = vmatpush1.bf16.msra.mxu0 %v3025
      %3472 = vmatprep.subr.bf16.mxu0 0
      %3473 = vmatpush1.bf16.msra.mxu0 %v3026
      %3474 = vmatprep.subr.bf16.mxu0 0
      %3475 = vmatpush1.bf16.msra.mxu0 %v3027
      %3476 = vmatprep.subr.bf16.mxu0 0
      %3477 = vmatpush1.bf16.msra.mxu0 %v3028
      %3478 = vmatprep.subr.bf16.mxu0 0
      %3479 = vmatpush1.bf16.msra.mxu0 %v3029
      %3480 = vmatprep.subr.bf16.mxu0 0
      %3481 = vmatpush1.bf16.msra.mxu0 %v3030
      %3482 = vmatprep.mubr.bf16.mxu0 %v2445
      %3483 = vmatmul.mubr.bf16.gmra.mrb[0].mxu0 %v2444
      %v3484 = vpop.f32.mrb[0].mxu0
      %v3485 = vadd.f32 %v3372, %v3484
      %v3486 = vpop.f32.mrb[0].mxu0
      %v3487 = vpop.f32.mrb[0].mxu0
      %v3488 = vadd.f32 %v3375, %v3487
      %v3489 = vpop.f32.mrb[0].mxu0
      %3490 = vmatprep.mubr.bf16.mxu0 %v2454
      %3491 = vmatmul.mubr.bf16.gmra.mrb[0].mxu0 %v2453
      %v3492 = vpop.f32.mrb[0].mxu0
      %v3493 = vadd.f32 %v3380, %v3492
      %v3494 = vpop.f32.mrb[0].mxu0
      %v3495 = vpop.f32.mrb[0].mxu0
      %v3496 = vadd.f32 %v3383, %v3495
      %v3497 = vpop.f32.mrb[0].mxu0
      %3498 = vmatprep.mubr.bf16.mxu0 %v2463
      %3499 = vmatmul.mubr.bf16.gmra.mrb[0].mxu0 %v2462
      %v3500 = vpop.f32.mrb[0].mxu0
      %v3501 = vadd.f32 %v3388, %v3500
      %v3502 = vpop.f32.mrb[0].mxu0
      %v3503 = vpop.f32.mrb[0].mxu0
      %v3504 = vadd.f32 %v3391, %v3503
      %v3505 = vpop.f32.mrb[0].mxu0
      %3506 = vmatprep.mubr.bf16.mxu0 %v2472
      %3507 = vmatmul.mubr.bf16.gmra.mrb[0].mxu0 %v2471
      %v3508 = vpop.f32.mrb[0].mxu0
      %v3509 = vadd.f32 %v3396, %v3508
      %v3510 = vpop.f32.mrb[0].mxu0
      %v3511 = vpop.f32.mrb[0].mxu0
      %v3512 = vadd.f32 %v3399, %v3511
      %v3513 = vpop.f32.mrb[0].mxu0
      %3514 = vmatprep.mubr.bf16.mxu0 %v2481
      %3515 = vmatmul.mubr.bf16.gmra.mrb[0].mxu0 %v2480
      %v3516 = vpop.f32.mrb[0].mxu0
      %v3517 = vadd.f32 %v3404, %v3516
      %v3518 = vpop.f32.mrb[0].mxu0
      %v3519 = vpop.f32.mrb[0].mxu0
      %v3520 = vadd.f32 %v3407, %v3519
      %v3521 = vpop.f32.mrb[0].mxu0
      %3522 = vmatprep.mubr.bf16.mxu0 %v2490
      %3523 = vmatmul.mubr.bf16.gmra.mrb[0].mxu0 %v2489
      %v3524 = vpop.f32.mrb[0].mxu0
      %v3525 = vadd.f32 %v3412, %v3524
      %v3526 = vpop.f32.mrb[0].mxu0
      %v3527 = vpop.f32.mrb[0].mxu0
      %v3528 = vadd.f32 %v3415, %v3527
      %v3529 = vpop.f32.mrb[0].mxu0
      %3530 = vmatprep.mubr.bf16.mxu0 %v2499
      %3531 = vmatmul.mubr.bf16.gmra.mrb[0].mxu0 %v2498
      %v3532 = vpop.f32.mrb[0].mxu0
      %v3533 = vadd.f32 %v3420, %v3532
      %v3534 = vpop.f32.mrb[0].mxu0
      %v3535 = vpop.f32.mrb[0].mxu0
      %v3536 = vadd.f32 %v3423, %v3535
      %v3537 = vpop.f32.mrb[0].mxu0
      %3538 = vmatprep.mubr.bf16.mxu0 %v2508
      %3539 = vmatmul.mubr.bf16.gmra.mrb[0].mxu0 %v2507
      %v3540 = vpop.f32.mrb[0].mxu0
      %v3541 = vadd.f32 %v3428, %v3540
      %v3542 = vpop.f32.mrb[0].mxu0
      %v3543 = vpop.f32.mrb[0].mxu0
      %v3544 = vadd.f32 %v3431, %v3543
      %v3545 = vpop.f32.mrb[0].mxu0
      %3546 = vmatprep.mubr.bf16.mxu0 %v2517
      %3547 = vmatmul.mubr.bf16.gmra.mrb[0].mxu0 %v2516
      %v3548 = vpop.f32.mrb[0].mxu0
      %v3549 = vadd.f32 %v3436, %v3548
      %v3550 = vpop.f32.mrb[0].mxu0
      %v3551 = vpop.f32.mrb[0].mxu0
      %v3552 = vadd.f32 %v3439, %v3551
      %v3553 = vpop.f32.mrb[0].mxu0
      %3554 = vmatprep.mubr.bf16.mxu0 %v2526
      %3555 = vmatmul.mubr.bf16.gmra.mrb[0].mxu0 %v2525
      %v3556 = vpop.f32.mrb[0].mxu0
      %v3557 = vadd.f32 %v3444, %v3556
      %v3558 = vpop.f32.mrb[0].mxu0
      %v3559 = vpop.f32.mrb[0].mxu0
      %v3560 = vadd.f32 %v3447, %v3559
      %v3561 = vpop.f32.mrb[0].mxu0
      %3562 = vdwg.mxu0
      %3563 = vmatprep.subr.bf16.mxu0 0
      %3564 = vmatpush1.bf16.msra.mxu0 %v3031
      %3565 = vmatprep.subr.bf16.mxu0 0
      %3566 = vmatpush1.bf16.msra.mxu0 %v3032
      %3567 = vmatprep.subr.bf16.mxu0 0
      %3568 = vmatpush1.bf16.msra.mxu0 %v3033
      %3569 = vmatprep.subr.bf16.mxu0 0
      %3570 = vmatpush1.bf16.msra.mxu0 %v3034
      %3571 = vmatprep.subr.bf16.mxu0 0
      %3572 = vmatpush1.bf16.msra.mxu0 %v3035
      %3573 = vmatprep.subr.bf16.mxu0 0
      %3574 = vmatpush1.bf16.msra.mxu0 %v3036
      %3575 = vmatprep.subr.bf16.mxu0 0
      %3576 = vmatpush1.bf16.msra.mxu0 %v3037
      %3577 = vmatprep.subr.bf16.mxu0 0
      %3578 = vmatpush1.bf16.msra.mxu0 %v3038
      %3579 = vmatprep.subr.bf16.mxu0 0
      %3580 = vmatpush1.bf16.msra.mxu0 0
      %3581 = vmatprep.subr.bf16.mxu0 0
      %3582 = vmatpush1.bf16.msra.mxu0 0
      %3583 = vmatprep.subr.bf16.mxu0 0
      %3584 = vmatpush1.bf16.msra.mxu0 0
      %3585 = vmatprep.subr.bf16.mxu0 0
      %3586 = vmatpush1.bf16.msra.mxu0 0
      %3587 = vmatprep.subr.bf16.mxu0 0
      %3588 = vmatpush1.bf16.msra.mxu0 0
      %3589 = vmatprep.subr.bf16.mxu0 0
      %3590 = vmatpush1.bf16.msra.mxu0 0
      %3591 = vmatprep.subr.bf16.mxu0 0
      %3592 = vmatpush1.bf16.msra.mxu0 0
      %3593 = vmatprep.subr.bf16.mxu0 0
      %3594 = vmatpush1.bf16.msra.mxu0 0
      %3595 = vmatprep.mubr.bf16.mxu0 0
      %3596 = vmatmul.mubr.bf16.gmra.mrb[0].mxu0 %v2446
      %v3597 = vpop.f32.mrb[0].mxu0
      %v3598 = vadd.f32 %v3485, %v3597
      %v3599 = vpop.f32.mrb[0].mxu0
      %v3600 = vpop.f32.mrb[0].mxu0
      %v3601 = vadd.f32 %v3488, %v3600
      %v3602 = vpop.f32.mrb[0].mxu0
      %3603 = vmatprep.mubr.bf16.mxu0 0
      %3604 = vmatmul.mubr.bf16.gmra.mrb[0].mxu0 %v2455
      %v3605 = vpop.f32.mrb[0].mxu0
      %v3606 = vadd.f32 %v3493, %v3605
      %v3607 = vpop.f32.mrb[0].mxu0
      %v3608 = vpop.f32.mrb[0].mxu0
      %v3609 = vadd.f32 %v3496, %v3608
      %v3610 = vpop.f32.mrb[0].mxu0
      %3611 = vmatprep.mubr.bf16.mxu0 0
      %3612 = vmatmul.mubr.bf16.gmra.mrb[0].mxu0 %v2464
      %v3613 = vpop.f32.mrb[0].mxu0
      %v3614 = vadd.f32 %v3501, %v3613
      %v3615 = vpop.f32.mrb[0].mxu0
      %v3616 = vpop.f32.mrb[0].mxu0
      %v3617 = vadd.f32 %v3504, %v3616
      %v3618 = vpop.f32.mrb[0].mxu0
      %3619 = vmatprep.mubr.bf16.mxu0 0
      %3620 = vmatmul.mubr.bf16.gmra.mrb[0].mxu0 %v2473
      %v3621 = vpop.f32.mrb[0].mxu0
      %v3622 = vadd.f32 %v3509, %v3621
      %v3623 = vpop.f32.mrb[0].mxu0
      %v3624 = vpop.f32.mrb[0].mxu0
      %v3625 = vadd.f32 %v3512, %v3624
      %v3626 = vpop.f32.mrb[0].mxu0
      %3627 = vmatprep.mubr.bf16.mxu0 0
      %3628 = vmatmul.mubr.bf16.gmra.mrb[0].mxu0 %v2482
      %v3629 = vpop.f32.mrb[0].mxu0
      %v3630 = vadd.f32 %v3517, %v3629
      %v3631 = vpop.f32.mrb[0].mxu0
      %v3632 = vpop.f32.mrb[0].mxu0
      %v3633 = vadd.f32 %v3520, %v3632
      %v3634 = vpop.f32.mrb[0].mxu0
      %3635 = vmatprep.mubr.bf16.mxu0 0
      %3636 = vmatmul.mubr.bf16.gmra.mrb[0].mxu0 %v2491
      %v3637 = vpop.f32.mrb[0].mxu0
      %v3638 = vadd.f32 %v3525, %v3637
      %v3639 = vpop.f32.mrb[0].mxu0
      %v3640 = vpop.f32.mrb[0].mxu0
      %v3641 = vadd.f32 %v3528, %v3640
      %v3642 = vpop.f32.mrb[0].mxu0
      %3643 = vmatprep.mubr.bf16.mxu0 0
      %3644 = vmatmul.mubr.bf16.gmra.mrb[0].mxu0 %v2500
      %v3645 = vpop.f32.mrb[0].mxu0
      %v3646 = vadd.f32 %v3533, %v3645
      %v3647 = vpop.f32.mrb[0].mxu0
      %v3648 = vpop.f32.mrb[0].mxu0
      %v3649 = vadd.f32 %v3536, %v3648
      %v3650 = vpop.f32.mrb[0].mxu0
      %3651 = vmatprep.mubr.bf16.mxu0 0
      %3652 = vmatmul.mubr.bf16.gmra.mrb[0].mxu0 %v2509
      %v3653 = vpop.f32.mrb[0].mxu0
      %v3654 = vadd.f32 %v3541, %v3653
      %v3655 = vpop.f32.mrb[0].mxu0
      %v3656 = vpop.f32.mrb[0].mxu0
      %v3657 = vadd.f32 %v3544, %v3656
      %v3658 = vpop.f32.mrb[0].mxu0
      %3659 = vmatprep.mubr.bf16.mxu0 0
      %3660 = vmatmul.mubr.bf16.gmra.mrb[0].mxu0 %v2518
      %v3661 = vpop.f32.mrb[0].mxu0
      %v3662 = vadd.f32 %v3549, %v3661
      %v3663 = vpop.f32.mrb[0].mxu0
      %v3664 = vpop.f32.mrb[0].mxu0
      %v3665 = vadd.f32 %v3552, %v3664
      %v3666 = vpop.f32.mrb[0].mxu0
      %3667 = vmatprep.mubr.bf16.mxu0 0
      %3668 = vmatmul.mubr.bf16.gmra.mrb[0].mxu0 %v2527
      %v3669 = vpop.f32.mrb[0].mxu0
      %v3670 = vadd.f32 %v3557, %v3669
      %v3671 = vpop.f32.mrb[0].mxu0
      %v3672 = vpop.f32.mrb[0].mxu0
      %v3673 = vadd.f32 %v3560, %v3672
      %v3674 = vpop.f32.mrb[0].mxu0
      %3675 = vdwg.mxu0
      %vm3676 = vcmp.gt.f32.partialorder %v3598, 0.0
      %vm3677 = vcmp.gt.f32.partialorder %v3601, 0.0
      %vm3678 = vcmp.gt.f32.partialorder %v3606, 0.0
      %vm3679 = vcmp.gt.f32.partialorder %v3609, 0.0
      %vm3680 = vcmp.gt.f32.partialorder %v3614, 0.0
      %vm3681 = vcmp.gt.f32.partialorder %v3617, 0.0
      %vm3682 = vcmp.gt.f32.partialorder %v3622, 0.0
      %vm3683 = vcmp.gt.f32.partialorder %v3625, 0.0
      %vm3684 = vcmp.gt.f32.partialorder %v3630, 0.0
      %vm3685 = vcmp.gt.f32.partialorder %v3633, 0.0
      %vm3686 = vcmp.gt.f32.partialorder %v3638, 0.0
      %vm3687 = vcmp.gt.f32.partialorder %v3641, 0.0
      %vm3688 = vcmp.gt.f32.partialorder %v3646, 0.0
      %vm3689 = vcmp.gt.f32.partialorder %v3649, 0.0
      %vm3690 = vcmp.gt.f32.partialorder %v3654, 0.0
      %vm3691 = vcmp.gt.f32.partialorder %v3657, 0.0
      %vm3692 = vcmp.gt.f32.partialorder %v3662, 0.0
      %vm3693 = vcmp.gt.f32.partialorder %v3665, 0.0
      %vm3694 = vcmp.gt.f32.partialorder %v3670, 0.0
      %vm3695 = vcmp.gt.f32.partialorder %v3673, 0.0
      %v3696 = vld [vmem:[%s7] sm:$0x1]
      %v3698 = vlaneseq
      %v3699 = vshrl.u32 %v3698, 7
      %v3700 = vsub.s32 0, %v3699
      %v3701 = vrot.slane %v3696, %v3700
      %v3703 = vmul.f32 %v3701, %v3598
      %v3704 = vmul.f32 %v3701, %v3601
      %v3705 = vmul.f32 %v3701, %v3606
      %v3706 = vmul.f32 %v3701, %v3609
      %v3707 = vmul.f32 %v3701, %v3614
      %v3708 = vmul.f32 %v3701, %v3617
      %v3709 = vmul.f32 %v3701, %v3622
      %v3710 = vmul.f32 %v3701, %v3625
      %v3711 = vmul.f32 %v3701, %v3630
      %v3712 = vmul.f32 %v3701, %v3633
      %v3713 = vmul.f32 %v3701, %v3638
      %v3714 = vmul.f32 %v3701, %v3641
      %v3715 = vmul.f32 %v3701, %v3646
      %v3716 = vmul.f32 %v3701, %v3649
      %v3717 = vmul.f32 %v3701, %v3654
      %v3718 = vmul.f32 %v3701, %v3657
      %v3719 = vmul.f32 %v3701, %v3662
      %v3720 = vmul.f32 %v3701, %v3665
      %v3721 = vmul.f32 %v3701, %v3670
      %v3722 = vmul.f32 %v3701, %v3673
      %v3723 = vsel %vm3676, %v3598, %v3703
      %v3724 = vsel %vm3677, %v3601, %v3704
      %v3725 = vsel %vm3678, %v3606, %v3705
      %v3726 = vsel %vm3679, %v3609, %v3706
      %v3727 = vsel %vm3680, %v3614, %v3707
      %v3728 = vsel %vm3681, %v3617, %v3708
      %v3729 = vsel %vm3682, %v3622, %v3709
      %v3730 = vsel %vm3683, %v3625, %v3710
      %v3731 = vsel %vm3684, %v3630, %v3711
      %v3732 = vsel %vm3685, %v3633, %v3712
      %v3733 = vsel %vm3686, %v3638, %v3713
      %v3734 = vsel %vm3687, %v3641, %v3714
      %v3735 = vsel %vm3688, %v3646, %v3715
      %v3736 = vsel %vm3689, %v3649, %v3716
      %v3737 = vsel %vm3690, %v3654, %v3717
      %v3738 = vsel %vm3691, %v3657, %v3718
      %v3739 = vsel %vm3692, %v3662, %v3719
      %v3740 = vsel %vm3693, %v3665, %v3720
      %v3741 = vsel %vm3694, %v3670, %v3721
      %v3742 = vsel %vm3695, %v3673, %v3722
      %v3743 = vld [vmem:[#allocation3] sm:$0x1]
      %v3744 = vsel %vm337, 0, %v3743
      %3745 = vst [vmem:[#allocation3] sm:$0x1] %v3744
      %v3746 = vld [vmem:[#allocation3 + $0xc] sm:$0x1]
      %v3747 = vsel %vm337, 0, %v3746
      %3748 = vst [vmem:[#allocation3 + $0xc] sm:$0x1] %v3747
      %v3749 = vld [vmem:[#allocation3 + $0x18] sm:$0x1]
      %v3750 = vsel %vm337, 0, %v3749
      %3751 = vst [vmem:[#allocation3 + $0x18] sm:$0x1] %v3750
      %v3752 = vld [vmem:[#allocation3 + $0x24] sm:$0x1]
      %v3753 = vsel %vm337, 0, %v3752
      %3754 = vst [vmem:[#allocation3 + $0x24] sm:$0x1] %v3753
      %v3755 = vld [vmem:[#allocation3 + $0x30] sm:$0x1]
      %v3756 = vsel %vm337, 0, %v3755
      %3757 = vst [vmem:[#allocation3 + $0x30] sm:$0x1] %v3756
      %v3758 = vld [vmem:[#allocation3 + $0x3c] sm:$0x1]
      %v3759 = vsel %vm337, 0, %v3758
      %3760 = vst [vmem:[#allocation3 + $0x3c] sm:$0x1] %v3759
      %v3761 = vld [vmem:[#allocation3 + $0x48] sm:$0x1]
      %v3762 = vsel %vm337, 0, %v3761
      %3763 = vst [vmem:[#allocation3 + $0x48] sm:$0x1] %v3762
      %v3764 = vld [vmem:[#allocation3 + $0x54] sm:$0x1]
      %v3765 = vsel %vm337, 0, %v3764
      %3766 = vst [vmem:[#allocation3 + $0x54] sm:$0x1] %v3765
      %v3767 = vld [vmem:[#allocation3 + $0x60] sm:$0x1]
      %v3768 = vsel %vm337, 0, %v3767
      %3769 = vst [vmem:[#allocation3 + $0x60] sm:$0x1] %v3768
      %v3770 = vld [vmem:[#allocation3 + $0x6c] sm:$0x1]
      %v3771 = vsel %vm337, 0, %v3770
      %3772 = vst [vmem:[#allocation3 + $0x6c] sm:$0x1] %v3771
      %v3773 = vld [vmem:[#allocation3 + $0x8] sm:$0x1]
      %v3774 = vsel %vm375, 0, %v3773
      %3775 = vst [vmem:[#allocation3 + $0x8] sm:$0x1] %v3774
      %v3776 = vld [vmem:[#allocation3 + $0x14] sm:$0x1]
      %v3777 = vsel %vm375, 0, %v3776
      %3778 = vst [vmem:[#allocation3 + $0x14] sm:$0x1] %v3777
      %v3779 = vld [vmem:[#allocation3 + $0x20] sm:$0x1]
      %v3780 = vsel %vm375, 0, %v3779
      %3781 = vst [vmem:[#allocation3 + $0x20] sm:$0x1] %v3780
      %v3782 = vld [vmem:[#allocation3 + $0x2c] sm:$0x1]
      %v3783 = vsel %vm375, 0, %v3782
      %3784 = vst [vmem:[#allocation3 + $0x2c] sm:$0x1] %v3783
      %v3785 = vld [vmem:[#allocation3 + $0x38] sm:$0x1]
      %v3786 = vsel %vm375, 0, %v3785
      %3787 = vst [vmem:[#allocation3 + $0x38] sm:$0x1] %v3786
      %v3788 = vld [vmem:[#allocation3 + $0x44] sm:$0x1]
      %v3789 = vsel %vm375, 0, %v3788
      %3790 = vst [vmem:[#allocation3 + $0x44] sm:$0x1] %v3789
      %v3791 = vld [vmem:[#allocation3 + $0x50] sm:$0x1]
      %v3792 = vsel %vm375, 0, %v3791
      %3793 = vst [vmem:[#allocation3 + $0x50] sm:$0x1] %v3792
      %v3794 = vld [vmem:[#allocation3 + $0x5c] sm:$0x1]
      %v3795 = vsel %vm375, 0, %v3794
      %3796 = vst [vmem:[#allocation3 + $0x5c] sm:$0x1] %v3795
      %v3797 = vld [vmem:[#allocation3 + $0x68] sm:$0x1]
      %v3798 = vsel %vm375, 0, %v3797
      %3799 = vst [vmem:[#allocation3 + $0x68] sm:$0x1] %v3798
      %v3800 = vld [vmem:[#allocation3 + $0x74] sm:$0x1]
      %v3801 = vsel %vm375, 0, %v3800
      %3802 = vst [vmem:[#allocation3 + $0x74] sm:$0x1] %v3801
      %v3803 = vpack.c.bf16 %v3724, %v3723
      %v3804 = vpack.c.bf16 %v3726, %v3725
      %v3805 = vpack.c.bf16 %v3728, %v3727
      %v3806 = vpack.c.bf16 %v3730, %v3729
      %v3807 = vpack.c.bf16 %v3732, %v3731
      %v3808 = vpack.c.bf16 %v3734, %v3733
      %v3809 = vpack.c.bf16 %v3736, %v3735
      %v3810 = vpack.c.bf16 %v3738, %v3737
      %v3811 = vpack.c.bf16 %v3740, %v3739
      %v3812 = vpack.c.bf16 %v3742, %v3741
      %v3823 = vunpack.c.l.b16 %v3803
      %v3824 = vunpack.c.h.b16 %v3803
      %v3825 = vunpack.c.l.b16 %v3804
      %v3826 = vunpack.c.h.b16 %v3804
      %v3827 = vunpack.c.l.b16 %v3805
      %v3828 = vunpack.c.h.b16 %v3805
      %v3829 = vunpack.c.l.b16 %v3806
      %v3830 = vunpack.c.h.b16 %v3806
      %v3831 = vunpack.c.l.b16 %v3807
      %v3832 = vunpack.c.h.b16 %v3807
      %v3833 = vunpack.c.l.b16 %v3808
      %v3834 = vunpack.c.h.b16 %v3808
      %v3835 = vunpack.c.l.b16 %v3809
      %v3836 = vunpack.c.h.b16 %v3809
      %v3837 = vunpack.c.l.b16 %v3810
      %v3838 = vunpack.c.h.b16 %v3810
      %v3839 = vunpack.c.l.b16 %v3811
      %v3840 = vunpack.c.h.b16 %v3811
      %v3841 = vunpack.c.l.b16 %v3812
      %v3842 = vunpack.c.h.b16 %v3812
      %v3843 = vpack.c.b16 %v3823, %v3823
      %v3844 = vpack.c.b16 %v3824, %v3824
      %v3845 = vpack.c.b16 %v3825, %v3825
      %v3846 = vpack.c.b16 %v3826, %v3826
      %v3847 = vpack.c.b16 %v3827, %v3827
      %v3848 = vpack.c.b16 %v3828, %v3828
      %v3849 = vpack.c.b16 %v3829, %v3829
      %v3850 = vpack.c.b16 %v3830, %v3830
      %v3851 = vpack.c.b16 %v3831, %v3831
      %v3852 = vpack.c.b16 %v3832, %v3832
      %v3853 = vpack.c.b16 %v3833, %v3833
      %v3854 = vpack.c.b16 %v3834, %v3834
      %v3855 = vpack.c.b16 %v3835, %v3835
      %v3856 = vpack.c.b16 %v3836, %v3836
      %v3857 = vpack.c.b16 %v3837, %v3837
      %v3858 = vpack.c.b16 %v3838, %v3838
      %v3859 = vpack.c.b16 %v3839, %v3839
      %v3860 = vpack.c.b16 %v3840, %v3840
      %v3861 = vpack.c.b16 %v3841, %v3841
      %v3862 = vpack.c.b16 %v3842, %v3842
      %v3864 = vshrl.u32 %v3843, 16
      %v3866 = vrot.slane %v3864, 7
      %v3867 = vshll.u32 %v3843, 16
      %v3869 = vor.u32 %v3866, %v3867
      %v3870 = vrot.slane %v3866, 4
      %v3872 = vshrl.u32 %v3844, 16
      %v3874 = vrot.slane %v3872, 7
      %v3875 = vshll.u32 %v3844, 16
      %v3877 = vor.u32 %v3874, %v3875
      %v3878 = vsel %vm523, %v3870, %v3877
      %v3879 = vrot.slane %v3874, 4
      %v3881 = vshrl.u32 %v3845, 16
      %v3883 = vrot.slane %v3881, 7
      %v3884 = vshll.u32 %v3845, 16
      %v3886 = vor.u32 %v3883, %v3884
      %v3887 = vrot.slane %v3883, 4
      %v3889 = vshrl.u32 %v3846, 16
      %v3891 = vrot.slane %v3889, 7
      %v3892 = vshll.u32 %v3846, 16
      %v3894 = vor.u32 %v3891, %v3892
      %v3895 = vsel %vm523, %v3887, %v3894
      %v3896 = vrot.slane %v3891, 4
      %v3898 = vshrl.u32 %v3847, 16
      %v3900 = vrot.slane %v3898, 7
      %v3901 = vshll.u32 %v3847, 16
      %v3903 = vor.u32 %v3900, %v3901
      %v3904 = vrot.slane %v3900, 4
      %v3906 = vshrl.u32 %v3848, 16
      %v3908 = vrot.slane %v3906, 7
      %v3909 = vshll.u32 %v3848, 16
      %v3911 = vor.u32 %v3908, %v3909
      %v3912 = vsel %vm523, %v3904, %v3911
      %v3913 = vrot.slane %v3908, 4
      %v3915 = vshrl.u32 %v3849, 16
      %v3917 = vrot.slane %v3915, 7
      %v3918 = vshll.u32 %v3849, 16
      %v3920 = vor.u32 %v3917, %v3918
      %v3921 = vrot.slane %v3917, 4
      %v3923 = vshrl.u32 %v3850, 16
      %v3925 = vrot.slane %v3923, 7
      %v3926 = vshll.u32 %v3850, 16
      %v3928 = vor.u32 %v3925, %v3926
      %v3929 = vsel %vm523, %v3921, %v3928
      %v3930 = vrot.slane %v3925, 4
      %v3932 = vshrl.u32 %v3851, 16
      %v3934 = vrot.slane %v3932, 7
      %v3935 = vshll.u32 %v3851, 16
      %v3937 = vor.u32 %v3934, %v3935
      %v3938 = vrot.slane %v3934, 4
      %v3940 = vshrl.u32 %v3852, 16
      %v3942 = vrot.slane %v3940, 7
      %v3943 = vshll.u32 %v3852, 16
      %v3945 = vor.u32 %v3942, %v3943
      %v3946 = vsel %vm523, %v3938, %v3945
      %v3947 = vrot.slane %v3942, 4
      %v3949 = vshrl.u32 %v3853, 16
      %v3951 = vrot.slane %v3949, 7
      %v3952 = vshll.u32 %v3853, 16
      %v3954 = vor.u32 %v3951, %v3952
      %v3955 = vrot.slane %v3951, 4
      %v3957 = vshrl.u32 %v3854, 16
      %v3959 = vrot.slane %v3957, 7
      %v3960 = vshll.u32 %v3854, 16
      %v3962 = vor.u32 %v3959, %v3960
      %v3963 = vsel %vm523, %v3955, %v3962
      %v3964 = vrot.slane %v3959, 4
      %v3966 = vshrl.u32 %v3855, 16
      %v3968 = vrot.slane %v3966, 7
      %v3969 = vshll.u32 %v3855, 16
      %v3971 = vor.u32 %v3968, %v3969
      %v3972 = vrot.slane %v3968, 4
      %v3974 = vshrl.u32 %v3856, 16
      %v3976 = vrot.slane %v3974, 7
      %v3977 = vshll.u32 %v3856, 16
      %v3979 = vor.u32 %v3976, %v3977
      %v3980 = vsel %vm523, %v3972, %v3979
      %v3981 = vrot.slane %v3976, 4
      %v3983 = vshrl.u32 %v3857, 16
      %v3985 = vrot.slane %v3983, 7
      %v3986 = vshll.u32 %v3857, 16
      %v3988 = vor.u32 %v3985, %v3986
      %v3989 = vrot.slane %v3985, 4
      %v3991 = vshrl.u32 %v3858, 16
      %v3993 = vrot.slane %v3991, 7
      %v3994 = vshll.u32 %v3858, 16
      %v3996 = vor.u32 %v3993, %v3994
      %v3997 = vsel %vm523, %v3989, %v3996
      %v3998 = vrot.slane %v3993, 4
      %v4000 = vshrl.u32 %v3859, 16
      %v4002 = vrot.slane %v4000, 7
      %v4003 = vshll.u32 %v3859, 16
      %v4005 = vor.u32 %v4002, %v4003
      %v4006 = vrot.slane %v4002, 4
      %v4008 = vshrl.u32 %v3860, 16
      %v4010 = vrot.slane %v4008, 7
      %v4011 = vshll.u32 %v3860, 16
      %v4013 = vor.u32 %v4010, %v4011
      %v4014 = vsel %vm523, %v4006, %v4013
      %v4015 = vrot.slane %v4010, 4
      %v4017 = vshrl.u32 %v3861, 16
      %v4019 = vrot.slane %v4017, 7
      %v4020 = vshll.u32 %v3861, 16
      %v4022 = vor.u32 %v4019, %v4020
      %v4023 = vrot.slane %v4019, 4
      %v4025 = vshrl.u32 %v3862, 16
      %v4027 = vrot.slane %v4025, 7
      %v4028 = vshll.u32 %v3862, 16
      %v4030 = vor.u32 %v4027, %v4028
      %v4031 = vsel %vm523, %v4023, %v4030
      %v4032 = vrot.slane %v4027, 4
      %v4063 = vld [vmem:[#allocation3] sm:$0xf]
      %v4064 = vsel %vm686, %v3869, %v4063
      %4065 = vst [vmem:[#allocation3] sm:$0xf] %v4064
      %4066 = vst [vmem:[#allocation3 + $0x4] sm:$0xf] %v3878
      %v4067 = vld [vmem:[#allocation3 + $0x8] sm:$0x1]
      %v4068 = vsel %vm337, %v3879, %v4067
      %4069 = vst [vmem:[#allocation3 + $0x8] sm:$0x1] %v4068
      %v4070 = vld [vmem:[#allocation3 + $0xc] sm:$0xf]
      %v4071 = vsel %vm686, %v3886, %v4070
      %4072 = vst [vmem:[#allocation3 + $0xc] sm:$0xf] %v4071
      %4073 = vst [vmem:[#allocation3 + $0x10] sm:$0xf] %v3895
      %v4074 = vld [vmem:[#allocation3 + $0x14] sm:$0x1]
      %v4075 = vsel %vm337, %v3896, %v4074
      %4076 = vst [vmem:[#allocation3 + $0x14] sm:$0x1] %v4075
      %v4077 = vld [vmem:[#allocation3 + $0x18] sm:$0xf]
      %v4078 = vsel %vm686, %v3903, %v4077
      %4079 = vst [vmem:[#allocation3 + $0x18] sm:$0xf] %v4078
      %4080 = vst [vmem:[#allocation3 + $0x1c] sm:$0xf] %v3912
      %v4081 = vld [vmem:[#allocation3 + $0x20] sm:$0x1]
      %v4082 = vsel %vm337, %v3913, %v4081
      %4083 = vst [vmem:[#allocation3 + $0x20] sm:$0x1] %v4082
      %v4084 = vld [vmem:[#allocation3 + $0x24] sm:$0xf]
      %v4085 = vsel %vm686, %v3920, %v4084
      %4086 = vst [vmem:[#allocation3 + $0x24] sm:$0xf] %v4085
      %4087 = vst [vmem:[#allocation3 + $0x28] sm:$0xf] %v3929
      %v4088 = vld [vmem:[#allocation3 + $0x2c] sm:$0x1]
      %v4089 = vsel %vm337, %v3930, %v4088
      %4090 = vst [vmem:[#allocation3 + $0x2c] sm:$0x1] %v4089
      %v4091 = vld [vmem:[#allocation3 + $0x30] sm:$0xf]
      %v4092 = vsel %vm686, %v3937, %v4091
      %4093 = vst [vmem:[#allocation3 + $0x30] sm:$0xf] %v4092
      %4094 = vst [vmem:[#allocation3 + $0x34] sm:$0xf] %v3946
      %v4095 = vld [vmem:[#allocation3 + $0x38] sm:$0x1]
      %v4096 = vsel %vm337, %v3947, %v4095
      %4097 = vst [vmem:[#allocation3 + $0x38] sm:$0x1] %v4096
      %v4098 = vld [vmem:[#allocation3 + $0x3c] sm:$0xf]
      %v4099 = vsel %vm686, %v3954, %v4098
      %4100 = vst [vmem:[#allocation3 + $0x3c] sm:$0xf] %v4099
      %4101 = vst [vmem:[#allocation3 + $0x40] sm:$0xf] %v3963
      %v4102 = vld [vmem:[#allocation3 + $0x44] sm:$0x1]
      %v4103 = vsel %vm337, %v3964, %v4102
      %4104 = vst [vmem:[#allocation3 + $0x44] sm:$0x1] %v4103
      %v4105 = vld [vmem:[#allocation3 + $0x48] sm:$0xf]
      %v4106 = vsel %vm686, %v3971, %v4105
      %4107 = vst [vmem:[#allocation3 + $0x48] sm:$0xf] %v4106
      %4108 = vst [vmem:[#allocation3 + $0x4c] sm:$0xf] %v3980
      %v4109 = vld [vmem:[#allocation3 + $0x50] sm:$0x1]
      %v4110 = vsel %vm337, %v3981, %v4109
      %4111 = vst [vmem:[#allocation3 + $0x50] sm:$0x1] %v4110
      %v4112 = vld [vmem:[#allocation3 + $0x54] sm:$0xf]
      %v4113 = vsel %vm686, %v3988, %v4112
      %4114 = vst [vmem:[#allocation3 + $0x54] sm:$0xf] %v4113
      %4115 = vst [vmem:[#allocation3 + $0x58] sm:$0xf] %v3997
      %v4116 = vld [vmem:[#allocation3 + $0x5c] sm:$0x1]
      %v4117 = vsel %vm337, %v3998, %v4116
      %4118 = vst [vmem:[#allocation3 + $0x5c] sm:$0x1] %v4117
      %v4119 = vld [vmem:[#allocation3 + $0x60] sm:$0xf]
      %v4120 = vsel %vm686, %v4005, %v4119
      %4121 = vst [vmem:[#allocation3 + $0x60] sm:$0xf] %v4120
      %4122 = vst [vmem:[#allocation3 + $0x64] sm:$0xf] %v4014
      %v4123 = vld [vmem:[#allocation3 + $0x68] sm:$0x1]
      %v4124 = vsel %vm337, %v4015, %v4123
      %4125 = vst [vmem:[#allocation3 + $0x68] sm:$0x1] %v4124
      %v4126 = vld [vmem:[#allocation3 + $0x6c] sm:$0xf]
      %v4127 = vsel %vm686, %v4022, %v4126
      %4128 = vst [vmem:[#allocation3 + $0x6c] sm:$0xf] %v4127
      %4129 = vst [vmem:[#allocation3 + $0x70] sm:$0xf] %v4031
      %v4130 = vld [vmem:[#allocation3 + $0x74] sm:$0x1]
      %v4131 = vsel %vm337, %v4032, %v4130
      %4132 = vst [vmem:[#allocation3 + $0x74] sm:$0x1] %v4131
      // Predicated region
      $region69: #{ibasic_block_pallas.1} parent=51 // pred_check
        %p4133 = pneg %p828
      $region70: #{ibasic_block_pallas.1} parent=51 // pred_check_branch
        %4135 = sbr.rel (%p4133) target = $region72
      $region71: #{ibasic_block_pallas.1} parent=51 // pred_region
        %4136 = vst [vmem:[#allocation3] sm:$0xf] 0
        %4137 = vst [vmem:[#allocation3 + $0x4] sm:$0xf] 0
        %4138 = vst [vmem:[#allocation3 + $0x8] sm:$0x1] 0
      $region72: #{ibasic_block_pallas.1} parent=51 // pred_fallthru
        _
      // Predicated region
      $region73: #{ibasic_block_pallas.1} parent=51 // pred_check
        %p4139 = pneg %p924
      $region74: #{ibasic_block_pallas.1} parent=51 // pred_check_branch
        %4141 = sbr.rel (%p4139) target = $region76
      $region75: #{ibasic_block_pallas.1} parent=51 // pred_region
        %s4142 = scalar_lea.vmem [#allocation3], 108
        %4143 = vst [vmem:[%s4142] sm:$0xf] 0
        %4144 = vst [vmem:[%s4142 + $0x4] sm:$0xf] 0
        %4145 = vst [vmem:[%s4142 + $0x8] sm:$0x1] 0
      $region76: #{ibasic_block_pallas.1} parent=51 // pred_fallthru
        _
      %v4146 = vld [vmem:[#allocation3] sm:$0xf]
      %v4147 = vld [vmem:[#allocation3 + $0x4] sm:$0xf]
      %v4148 = vld [vmem:[#allocation3 + $0xc] sm:$0xf]
      %v4149 = vld [vmem:[#allocation3 + $0x10] sm:$0xf]
      %v4150 = vld [vmem:[#allocation3 + $0x18] sm:$0xf]
      %v4151 = vld [vmem:[#allocation3 + $0x1c] sm:$0xf]
      %v4152 = vld [vmem:[#allocation3 + $0x24] sm:$0xf]
      %v4153 = vld [vmem:[#allocation3 + $0x28] sm:$0xf]
      %v4154 = vld [vmem:[#allocation3 + $0x30] sm:$0xf]
      %v4155 = vld [vmem:[#allocation3 + $0x34] sm:$0xf]
      %v4156 = vld [vmem:[#allocation3 + $0x3c] sm:$0xf]
      %v4157 = vld [vmem:[#allocation3 + $0x40] sm:$0xf]
      %v4158 = vld [vmem:[#allocation3 + $0x48] sm:$0xf]
      %v4159 = vld [vmem:[#allocation3 + $0x4c] sm:$0xf]
      %v4160 = vld [vmem:[#allocation3 + $0x54] sm:$0xf]
      %v4161 = vld [vmem:[#allocation3 + $0x58] sm:$0xf]
      %v4178 = vunpack.c.l.b16 %v4146
      %v4179 = vunpack.c.l.b16 %v4147
      %v4180 = vunpack.c.l.b16 %v4148
      %v4181 = vunpack.c.l.b16 %v4149
      %v4182 = vunpack.c.l.b16 %v4150
      %v4183 = vunpack.c.l.b16 %v4151
      %v4184 = vunpack.c.l.b16 %v4152
      %v4185 = vunpack.c.l.b16 %v4153
      %v4186 = vunpack.c.l.b16 %v4154
      %v4187 = vunpack.c.l.b16 %v4155
      %v4188 = vunpack.c.l.b16 %v4156
      %v4189 = vunpack.c.l.b16 %v4157
      %v4190 = vunpack.c.l.b16 %v4158
      %v4191 = vunpack.c.l.b16 %v4159
      %v4192 = vunpack.c.l.b16 %v4160
      %v4193 = vunpack.c.l.b16 %v4161
      %v4194 = vpack.c.b16 %v4179, %v4178
      %v4195 = vpack.c.b16 %v4181, %v4180
      %v4196 = vpack.c.b16 %v4183, %v4182
      %v4197 = vpack.c.b16 %v4185, %v4184
      %v4198 = vpack.c.b16 %v4187, %v4186
      %v4199 = vpack.c.b16 %v4189, %v4188
      %v4200 = vpack.c.b16 %v4191, %v4190
      %v4201 = vpack.c.b16 %v4193, %v4192
      %4210 = vst [vmem:[#allocation4] sm:$0xff] %v4194
      %4211 = vst [vmem:[#allocation4 + $0x48] sm:$0xff] %v4195
      %4212 = vst [vmem:[#allocation4 + $0x90] sm:$0xff] %v4196
      %4213 = vst [vmem:[#allocation4 + $0xd8] sm:$0xff] %v4197
      %4214 = vst [vmem:[#allocation4 + $0x120] sm:$0xff] %v4198
      %4215 = vst [vmem:[#allocation4 + $0x168] sm:$0xff] %v4199
      %4216 = vst [vmem:[#allocation4 + $0x1b0] sm:$0xff] %v4200
      %4217 = vst [vmem:[#allocation4 + $0x1f8] sm:$0xff] %v4201
      %v4218 = vld [vmem:[#allocation3] sm:$0xf]
      %v4219 = vld [vmem:[#allocation3 + $0x4] sm:$0xf]
      %v4220 = vld [vmem:[#allocation3 + $0x8] sm:$0x1]
      %v4221 = vld [vmem:[#allocation3 + $0xc] sm:$0xf]
      %v4222 = vld [vmem:[#allocation3 + $0x10] sm:$0xf]
      %v4223 = vld [vmem:[#allocation3 + $0x14] sm:$0x1]
      %v4224 = vld [vmem:[#allocation3 + $0x18] sm:$0xf]
      %v4225 = vld [vmem:[#allocation3 + $0x1c] sm:$0xf]
      %v4226 = vld [vmem:[#allocation3 + $0x20] sm:$0x1]
      %v4227 = vld [vmem:[#allocation3 + $0x24] sm:$0xf]
      %v4228 = vld [vmem:[#allocation3 + $0x28] sm:$0xf]
      %v4229 = vld [vmem:[#allocation3 + $0x2c] sm:$0x1]
      %v4230 = vld [vmem:[#allocation3 + $0x30] sm:$0xf]
      %v4231 = vld [vmem:[#allocation3 + $0x34] sm:$0xf]
      %v4232 = vld [vmem:[#allocation3 + $0x38] sm:$0x1]
      %v4233 = vld [vmem:[#allocation3 + $0x3c] sm:$0xf]
      %v4234 = vld [vmem:[#allocation3 + $0x40] sm:$0xf]
      %v4235 = vld [vmem:[#allocation3 + $0x44] sm:$0x1]
      %v4236 = vld [vmem:[#allocation3 + $0x48] sm:$0xf]
      %v4237 = vld [vmem:[#allocation3 + $0x4c] sm:$0xf]
      %v4238 = vld [vmem:[#allocation3 + $0x50] sm:$0x1]
      %v4239 = vld [vmem:[#allocation3 + $0x54] sm:$0xf]
      %v4240 = vld [vmem:[#allocation3 + $0x58] sm:$0xf]
      %v4241 = vld [vmem:[#allocation3 + $0x5c] sm:$0x1]
      %v4266 = vunpack.c.l.b16 %v4218
      %v4267 = vunpack.c.l.b16 %v4219
      %v4268 = vunpack.c.l.b16 %v4220
      %v4269 = vunpack.c.l.b16 %v4221
      %v4270 = vunpack.c.l.b16 %v4222
      %v4271 = vunpack.c.l.b16 %v4223
      %v4272 = vunpack.c.l.b16 %v4224
      %v4273 = vunpack.c.l.b16 %v4225
      %v4274 = vunpack.c.l.b16 %v4226
      %v4275 = vunpack.c.l.b16 %v4227
      %v4276 = vunpack.c.l.b16 %v4228
      %v4277 = vunpack.c.l.b16 %v4229
      %v4278 = vunpack.c.l.b16 %v4230
      %v4279 = vunpack.c.l.b16 %v4231
      %v4280 = vunpack.c.l.b16 %v4232
      %v4281 = vunpack.c.l.b16 %v4233
      %v4282 = vunpack.c.l.b16 %v4234
      %v4283 = vunpack.c.l.b16 %v4235
      %v4284 = vunpack.c.l.b16 %v4236
      %v4285 = vunpack.c.l.b16 %v4237
      %v4286 = vunpack.c.l.b16 %v4238
      %v4287 = vunpack.c.l.b16 %v4239
      %v4288 = vunpack.c.l.b16 %v4240
      %v4289 = vunpack.c.l.b16 %v4241
      %v4290 = vpack.c.b16 %v4267, %v4266
      %v4291 = vpack.c.b16 %v4268, %v4268
      %v4292 = vpack.c.b16 %v4270, %v4269
      %v4293 = vpack.c.b16 %v4271, %v4271
      %v4294 = vpack.c.b16 %v4273, %v4272
      %v4295 = vpack.c.b16 %v4274, %v4274
      %v4296 = vpack.c.b16 %v4276, %v4275
      %v4297 = vpack.c.b16 %v4277, %v4277
      %v4298 = vpack.c.b16 %v4279, %v4278
      %v4299 = vpack.c.b16 %v4280, %v4280
      %v4300 = vpack.c.b16 %v4282, %v4281
      %v4301 = vpack.c.b16 %v4283, %v4283
      %v4302 = vpack.c.b16 %v4285, %v4284
      %v4303 = vpack.c.b16 %v4286, %v4286
      %v4304 = vpack.c.b16 %v4288, %v4287
      %v4305 = vpack.c.b16 %v4289, %v4289
      %v4307 = vshrl.u32 %v4290, 16
      %v4309 = vshll.u32 %v4290, 16
      %v4311 = vrot.slane %v4309, 1
      %v4312 = vor.u32 %v4307, %v4311
      %v4314 = vshll.u32 %v4291, 16
      %v4316 = vrot.slane %v4314, 1
      %v4317 = vsel %vm1135, %v4312, %v4316
      %v4319 = vshrl.u32 %v4292, 16
      %v4321 = vshll.u32 %v4292, 16
      %v4323 = vrot.slane %v4321, 1
      %v4324 = vor.u32 %v4319, %v4323
      %v4326 = vshll.u32 %v4293, 16
      %v4328 = vrot.slane %v4326, 1
      %v4329 = vsel %vm1135, %v4324, %v4328
      %v4331 = vshrl.u32 %v4294, 16
      %v4333 = vshll.u32 %v4294, 16
      %v4335 = vrot.slane %v4333, 1
      %v4336 = vor.u32 %v4331, %v4335
      %v4338 = vshll.u32 %v4295, 16
      %v4340 = vrot.slane %v4338, 1
      %v4341 = vsel %vm1135, %v4336, %v4340
      %v4343 = vshrl.u32 %v4296, 16
      %v4345 = vshll.u32 %v4296, 16
      %v4347 = vrot.slane %v4345, 1
      %v4348 = vor.u32 %v4343, %v4347
      %v4350 = vshll.u32 %v4297, 16
      %v4352 = vrot.slane %v4350, 1
      %v4353 = vsel %vm1135, %v4348, %v4352
      %v4355 = vshrl.u32 %v4298, 16
      %v4357 = vshll.u32 %v4298, 16
      %v4359 = vrot.slane %v4357, 1
      %v4360 = vor.u32 %v4355, %v4359
      %v4362 = vshll.u32 %v4299, 16
      %v4364 = vrot.slane %v4362, 1
      %v4365 = vsel %vm1135, %v4360, %v4364
      %v4367 = vshrl.u32 %v4300, 16
      %v4369 = vshll.u32 %v4300, 16
      %v4371 = vrot.slane %v4369, 1
      %v4372 = vor.u32 %v4367, %v4371
      %v4374 = vshll.u32 %v4301, 16
      %v4376 = vrot.slane %v4374, 1
      %v4377 = vsel %vm1135, %v4372, %v4376
      %v4379 = vshrl.u32 %v4302, 16
      %v4381 = vshll.u32 %v4302, 16
      %v4383 = vrot.slane %v4381, 1
      %v4384 = vor.u32 %v4379, %v4383
      %v4386 = vshll.u32 %v4303, 16
      %v4388 = vrot.slane %v4386, 1
      %v4389 = vsel %vm1135, %v4384, %v4388
      %v4391 = vshrl.u32 %v4304, 16
      %v4393 = vshll.u32 %v4304, 16
      %v4395 = vrot.slane %v4393, 1
      %v4396 = vor.u32 %v4391, %v4395
      %v4398 = vshll.u32 %v4305, 16
      %v4400 = vrot.slane %v4398, 1
      %v4401 = vsel %vm1135, %v4396, %v4400
      %4410 = vst [vmem:[#allocation4 + $0x8] sm:$0xff] %v4317
      %4411 = vst [vmem:[#allocation4 + $0x50] sm:$0xff] %v4329
      %4412 = vst [vmem:[#allocation4 + $0x98] sm:$0xff] %v4341
      %4413 = vst [vmem:[#allocation4 + $0xe0] sm:$0xff] %v4353
      %4414 = vst [vmem:[#allocation4 + $0x128] sm:$0xff] %v4365
      %4415 = vst [vmem:[#allocation4 + $0x170] sm:$0xff] %v4377
      %4416 = vst [vmem:[#allocation4 + $0x1b8] sm:$0xff] %v4389
      %4417 = vst [vmem:[#allocation4 + $0x200] sm:$0xff] %v4401
      %v4418 = vld [vmem:[#allocation3] sm:$0xe]
      %v4419 = vld [vmem:[#allocation3 + $0x4] sm:$0xf]
      %v4420 = vld [vmem:[#allocation3 + $0x8] sm:$0x1]
      %v4421 = vld [vmem:[#allocation3 + $0xc] sm:$0xe]
      %v4422 = vld [vmem:[#allocation3 + $0x10] sm:$0xf]
      %v4423 = vld [vmem:[#allocation3 + $0x14] sm:$0x1]
      %v4424 = vld [vmem:[#allocation3 + $0x18] sm:$0xe]
      %v4425 = vld [vmem:[#allocation3 + $0x1c] sm:$0xf]
      %v4426 = vld [vmem:[#allocation3 + $0x20] sm:$0x1]
      %v4427 = vld [vmem:[#allocation3 + $0x24] sm:$0xe]
      %v4428 = vld [vmem:[#allocation3 + $0x28] sm:$0xf]
      %v4429 = vld [vmem:[#allocation3 + $0x2c] sm:$0x1]
      %v4430 = vld [vmem:[#allocation3 + $0x30] sm:$0xe]
      %v4431 = vld [vmem:[#allocation3 + $0x34] sm:$0xf]
      %v4432 = vld [vmem:[#allocation3 + $0x38] sm:$0x1]
      %v4433 = vld [vmem:[#allocation3 + $0x3c] sm:$0xe]
      %v4434 = vld [vmem:[#allocation3 + $0x40] sm:$0xf]
      %v4435 = vld [vmem:[#allocation3 + $0x44] sm:$0x1]
      %v4436 = vld [vmem:[#allocation3 + $0x48] sm:$0xe]
      %v4437 = vld [vmem:[#allocation3 + $0x4c] sm:$0xf]
      %v4438 = vld [vmem:[#allocation3 + $0x50] sm:$0x1]
      %v4439 = vld [vmem:[#allocation3 + $0x54] sm:$0xe]
      %v4440 = vld [vmem:[#allocation3 + $0x58] sm:$0xf]
      %v4441 = vld [vmem:[#allocation3 + $0x5c] sm:$0x1]
      %v4466 = vunpack.c.l.b16 %v4418
      %v4467 = vunpack.c.l.b16 %v4419
      %v4468 = vunpack.c.l.b16 %v4420
      %v4469 = vunpack.c.l.b16 %v4421
      %v4470 = vunpack.c.l.b16 %v4422
      %v4471 = vunpack.c.l.b16 %v4423
      %v4472 = vunpack.c.l.b16 %v4424
      %v4473 = vunpack.c.l.b16 %v4425
      %v4474 = vunpack.c.l.b16 %v4426
      %v4475 = vunpack.c.l.b16 %v4427
      %v4476 = vunpack.c.l.b16 %v4428
      %v4477 = vunpack.c.l.b16 %v4429
      %v4478 = vunpack.c.l.b16 %v4430
      %v4479 = vunpack.c.l.b16 %v4431
      %v4480 = vunpack.c.l.b16 %v4432
      %v4481 = vunpack.c.l.b16 %v4433
      %v4482 = vunpack.c.l.b16 %v4434
      %v4483 = vunpack.c.l.b16 %v4435
      %v4484 = vunpack.c.l.b16 %v4436
      %v4485 = vunpack.c.l.b16 %v4437
      %v4486 = vunpack.c.l.b16 %v4438
      %v4487 = vunpack.c.l.b16 %v4439
      %v4488 = vunpack.c.l.b16 %v4440
      %v4489 = vunpack.c.l.b16 %v4441
      %v4490 = vpack.c.b16 %v4467, %v4466
      %v4491 = vpack.c.b16 %v4468, %v4468
      %v4492 = vpack.c.b16 %v4470, %v4469
      %v4493 = vpack.c.b16 %v4471, %v4471
      %v4494 = vpack.c.b16 %v4473, %v4472
      %v4495 = vpack.c.b16 %v4474, %v4474
      %v4496 = vpack.c.b16 %v4476, %v4475
      %v4497 = vpack.c.b16 %v4477, %v4477
      %v4498 = vpack.c.b16 %v4479, %v4478
      %v4499 = vpack.c.b16 %v4480, %v4480
      %v4500 = vpack.c.b16 %v4482, %v4481
      %v4501 = vpack.c.b16 %v4483, %v4483
      %v4502 = vpack.c.b16 %v4485, %v4484
      %v4503 = vpack.c.b16 %v4486, %v4486
      %v4504 = vpack.c.b16 %v4488, %v4487
      %v4505 = vpack.c.b16 %v4489, %v4489
      %v4506 = vrot.slane %v4490, 1
      %v4507 = vrot.slane %v4491, 1
      %v4508 = vsel %vm1386, %v4506, %v4507
      %v4509 = vrot.slane %v4492, 1
      %v4510 = vrot.slane %v4493, 1
      %v4511 = vsel %vm1386, %v4509, %v4510
      %v4512 = vrot.slane %v4494, 1
      %v4513 = vrot.slane %v4495, 1
      %v4514 = vsel %vm1386, %v4512, %v4513
      %v4515 = vrot.slane %v4496, 1
      %v4516 = vrot.slane %v4497, 1
      %v4517 = vsel %vm1386, %v4515, %v4516
      %v4518 = vrot.slane %v4498, 1
      %v4519 = vrot.slane %v4499, 1
      %v4520 = vsel %vm1386, %v4518, %v4519
      %v4521 = vrot.slane %v4500, 1
      %v4522 = vrot.slane %v4501, 1
      %v4523 = vsel %vm1386, %v4521, %v4522
      %v4524 = vrot.slane %v4502, 1
      %v4525 = vrot.slane %v4503, 1
      %v4526 = vsel %vm1386, %v4524, %v4525
      %v4527 = vrot.slane %v4504, 1
      %v4528 = vrot.slane %v4505, 1
      %v4529 = vsel %vm1386, %v4527, %v4528
      %4538 = vst [vmem:[#allocation4 + $0x10] sm:$0xff] %v4508
      %4539 = vst [vmem:[#allocation4 + $0x58] sm:$0xff] %v4511
      %4540 = vst [vmem:[#allocation4 + $0xa0] sm:$0xff] %v4514
      %4541 = vst [vmem:[#allocation4 + $0xe8] sm:$0xff] %v4517
      %4542 = vst [vmem:[#allocation4 + $0x130] sm:$0xff] %v4520
      %4543 = vst [vmem:[#allocation4 + $0x178] sm:$0xff] %v4523
      %4544 = vst [vmem:[#allocation4 + $0x1c0] sm:$0xff] %v4526
      %4545 = vst [vmem:[#allocation4 + $0x208] sm:$0xff] %v4529
      %s4546 = scalar_lea.vmem [#allocation3], 12
      %v4547 = vld [vmem:[%s4546] sm:$0xf]
      %v4548 = vld [vmem:[%s4546 + $0x4] sm:$0xf]
      %v4549 = vld [vmem:[%s4546 + $0xc] sm:$0xf]
      %v4550 = vld [vmem:[%s4546 + $0x10] sm:$0xf]
      %v4551 = vld [vmem:[%s4546 + $0x18] sm:$0xf]
      %v4552 = vld [vmem:[%s4546 + $0x1c] sm:$0xf]
      %v4553 = vld [vmem:[%s4546 + $0x24] sm:$0xf]
      %v4554 = vld [vmem:[%s4546 + $0x28] sm:$0xf]
      %v4555 = vld [vmem:[%s4546 + $0x30] sm:$0xf]
      %v4556 = vld [vmem:[%s4546 + $0x34] sm:$0xf]
      %v4557 = vld [vmem:[%s4546 + $0x3c] sm:$0xf]
      %v4558 = vld [vmem:[%s4546 + $0x40] sm:$0xf]
      %v4559 = vld [vmem:[%s4546 + $0x48] sm:$0xf]
      %v4560 = vld [vmem:[%s4546 + $0x4c] sm:$0xf]
      %v4561 = vld [vmem:[%s4546 + $0x54] sm:$0xf]
      %v4562 = vld [vmem:[%s4546 + $0x58] sm:$0xf]
      %v4579 = vunpack.c.l.b16 %v4547
      %v4580 = vunpack.c.l.b16 %v4548
      %v4581 = vunpack.c.l.b16 %v4549
      %v4582 = vunpack.c.l.b16 %v4550
      %v4583 = vunpack.c.l.b16 %v4551
      %v4584 = vunpack.c.l.b16 %v4552
      %v4585 = vunpack.c.l.b16 %v4553
      %v4586 = vunpack.c.l.b16 %v4554
      %v4587 = vunpack.c.l.b16 %v4555
      %v4588 = vunpack.c.l.b16 %v4556
      %v4589 = vunpack.c.l.b16 %v4557
      %v4590 = vunpack.c.l.b16 %v4558
      %v4591 = vunpack.c.l.b16 %v4559
      %v4592 = vunpack.c.l.b16 %v4560
      %v4593 = vunpack.c.l.b16 %v4561
      %v4594 = vunpack.c.l.b16 %v4562
      %v4595 = vpack.c.b16 %v4580, %v4579
      %v4596 = vpack.c.b16 %v4582, %v4581
      %v4597 = vpack.c.b16 %v4584, %v4583
      %v4598 = vpack.c.b16 %v4586, %v4585
      %v4599 = vpack.c.b16 %v4588, %v4587
      %v4600 = vpack.c.b16 %v4590, %v4589
      %v4601 = vpack.c.b16 %v4592, %v4591
      %v4602 = vpack.c.b16 %v4594, %v4593
      %4611 = vst [vmem:[#allocation4 + $0x18] sm:$0xff] %v4595
      %4612 = vst [vmem:[#allocation4 + $0x60] sm:$0xff] %v4596
      %4613 = vst [vmem:[#allocation4 + $0xa8] sm:$0xff] %v4597
      %4614 = vst [vmem:[#allocation4 + $0xf0] sm:$0xff] %v4598
      %4615 = vst [vmem:[#allocation4 + $0x138] sm:$0xff] %v4599
      %4616 = vst [vmem:[#allocation4 + $0x180] sm:$0xff] %v4600
      %4617 = vst [vmem:[#allocation4 + $0x1c8] sm:$0xff] %v4601
      %4618 = vst [vmem:[#allocation4 + $0x210] sm:$0xff] %v4602
      %v4619 = vld [vmem:[%s4546] sm:$0xf]
      %v4620 = vld [vmem:[%s4546 + $0x4] sm:$0xf]
      %v4621 = vld [vmem:[%s4546 + $0x8] sm:$0x1]
      %v4622 = vld [vmem:[%s4546 + $0xc] sm:$0xf]
      %v4623 = vld [vmem:[%s4546 + $0x10] sm:$0xf]
      %v4624 = vld [vmem:[%s4546 + $0x14] sm:$0x1]
      %v4625 = vld [vmem:[%s4546 + $0x18] sm:$0xf]
      %v4626 = vld [vmem:[%s4546 + $0x1c] sm:$0xf]
      %v4627 = vld [vmem:[%s4546 + $0x20] sm:$0x1]
      %v4628 = vld [vmem:[%s4546 + $0x24] sm:$0xf]
      %v4629 = vld [vmem:[%s4546 + $0x28] sm:$0xf]
      %v4630 = vld [vmem:[%s4546 + $0x2c] sm:$0x1]
      %v4631 = vld [vmem:[%s4546 + $0x30] sm:$0xf]
      %v4632 = vld [vmem:[%s4546 + $0x34] sm:$0xf]
      %v4633 = vld [vmem:[%s4546 + $0x38] sm:$0x1]
      %v4634 = vld [vmem:[%s4546 + $0x3c] sm:$0xf]
      %v4635 = vld [vmem:[%s4546 + $0x40] sm:$0xf]
      %v4636 = vld [vmem:[%s4546 + $0x44] sm:$0x1]
      %v4637 = vld [vmem:[%s4546 + $0x48] sm:$0xf]
      %v4638 = vld [vmem:[%s4546 + $0x4c] sm:$0xf]
      %v4639 = vld [vmem:[%s4546 + $0x50] sm:$0x1]
      %v4640 = vld [vmem:[%s4546 + $0x54] sm:$0xf]
      %v4641 = vld [vmem:[%s4546 + $0x58] sm:$0xf]
      %v4642 = vld [vmem:[%s4546 + $0x5c] sm:$0x1]
      %v4667 = vunpack.c.l.b16 %v4619
      %v4668 = vunpack.c.l.b16 %v4620
      %v4669 = vunpack.c.l.b16 %v4621
      %v4670 = vunpack.c.l.b16 %v4622
      %v4671 = vunpack.c.l.b16 %v4623
      %v4672 = vunpack.c.l.b16 %v4624
      %v4673 = vunpack.c.l.b16 %v4625
      %v4674 = vunpack.c.l.b16 %v4626
      %v4675 = vunpack.c.l.b16 %v4627
      %v4676 = vunpack.c.l.b16 %v4628
      %v4677 = vunpack.c.l.b16 %v4629
      %v4678 = vunpack.c.l.b16 %v4630
      %v4679 = vunpack.c.l.b16 %v4631
      %v4680 = vunpack.c.l.b16 %v4632
      %v4681 = vunpack.c.l.b16 %v4633
      %v4682 = vunpack.c.l.b16 %v4634
      %v4683 = vunpack.c.l.b16 %v4635
      %v4684 = vunpack.c.l.b16 %v4636
      %v4685 = vunpack.c.l.b16 %v4637
      %v4686 = vunpack.c.l.b16 %v4638
      %v4687 = vunpack.c.l.b16 %v4639
      %v4688 = vunpack.c.l.b16 %v4640
      %v4689 = vunpack.c.l.b16 %v4641
      %v4690 = vunpack.c.l.b16 %v4642
      %v4691 = vpack.c.b16 %v4668, %v4667
      %v4692 = vpack.c.b16 %v4669, %v4669
      %v4693 = vpack.c.b16 %v4671, %v4670
      %v4694 = vpack.c.b16 %v4672, %v4672
      %v4695 = vpack.c.b16 %v4674, %v4673
      %v4696 = vpack.c.b16 %v4675, %v4675
      %v4697 = vpack.c.b16 %v4677, %v4676
      %v4698 = vpack.c.b16 %v4678, %v4678
      %v4699 = vpack.c.b16 %v4680, %v4679
      %v4700 = vpack.c.b16 %v4681, %v4681
      %v4701 = vpack.c.b16 %v4683, %v4682
      %v4702 = vpack.c.b16 %v4684, %v4684
      %v4703 = vpack.c.b16 %v4686, %v4685
      %v4704 = vpack.c.b16 %v4687, %v4687
      %v4705 = vpack.c.b16 %v4689, %v4688
      %v4706 = vpack.c.b16 %v4690, %v4690
      %v4708 = vshrl.u32 %v4691, 16
      %v4710 = vshll.u32 %v4691, 16
      %v4712 = vrot.slane %v4710, 1
      %v4713 = vor.u32 %v4708, %v4712
      %v4715 = vshll.u32 %v4692, 16
      %v4717 = vrot.slane %v4715, 1
      %v4718 = vsel %vm1135, %v4713, %v4717
      %v4720 = vshrl.u32 %v4693, 16
      %v4722 = vshll.u32 %v4693, 16
      %v4724 = vrot.slane %v4722, 1
      %v4725 = vor.u32 %v4720, %v4724
      %v4727 = vshll.u32 %v4694, 16
      %v4729 = vrot.slane %v4727, 1
      %v4730 = vsel %vm1135, %v4725, %v4729
      %v4732 = vshrl.u32 %v4695, 16
      %v4734 = vshll.u32 %v4695, 16
      %v4736 = vrot.slane %v4734, 1
      %v4737 = vor.u32 %v4732, %v4736
      %v4739 = vshll.u32 %v4696, 16
      %v4741 = vrot.slane %v4739, 1
      %v4742 = vsel %vm1135, %v4737, %v4741
      %v4744 = vshrl.u32 %v4697, 16
      %v4746 = vshll.u32 %v4697, 16
      %v4748 = vrot.slane %v4746, 1
      %v4749 = vor.u32 %v4744, %v4748
      %v4751 = vshll.u32 %v4698, 16
      %v4753 = vrot.slane %v4751, 1
      %v4754 = vsel %vm1135, %v4749, %v4753
      %v4756 = vshrl.u32 %v4699, 16
      %v4758 = vshll.u32 %v4699, 16
      %v4760 = vrot.slane %v4758, 1
      %v4761 = vor.u32 %v4756, %v4760
      %v4763 = vshll.u32 %v4700, 16
      %v4765 = vrot.slane %v4763, 1
      %v4766 = vsel %vm1135, %v4761, %v4765
      %v4768 = vshrl.u32 %v4701, 16
      %v4770 = vshll.u32 %v4701, 16
      %v4772 = vrot.slane %v4770, 1
      %v4773 = vor.u32 %v4768, %v4772
      %v4775 = vshll.u32 %v4702, 16
      %v4777 = vrot.slane %v4775, 1
      %v4778 = vsel %vm1135, %v4773, %v4777
      %v4780 = vshrl.u32 %v4703, 16
      %v4782 = vshll.u32 %v4703, 16
      %v4784 = vrot.slane %v4782, 1
      %v4785 = vor.u32 %v4780, %v4784
      %v4787 = vshll.u32 %v4704, 16
      %v4789 = vrot.slane %v4787, 1
      %v4790 = vsel %vm1135, %v4785, %v4789
      %v4792 = vshrl.u32 %v4705, 16
      %v4794 = vshll.u32 %v4705, 16
      %v4796 = vrot.slane %v4794, 1
      %v4797 = vor.u32 %v4792, %v4796
      %v4799 = vshll.u32 %v4706, 16
      %v4801 = vrot.slane %v4799, 1
      %v4802 = vsel %vm1135, %v4797, %v4801
      %4811 = vst [vmem:[#allocation4 + $0x20] sm:$0xff] %v4718
      %4812 = vst [vmem:[#allocation4 + $0x68] sm:$0xff] %v4730
      %4813 = vst [vmem:[#allocation4 + $0xb0] sm:$0xff] %v4742
      %4814 = vst [vmem:[#allocation4 + $0xf8] sm:$0xff] %v4754
      %4815 = vst [vmem:[#allocation4 + $0x140] sm:$0xff] %v4766
      %4816 = vst [vmem:[#allocation4 + $0x188] sm:$0xff] %v4778
      %4817 = vst [vmem:[#allocation4 + $0x1d0] sm:$0xff] %v4790
      %4818 = vst [vmem:[#allocation4 + $0x218] sm:$0xff] %v4802
      %v4819 = vld [vmem:[%s4546] sm:$0xe]
      %v4820 = vld [vmem:[%s4546 + $0x4] sm:$0xf]
      %v4821 = vld [vmem:[%s4546 + $0x8] sm:$0x1]
      %v4822 = vld [vmem:[%s4546 + $0xc] sm:$0xe]
      %v4823 = vld [vmem:[%s4546 + $0x10] sm:$0xf]
      %v4824 = vld [vmem:[%s4546 + $0x14] sm:$0x1]
      %v4825 = vld [vmem:[%s4546 + $0x18] sm:$0xe]
      %v4826 = vld [vmem:[%s4546 + $0x1c] sm:$0xf]
      %v4827 = vld [vmem:[%s4546 + $0x20] sm:$0x1]
      %v4828 = vld [vmem:[%s4546 + $0x24] sm:$0xe]
      %v4829 = vld [vmem:[%s4546 + $0x28] sm:$0xf]
      %v4830 = vld [vmem:[%s4546 + $0x2c] sm:$0x1]
      %v4831 = vld [vmem:[%s4546 + $0x30] sm:$0xe]
      %v4832 = vld [vmem:[%s4546 + $0x34] sm:$0xf]
      %v4833 = vld [vmem:[%s4546 + $0x38] sm:$0x1]
      %v4834 = vld [vmem:[%s4546 + $0x3c] sm:$0xe]
      %v4835 = vld [vmem:[%s4546 + $0x40] sm:$0xf]
      %v4836 = vld [vmem:[%s4546 + $0x44] sm:$0x1]
      %v4837 = vld [vmem:[%s4546 + $0x48] sm:$0xe]
      %v4838 = vld [vmem:[%s4546 + $0x4c] sm:$0xf]
      %v4839 = vld [vmem:[%s4546 + $0x50] sm:$0x1]
      %v4840 = vld [vmem:[%s4546 + $0x54] sm:$0xe]
      %v4841 = vld [vmem:[%s4546 + $0x58] sm:$0xf]
      %v4842 = vld [vmem:[%s4546 + $0x5c] sm:$0x1]
      %v4867 = vunpack.c.l.b16 %v4819
      %v4868 = vunpack.c.l.b16 %v4820
      %v4869 = vunpack.c.l.b16 %v4821
      %v4870 = vunpack.c.l.b16 %v4822
      %v4871 = vunpack.c.l.b16 %v4823
      %v4872 = vunpack.c.l.b16 %v4824
      %v4873 = vunpack.c.l.b16 %v4825
      %v4874 = vunpack.c.l.b16 %v4826
      %v4875 = vunpack.c.l.b16 %v4827
      %v4876 = vunpack.c.l.b16 %v4828
      %v4877 = vunpack.c.l.b16 %v4829
      %v4878 = vunpack.c.l.b16 %v4830
      %v4879 = vunpack.c.l.b16 %v4831
      %v4880 = vunpack.c.l.b16 %v4832
      %v4881 = vunpack.c.l.b16 %v4833
      %v4882 = vunpack.c.l.b16 %v4834
      %v4883 = vunpack.c.l.b16 %v4835
      %v4884 = vunpack.c.l.b16 %v4836
      %v4885 = vunpack.c.l.b16 %v4837
      %v4886 = vunpack.c.l.b16 %v4838
      %v4887 = vunpack.c.l.b16 %v4839
      %v4888 = vunpack.c.l.b16 %v4840
      %v4889 = vunpack.c.l.b16 %v4841
      %v4890 = vunpack.c.l.b16 %v4842
      %v4891 = vpack.c.b16 %v4868, %v4867
      %v4892 = vpack.c.b16 %v4869, %v4869
      %v4893 = vpack.c.b16 %v4871, %v4870
      %v4894 = vpack.c.b16 %v4872, %v4872
      %v4895 = vpack.c.b16 %v4874, %v4873
      %v4896 = vpack.c.b16 %v4875, %v4875
      %v4897 = vpack.c.b16 %v4877, %v4876
      %v4898 = vpack.c.b16 %v4878, %v4878
      %v4899 = vpack.c.b16 %v4880, %v4879
      %v4900 = vpack.c.b16 %v4881, %v4881
      %v4901 = vpack.c.b16 %v4883, %v4882
      %v4902 = vpack.c.b16 %v4884, %v4884
      %v4903 = vpack.c.b16 %v4886, %v4885
      %v4904 = vpack.c.b16 %v4887, %v4887
      %v4905 = vpack.c.b16 %v4889, %v4888
      %v4906 = vpack.c.b16 %v4890, %v4890
      %v4907 = vrot.slane %v4891, 1
      %v4908 = vrot.slane %v4892, 1
      %v4909 = vsel %vm1386, %v4907, %v4908
      %v4910 = vrot.slane %v4893, 1
      %v4911 = vrot.slane %v4894, 1
      %v4912 = vsel %vm1386, %v4910, %v4911
      %v4913 = vrot.slane %v4895, 1
      %v4914 = vrot.slane %v4896, 1
      %v4915 = vsel %vm1386, %v4913, %v4914
      %v4916 = vrot.slane %v4897, 1
      %v4917 = vrot.slane %v4898, 1
      %v4918 = vsel %vm1386, %v4916, %v4917
      %v4919 = vrot.slane %v4899, 1
      %v4920 = vrot.slane %v4900, 1
      %v4921 = vsel %vm1386, %v4919, %v4920
      %v4922 = vrot.slane %v4901, 1
      %v4923 = vrot.slane %v4902, 1
      %v4924 = vsel %vm1386, %v4922, %v4923
      %v4925 = vrot.slane %v4903, 1
      %v4926 = vrot.slane %v4904, 1
      %v4927 = vsel %vm1386, %v4925, %v4926
      %v4928 = vrot.slane %v4905, 1
      %v4929 = vrot.slane %v4906, 1
      %v4930 = vsel %vm1386, %v4928, %v4929
      %4939 = vst [vmem:[#allocation4 + $0x28] sm:$0xff] %v4909
      %4940 = vst [vmem:[#allocation4 + $0x70] sm:$0xff] %v4912
      %4941 = vst [vmem:[#allocation4 + $0xb8] sm:$0xff] %v4915
      %4942 = vst [vmem:[#allocation4 + $0x100] sm:$0xff] %v4918
      %4943 = vst [vmem:[#allocation4 + $0x148] sm:$0xff] %v4921
      %4944 = vst [vmem:[#allocation4 + $0x190] sm:$0xff] %v4924
      %4945 = vst [vmem:[#allocation4 + $0x1d8] sm:$0xff] %v4927
      %4946 = vst [vmem:[#allocation4 + $0x220] sm:$0xff] %v4930
      %s4947 = scalar_lea.vmem [#allocation3], 24
      %v4948 = vld [vmem:[%s4947] sm:$0xf]
      %v4949 = vld [vmem:[%s4947 + $0x4] sm:$0xf]
      %v4950 = vld [vmem:[%s4947 + $0xc] sm:$0xf]
      %v4951 = vld [vmem:[%s4947 + $0x10] sm:$0xf]
      %v4952 = vld [vmem:[%s4947 + $0x18] sm:$0xf]
      %v4953 = vld [vmem:[%s4947 + $0x1c] sm:$0xf]
      %v4954 = vld [vmem:[%s4947 + $0x24] sm:$0xf]
      %v4955 = vld [vmem:[%s4947 + $0x28] sm:$0xf]
      %v4956 = vld [vmem:[%s4947 + $0x30] sm:$0xf]
      %v4957 = vld [vmem:[%s4947 + $0x34] sm:$0xf]
      %v4958 = vld [vmem:[%s4947 + $0x3c] sm:$0xf]
      %v4959 = vld [vmem:[%s4947 + $0x40] sm:$0xf]
      %v4960 = vld [vmem:[%s4947 + $0x48] sm:$0xf]
      %v4961 = vld [vmem:[%s4947 + $0x4c] sm:$0xf]
      %v4962 = vld [vmem:[%s4947 + $0x54] sm:$0xf]
      %v4963 = vld [vmem:[%s4947 + $0x58] sm:$0xf]
      %v4980 = vunpack.c.l.b16 %v4948
      %v4981 = vunpack.c.l.b16 %v4949
      %v4982 = vunpack.c.l.b16 %v4950
      %v4983 = vunpack.c.l.b16 %v4951
      %v4984 = vunpack.c.l.b16 %v4952
      %v4985 = vunpack.c.l.b16 %v4953
      %v4986 = vunpack.c.l.b16 %v4954
      %v4987 = vunpack.c.l.b16 %v4955
      %v4988 = vunpack.c.l.b16 %v4956
      %v4989 = vunpack.c.l.b16 %v4957
      %v4990 = vunpack.c.l.b16 %v4958
      %v4991 = vunpack.c.l.b16 %v4959
      %v4992 = vunpack.c.l.b16 %v4960
      %v4993 = vunpack.c.l.b16 %v4961
      %v4994 = vunpack.c.l.b16 %v4962
      %v4995 = vunpack.c.l.b16 %v4963
      %v4996 = vpack.c.b16 %v4981, %v4980
      %v4997 = vpack.c.b16 %v4983, %v4982
      %v4998 = vpack.c.b16 %v4985, %v4984
      %v4999 = vpack.c.b16 %v4987, %v4986
      %v5000 = vpack.c.b16 %v4989, %v4988
      %v5001 = vpack.c.b16 %v4991, %v4990
      %v5002 = vpack.c.b16 %v4993, %v4992
      %v5003 = vpack.c.b16 %v4995, %v4994
      %5012 = vst [vmem:[#allocation4 + $0x30] sm:$0xff] %v4996
      %5013 = vst [vmem:[#allocation4 + $0x78] sm:$0xff] %v4997
      %5014 = vst [vmem:[#allocation4 + $0xc0] sm:$0xff] %v4998
      %5015 = vst [vmem:[#allocation4 + $0x108] sm:$0xff] %v4999
      %5016 = vst [vmem:[#allocation4 + $0x150] sm:$0xff] %v5000
      %5017 = vst [vmem:[#allocation4 + $0x198] sm:$0xff] %v5001
      %5018 = vst [vmem:[#allocation4 + $0x1e0] sm:$0xff] %v5002
      %5019 = vst [vmem:[#allocation4 + $0x228] sm:$0xff] %v5003
      %v5020 = vld [vmem:[%s4947] sm:$0xf]
      %v5021 = vld [vmem:[%s4947 + $0x4] sm:$0xf]
      %v5022 = vld [vmem:[%s4947 + $0x8] sm:$0x1]
      %v5023 = vld [vmem:[%s4947 + $0xc] sm:$0xf]
      %v5024 = vld [vmem:[%s4947 + $0x10] sm:$0xf]
      %v5025 = vld [vmem:[%s4947 + $0x14] sm:$0x1]
      %v5026 = vld [vmem:[%s4947 + $0x18] sm:$0xf]
      %v5027 = vld [vmem:[%s4947 + $0x1c] sm:$0xf]
      %v5028 = vld [vmem:[%s4947 + $0x20] sm:$0x1]
      %v5029 = vld [vmem:[%s4947 + $0x24] sm:$0xf]
      %v5030 = vld [vmem:[%s4947 + $0x28] sm:$0xf]
      %v5031 = vld [vmem:[%s4947 + $0x2c] sm:$0x1]
      %v5032 = vld [vmem:[%s4947 + $0x30] sm:$0xf]
      %v5033 = vld [vmem:[%s4947 + $0x34] sm:$0xf]
      %v5034 = vld [vmem:[%s4947 + $0x38] sm:$0x1]
      %v5035 = vld [vmem:[%s4947 + $0x3c] sm:$0xf]
      %v5036 = vld [vmem:[%s4947 + $0x40] sm:$0xf]
      %v5037 = vld [vmem:[%s4947 + $0x44] sm:$0x1]
      %v5038 = vld [vmem:[%s4947 + $0x48] sm:$0xf]
      %v5039 = vld [vmem:[%s4947 + $0x4c] sm:$0xf]
      %v5040 = vld [vmem:[%s4947 + $0x50] sm:$0x1]
      %v5041 = vld [vmem:[%s4947 + $0x54] sm:$0xf]
      %v5042 = vld [vmem:[%s4947 + $0x58] sm:$0xf]
      %v5043 = vld [vmem:[%s4947 + $0x5c] sm:$0x1]
      %v5068 = vunpack.c.l.b16 %v5020
      %v5069 = vunpack.c.l.b16 %v5021
      %v5070 = vunpack.c.l.b16 %v5022
      %v5071 = vunpack.c.l.b16 %v5023
      %v5072 = vunpack.c.l.b16 %v5024
      %v5073 = vunpack.c.l.b16 %v5025
      %v5074 = vunpack.c.l.b16 %v5026
      %v5075 = vunpack.c.l.b16 %v5027
      %v5076 = vunpack.c.l.b16 %v5028
      %v5077 = vunpack.c.l.b16 %v5029
      %v5078 = vunpack.c.l.b16 %v5030
      %v5079 = vunpack.c.l.b16 %v5031
      %v5080 = vunpack.c.l.b16 %v5032
      %v5081 = vunpack.c.l.b16 %v5033
      %v5082 = vunpack.c.l.b16 %v5034
      %v5083 = vunpack.c.l.b16 %v5035
      %v5084 = vunpack.c.l.b16 %v5036
      %v5085 = vunpack.c.l.b16 %v5037
      %v5086 = vunpack.c.l.b16 %v5038
      %v5087 = vunpack.c.l.b16 %v5039
      %v5088 = vunpack.c.l.b16 %v5040
      %v5089 = vunpack.c.l.b16 %v5041
      %v5090 = vunpack.c.l.b16 %v5042
      %v5091 = vunpack.c.l.b16 %v5043
      %v5092 = vpack.c.b16 %v5069, %v5068
      %v5093 = vpack.c.b16 %v5070, %v5070
      %v5094 = vpack.c.b16 %v5072, %v5071
      %v5095 = vpack.c.b16 %v5073, %v5073
      %v5096 = vpack.c.b16 %v5075, %v5074
      %v5097 = vpack.c.b16 %v5076, %v5076
      %v5098 = vpack.c.b16 %v5078, %v5077
      %v5099 = vpack.c.b16 %v5079, %v5079
      %v5100 = vpack.c.b16 %v5081, %v5080
      %v5101 = vpack.c.b16 %v5082, %v5082
      %v5102 = vpack.c.b16 %v5084, %v5083
      %v5103 = vpack.c.b16 %v5085, %v5085
      %v5104 = vpack.c.b16 %v5087, %v5086
      %v5105 = vpack.c.b16 %v5088, %v5088
      %v5106 = vpack.c.b16 %v5090, %v5089
      %v5107 = vpack.c.b16 %v5091, %v5091
      %v5109 = vshrl.u32 %v5092, 16
      %v5111 = vshll.u32 %v5092, 16
      %v5113 = vrot.slane %v5111, 1
      %v5114 = vor.u32 %v5109, %v5113
      %v5116 = vshll.u32 %v5093, 16
      %v5118 = vrot.slane %v5116, 1
      %v5119 = vsel %vm1135, %v5114, %v5118
      %v5121 = vshrl.u32 %v5094, 16
      %v5123 = vshll.u32 %v5094, 16
      %v5125 = vrot.slane %v5123, 1
      %v5126 = vor.u32 %v5121, %v5125
      %v5128 = vshll.u32 %v5095, 16
      %v5130 = vrot.slane %v5128, 1
      %v5131 = vsel %vm1135, %v5126, %v5130
      %v5133 = vshrl.u32 %v5096, 16
      %v5135 = vshll.u32 %v5096, 16
      %v5137 = vrot.slane %v5135, 1
      %v5138 = vor.u32 %v5133, %v5137
      %v5140 = vshll.u32 %v5097, 16
      %v5142 = vrot.slane %v5140, 1
      %v5143 = vsel %vm1135, %v5138, %v5142
      %v5145 = vshrl.u32 %v5098, 16
      %v5147 = vshll.u32 %v5098, 16
      %v5149 = vrot.slane %v5147, 1
      %v5150 = vor.u32 %v5145, %v5149
      %v5152 = vshll.u32 %v5099, 16
      %v5154 = vrot.slane %v5152, 1
      %v5155 = vsel %vm1135, %v5150, %v5154
      %v5157 = vshrl.u32 %v5100, 16
      %v5159 = vshll.u32 %v5100, 16
      %v5161 = vrot.slane %v5159, 1
      %v5162 = vor.u32 %v5157, %v5161
      %v5164 = vshll.u32 %v5101, 16
      %v5166 = vrot.slane %v5164, 1
      %v5167 = vsel %vm1135, %v5162, %v5166
      %v5169 = vshrl.u32 %v5102, 16
      %v5171 = vshll.u32 %v5102, 16
      %v5173 = vrot.slane %v5171, 1
      %v5174 = vor.u32 %v5169, %v5173
      %v5176 = vshll.u32 %v5103, 16
      %v5178 = vrot.slane %v5176, 1
      %v5179 = vsel %vm1135, %v5174, %v5178
      %v5181 = vshrl.u32 %v5104, 16
      %v5183 = vshll.u32 %v5104, 16
      %v5185 = vrot.slane %v5183, 1
      %v5186 = vor.u32 %v5181, %v5185
      %v5188 = vshll.u32 %v5105, 16
      %v5190 = vrot.slane %v5188, 1
      %v5191 = vsel %vm1135, %v5186, %v5190
      %v5193 = vshrl.u32 %v5106, 16
      %v5195 = vshll.u32 %v5106, 16
      %v5197 = vrot.slane %v5195, 1
      %v5198 = vor.u32 %v5193, %v5197
      %v5200 = vshll.u32 %v5107, 16
      %v5202 = vrot.slane %v5200, 1
      %v5203 = vsel %vm1135, %v5198, %v5202
      %5212 = vst [vmem:[#allocation4 + $0x38] sm:$0xff] %v5119
      %5213 = vst [vmem:[#allocation4 + $0x80] sm:$0xff] %v5131
      %5214 = vst [vmem:[#allocation4 + $0xc8] sm:$0xff] %v5143
      %5215 = vst [vmem:[#allocation4 + $0x110] sm:$0xff] %v5155
      %5216 = vst [vmem:[#allocation4 + $0x158] sm:$0xff] %v5167
      %5217 = vst [vmem:[#allocation4 + $0x1a0] sm:$0xff] %v5179
      %5218 = vst [vmem:[#allocation4 + $0x1e8] sm:$0xff] %v5191
      %5219 = vst [vmem:[#allocation4 + $0x230] sm:$0xff] %v5203
      %v5220 = vld [vmem:[%s4947] sm:$0xe]
      %v5221 = vld [vmem:[%s4947 + $0x4] sm:$0xf]
      %v5222 = vld [vmem:[%s4947 + $0x8] sm:$0x1]
      %v5223 = vld [vmem:[%s4947 + $0xc] sm:$0xe]
      %v5224 = vld [vmem:[%s4947 + $0x10] sm:$0xf]
      %v5225 = vld [vmem:[%s4947 + $0x14] sm:$0x1]
      %v5226 = vld [vmem:[%s4947 + $0x18] sm:$0xe]
      %v5227 = vld [vmem:[%s4947 + $0x1c] sm:$0xf]
      %v5228 = vld [vmem:[%s4947 + $0x20] sm:$0x1]
      %v5229 = vld [vmem:[%s4947 + $0x24] sm:$0xe]
      %v5230 = vld [vmem:[%s4947 + $0x28] sm:$0xf]
      %v5231 = vld [vmem:[%s4947 + $0x2c] sm:$0x1]
      %v5232 = vld [vmem:[%s4947 + $0x30] sm:$0xe]
      %v5233 = vld [vmem:[%s4947 + $0x34] sm:$0xf]
      %v5234 = vld [vmem:[%s4947 + $0x38] sm:$0x1]
      %v5235 = vld [vmem:[%s4947 + $0x3c] sm:$0xe]
      %v5236 = vld [vmem:[%s4947 + $0x40] sm:$0xf]
      %v5237 = vld [vmem:[%s4947 + $0x44] sm:$0x1]
      %v5238 = vld [vmem:[%s4947 + $0x48] sm:$0xe]
      %v5239 = vld [vmem:[%s4947 + $0x4c] sm:$0xf]
      %v5240 = vld [vmem:[%s4947 + $0x50] sm:$0x1]
      %v5241 = vld [vmem:[%s4947 + $0x54] sm:$0xe]
      %v5242 = vld [vmem:[%s4947 + $0x58] sm:$0xf]
      %v5243 = vld [vmem:[%s4947 + $0x5c] sm:$0x1]
      %v5268 = vunpack.c.l.b16 %v5220
      %v5269 = vunpack.c.l.b16 %v5221
      %v5270 = vunpack.c.l.b16 %v5222
      %v5271 = vunpack.c.l.b16 %v5223
      %v5272 = vunpack.c.l.b16 %v5224
      %v5273 = vunpack.c.l.b16 %v5225
      %v5274 = vunpack.c.l.b16 %v5226
      %v5275 = vunpack.c.l.b16 %v5227
      %v5276 = vunpack.c.l.b16 %v5228
      %v5277 = vunpack.c.l.b16 %v5229
      %v5278 = vunpack.c.l.b16 %v5230
      %v5279 = vunpack.c.l.b16 %v5231
      %v5280 = vunpack.c.l.b16 %v5232
      %v5281 = vunpack.c.l.b16 %v5233
      %v5282 = vunpack.c.l.b16 %v5234
      %v5283 = vunpack.c.l.b16 %v5235
      %v5284 = vunpack.c.l.b16 %v5236
      %v5285 = vunpack.c.l.b16 %v5237
      %v5286 = vunpack.c.l.b16 %v5238
      %v5287 = vunpack.c.l.b16 %v5239
      %v5288 = vunpack.c.l.b16 %v5240
      %v5289 = vunpack.c.l.b16 %v5241
      %v5290 = vunpack.c.l.b16 %v5242
      %v5291 = vunpack.c.l.b16 %v5243
      %v5292 = vpack.c.b16 %v5269, %v5268
      %v5293 = vpack.c.b16 %v5270, %v5270
      %v5294 = vpack.c.b16 %v5272, %v5271
      %v5295 = vpack.c.b16 %v5273, %v5273
      %v5296 = vpack.c.b16 %v5275, %v5274
      %v5297 = vpack.c.b16 %v5276, %v5276
      %v5298 = vpack.c.b16 %v5278, %v5277
      %v5299 = vpack.c.b16 %v5279, %v5279
      %v5300 = vpack.c.b16 %v5281, %v5280
      %v5301 = vpack.c.b16 %v5282, %v5282
      %v5302 = vpack.c.b16 %v5284, %v5283
      %v5303 = vpack.c.b16 %v5285, %v5285
      %v5304 = vpack.c.b16 %v5287, %v5286
      %v5305 = vpack.c.b16 %v5288, %v5288
      %v5306 = vpack.c.b16 %v5290, %v5289
      %v5307 = vpack.c.b16 %v5291, %v5291
      %v5308 = vrot.slane %v5292, 1
      %v5309 = vrot.slane %v5293, 1
      %v5310 = vsel %vm1386, %v5308, %v5309
      %v5311 = vrot.slane %v5294, 1
      %v5312 = vrot.slane %v5295, 1
      %v5313 = vsel %vm1386, %v5311, %v5312
      %v5314 = vrot.slane %v5296, 1
      %v5315 = vrot.slane %v5297, 1
      %v5316 = vsel %vm1386, %v5314, %v5315
      %v5317 = vrot.slane %v5298, 1
      %v5318 = vrot.slane %v5299, 1
      %v5319 = vsel %vm1386, %v5317, %v5318
      %v5320 = vrot.slane %v5300, 1
      %v5321 = vrot.slane %v5301, 1
      %v5322 = vsel %vm1386, %v5320, %v5321
      %v5323 = vrot.slane %v5302, 1
      %v5324 = vrot.slane %v5303, 1
      %v5325 = vsel %vm1386, %v5323, %v5324
      %v5326 = vrot.slane %v5304, 1
      %v5327 = vrot.slane %v5305, 1
      %v5328 = vsel %vm1386, %v5326, %v5327
      %v5329 = vrot.slane %v5306, 1
      %v5330 = vrot.slane %v5307, 1
      %v5331 = vsel %vm1386, %v5329, %v5330
      %5340 = vst [vmem:[#allocation4 + $0x40] sm:$0xff] %v5310
      %5341 = vst [vmem:[#allocation4 + $0x88] sm:$0xff] %v5313
      %5342 = vst [vmem:[#allocation4 + $0xd0] sm:$0xff] %v5316
      %5343 = vst [vmem:[#allocation4 + $0x118] sm:$0xff] %v5319
      %5344 = vst [vmem:[#allocation4 + $0x160] sm:$0xff] %v5322
      %5345 = vst [vmem:[#allocation4 + $0x1a8] sm:$0xff] %v5325
      %5346 = vst [vmem:[#allocation4 + $0x1f0] sm:$0xff] %v5328
      %5347 = vst [vmem:[#allocation4 + $0x238] sm:$0xff] %v5331
      %v5348 = vld [vmem:[#allocation4] sm:$0xff]
      %v5349 = vld [vmem:[#allocation4 + $0x8] sm:$0xff]
      %v5350 = vld [vmem:[#allocation4 + $0x10] sm:$0xff]
      %v5351 = vld [vmem:[#allocation4 + $0x18] sm:$0xff]
      %v5352 = vld [vmem:[#allocation4 + $0x20] sm:$0xff]
      %v5353 = vld [vmem:[#allocation4 + $0x28] sm:$0xff]
      %v5354 = vld [vmem:[#allocation4 + $0x30] sm:$0xff]
      %v5355 = vld [vmem:[#allocation4 + $0x38] sm:$0xff]
      %v5356 = vld [vmem:[#allocation4 + $0x40] sm:$0xff]
      %v5357 = vld [vmem:[#allocation4 + $0x48] sm:$0xff]
      %v5358 = vld [vmem:[#allocation4 + $0x50] sm:$0xff]
      %v5359 = vld [vmem:[#allocation4 + $0x58] sm:$0xff]
      %v5360 = vld [vmem:[#allocation4 + $0x60] sm:$0xff]
      %v5361 = vld [vmem:[#allocation4 + $0x68] sm:$0xff]
      %v5362 = vld [vmem:[#allocation4 + $0x70] sm:$0xff]
      %v5363 = vld [vmem:[#allocation4 + $0x78] sm:$0xff]
      %v5364 = vld [vmem:[#allocation4 + $0x80] sm:$0xff]
      %v5365 = vld [vmem:[#allocation4 + $0x88] sm:$0xff]
      %v5366 = vld [vmem:[#allocation4 + $0x90] sm:$0xff]
      %v5367 = vld [vmem:[#allocation4 + $0x98] sm:$0xff]
      %v5368 = vld [vmem:[#allocation4 + $0xa0] sm:$0xff]
      %v5369 = vld [vmem:[#allocation4 + $0xa8] sm:$0xff]
      %v5370 = vld [vmem:[#allocation4 + $0xb0] sm:$0xff]
      %v5371 = vld [vmem:[#allocation4 + $0xb8] sm:$0xff]
      %v5372 = vld [vmem:[#allocation4 + $0xc0] sm:$0xff]
      %v5373 = vld [vmem:[#allocation4 + $0xc8] sm:$0xff]
      %v5374 = vld [vmem:[#allocation4 + $0xd0] sm:$0xff]
      %v5375 = vld [vmem:[#allocation4 + $0xd8] sm:$0xff]
      %v5376 = vld [vmem:[#allocation4 + $0xe0] sm:$0xff]
      %v5377 = vld [vmem:[#allocation4 + $0xe8] sm:$0xff]
      %v5378 = vld [vmem:[#allocation4 + $0xf0] sm:$0xff]
      %v5379 = vld [vmem:[#allocation4 + $0xf8] sm:$0xff]
      %v5380 = vld [vmem:[#allocation4 + $0x100] sm:$0xff]
      %v5381 = vld [vmem:[#allocation4 + $0x108] sm:$0xff]
      %v5382 = vld [vmem:[#allocation4 + $0x110] sm:$0xff]
      %v5383 = vld [vmem:[#allocation4 + $0x118] sm:$0xff]
      %v5384 = vld [vmem:[#allocation4 + $0x120] sm:$0xff]
      %v5385 = vld [vmem:[#allocation4 + $0x128] sm:$0xff]
      %v5386 = vld [vmem:[#allocation4 + $0x130] sm:$0xff]
      %v5387 = vld [vmem:[#allocation4 + $0x138] sm:$0xff]
      %v5388 = vld [vmem:[#allocation4 + $0x140] sm:$0xff]
      %v5389 = vld [vmem:[#allocation4 + $0x148] sm:$0xff]
      %v5390 = vld [vmem:[#allocation4 + $0x150] sm:$0xff]
      %v5391 = vld [vmem:[#allocation4 + $0x158] sm:$0xff]
      %v5392 = vld [vmem:[#allocation4 + $0x160] sm:$0xff]
      %v5393 = vld [vmem:[#allocation4 + $0x168] sm:$0xff]
      %v5394 = vld [vmem:[#allocation4 + $0x170] sm:$0xff]
      %v5395 = vld [vmem:[#allocation4 + $0x178] sm:$0xff]
      %v5396 = vld [vmem:[#allocation4 + $0x180] sm:$0xff]
      %v5397 = vld [vmem:[#allocation4 + $0x188] sm:$0xff]
      %v5398 = vld [vmem:[#allocation4 + $0x190] sm:$0xff]
      %v5399 = vld [vmem:[#allocation4 + $0x198] sm:$0xff]
      %v5400 = vld [vmem:[#allocation4 + $0x1a0] sm:$0xff]
      %v5401 = vld [vmem:[#allocation4 + $0x1a8] sm:$0xff]
      %v5402 = vld [vmem:[#allocation4 + $0x1b0] sm:$0xff]
      %v5403 = vld [vmem:[#allocation4 + $0x1b8] sm:$0xff]
      %v5404 = vld [vmem:[#allocation4 + $0x1c0] sm:$0xff]
      %v5405 = vld [vmem:[#allocation4 + $0x1c8] sm:$0xff]
      %v5406 = vld [vmem:[#allocation4 + $0x1d0] sm:$0xff]
      %v5407 = vld [vmem:[#allocation4 + $0x1d8] sm:$0xff]
      %v5408 = vld [vmem:[#allocation4 + $0x1e0] sm:$0xff]
      %v5409 = vld [vmem:[#allocation4 + $0x1e8] sm:$0xff]
      %v5410 = vld [vmem:[#allocation4 + $0x1f0] sm:$0xff]
      %v5411 = vld [vmem:[#allocation4 + $0x1f8] sm:$0xff]
      %v5412 = vld [vmem:[#allocation4 + $0x200] sm:$0xff]
      %v5413 = vld [vmem:[#allocation4 + $0x208] sm:$0xff]
      %v5414 = vld [vmem:[#allocation4 + $0x210] sm:$0xff]
      %v5415 = vld [vmem:[#allocation4 + $0x218] sm:$0xff]
      %v5416 = vld [vmem:[#allocation4 + $0x220] sm:$0xff]
      %v5417 = vld [vmem:[#allocation4 + $0x228] sm:$0xff]
      %v5418 = vld [vmem:[#allocation4 + $0x230] sm:$0xff]
      %v5419 = vld [vmem:[#allocation4 + $0x238] sm:$0xff]
      %v5420 = vld [vmem:[%s2] sm:$0xf]
      %v5421 = vld [vmem:[%s2 + $0x4] sm:$0xf]
      %v5422 = vld [vmem:[%s2 + $0x8] sm:$0xf]
      %v5423 = vld [vmem:[%s2 + $0xc] sm:$0xf]
      %v5424 = vld [vmem:[%s2 + $0x10] sm:$0xf]
      %v5425 = vld [vmem:[%s2 + $0x14] sm:$0xf]
      %v5426 = vld [vmem:[%s2 + $0x18] sm:$0xf]
      %v5427 = vld [vmem:[%s2 + $0x1c] sm:$0xf]
      %v5428 = vld [vmem:[%s2 + $0x20] sm:$0xf]
      %v5429 = vld [vmem:[%s2 + $0x24] sm:$0xf]
      %v5430 = vld [vmem:[%s2 + $0x28] sm:$0xf]
      %v5431 = vld [vmem:[%s2 + $0x2c] sm:$0xf]
      %v5432 = vld [vmem:[%s2 + $0x30] sm:$0xf]
      %v5433 = vld [vmem:[%s2 + $0x34] sm:$0xf]
      %v5434 = vld [vmem:[%s2 + $0x38] sm:$0xf]
      %v5435 = vld [vmem:[%s2 + $0x3c] sm:$0xf]
      %v5436 = vld [vmem:[%s2 + $0x40] sm:$0xf]
      %v5437 = vld [vmem:[%s2 + $0x44] sm:$0xf]
      %v5438 = vld [vmem:[%s2 + $0x48] sm:$0xf]
      %v5439 = vld [vmem:[%s2 + $0x4c] sm:$0xf]
      %v5440 = vld [vmem:[%s2 + $0x50] sm:$0xf]
      %v5441 = vld [vmem:[%s2 + $0x54] sm:$0xf]
      %v5442 = vld [vmem:[%s2 + $0x58] sm:$0xf]
      %v5443 = vld [vmem:[%s2 + $0x5c] sm:$0xf]
      %v5444 = vld [vmem:[%s2 + $0x60] sm:$0xf]
      %v5445 = vld [vmem:[%s2 + $0x64] sm:$0xf]
      %v5446 = vld [vmem:[%s2 + $0x68] sm:$0xf]
      %v5447 = vld [vmem:[%s2 + $0x6c] sm:$0xf]
      %v5448 = vld [vmem:[%s2 + $0x70] sm:$0xf]
      %v5449 = vld [vmem:[%s2 + $0x74] sm:$0xf]
      %v5450 = vld [vmem:[%s2 + $0x78] sm:$0xf]
      %v5451 = vld [vmem:[%s2 + $0x7c] sm:$0xf]
      %v5452 = vld [vmem:[%s2 + $0x80] sm:$0xf]
      %v5453 = vld [vmem:[%s2 + $0x84] sm:$0xf]
      %v5454 = vld [vmem:[%s2 + $0x88] sm:$0xf]
      %v5455 = vld [vmem:[%s2 + $0x8c] sm:$0xf]
      %v5456 = vld [vmem:[%s2 + $0x90] sm:$0xf]
      %v5457 = vld [vmem:[%s2 + $0x94] sm:$0xf]
      %v5458 = vld [vmem:[%s2 + $0x98] sm:$0xf]
      %v5459 = vld [vmem:[%s2 + $0x9c] sm:$0xf]
      %v5460 = vld [vmem:[%s2 + $0xa0] sm:$0xf]
      %v5461 = vld [vmem:[%s2 + $0xa4] sm:$0xf]
      %v5462 = vld [vmem:[%s2 + $0xa8] sm:$0xf]
      %v5463 = vld [vmem:[%s2 + $0xac] sm:$0xf]
      %v5464 = vld [vmem:[%s2 + $0xb0] sm:$0xf]
      %v5465 = vld [vmem:[%s2 + $0xb4] sm:$0xf]
      %v5466 = vld [vmem:[%s2 + $0xb8] sm:$0xf]
      %v5467 = vld [vmem:[%s2 + $0xbc] sm:$0xf]
      %v5468 = vld [vmem:[%s2 + $0xc0] sm:$0xf]
      %v5469 = vld [vmem:[%s2 + $0xc4] sm:$0xf]
      %v5470 = vld [vmem:[%s2 + $0xc8] sm:$0xf]
      %v5471 = vld [vmem:[%s2 + $0xcc] sm:$0xf]
      %v5472 = vld [vmem:[%s2 + $0xd0] sm:$0xf]
      %v5473 = vld [vmem:[%s2 + $0xd4] sm:$0xf]
      %v5474 = vld [vmem:[%s2 + $0xd8] sm:$0xf]
      %v5475 = vld [vmem:[%s2 + $0xdc] sm:$0xf]
      %v5476 = vld [vmem:[%s2 + $0xe0] sm:$0xf]
      %v5477 = vld [vmem:[%s2 + $0xe4] sm:$0xf]
      %v5478 = vld [vmem:[%s2 + $0xe8] sm:$0xf]
      %v5479 = vld [vmem:[%s2 + $0xec] sm:$0xf]
      %v5480 = vld [vmem:[%s2 + $0xf0] sm:$0xf]
      %v5481 = vld [vmem:[%s2 + $0xf4] sm:$0xf]
      %v5482 = vld [vmem:[%s2 + $0xf8] sm:$0xf]
      %v5483 = vld [vmem:[%s2 + $0xfc] sm:$0xf]
      %v5484 = vld [vmem:[%s2 + $0x100] sm:$0xf]
      %v5485 = vld [vmem:[%s2 + $0x104] sm:$0xf]
      %v5486 = vld [vmem:[%s2 + $0x108] sm:$0xf]
      %v5487 = vld [vmem:[%s2 + $0x10c] sm:$0xf]
      %v5488 = vld [vmem:[%s2 + $0x110] sm:$0xf]
      %v5489 = vld [vmem:[%s2 + $0x114] sm:$0xf]
      %v5490 = vld [vmem:[%s2 + $0x118] sm:$0xf]
      %v5491 = vld [vmem:[%s2 + $0x11c] sm:$0xf]
      %v5492 = vld [vmem:[%s2 + $0x120] sm:$0xf]
      %v5493 = vld [vmem:[%s2 + $0x124] sm:$0xf]
      %v5494 = vld [vmem:[%s2 + $0x128] sm:$0xf]
      %v5495 = vld [vmem:[%s2 + $0x12c] sm:$0xf]
      %v5496 = vld [vmem:[%s2 + $0x130] sm:$0xf]
      %v5497 = vld [vmem:[%s2 + $0x134] sm:$0xf]
      %v5498 = vld [vmem:[%s2 + $0x138] sm:$0xf]
      %v5499 = vld [vmem:[%s2 + $0x13c] sm:$0xf]
      %v5500 = vld [vmem:[%s2 + $0x140] sm:$0xf]
      %v5501 = vld [vmem:[%s2 + $0x144] sm:$0xf]
      %v5502 = vld [vmem:[%s2 + $0x148] sm:$0xf]
      %v5503 = vld [vmem:[%s2 + $0x14c] sm:$0xf]
      %v5504 = vld [vmem:[%s2 + $0x150] sm:$0xf]
      %v5505 = vld [vmem:[%s2 + $0x154] sm:$0xf]
      %v5506 = vld [vmem:[%s2 + $0x158] sm:$0xf]
      %v5507 = vld [vmem:[%s2 + $0x15c] sm:$0xf]
      %v5508 = vld [vmem:[%s2 + $0x160] sm:$0xf]
      %v5509 = vld [vmem:[%s2 + $0x164] sm:$0xf]
      %v5510 = vld [vmem:[%s2 + $0x168] sm:$0xf]
      %v5511 = vld [vmem:[%s2 + $0x16c] sm:$0xf]
      %v5512 = vld [vmem:[%s2 + $0x170] sm:$0xf]
      %v5513 = vld [vmem:[%s2 + $0x174] sm:$0xf]
      %v5514 = vld [vmem:[%s2 + $0x178] sm:$0xf]
      %v5515 = vld [vmem:[%s2 + $0x17c] sm:$0xf]
      %v5516 = vld [vmem:[%s2 + $0x180] sm:$0xf]
      %v5517 = vld [vmem:[%s2 + $0x184] sm:$0xf]
      %v5518 = vld [vmem:[%s2 + $0x188] sm:$0xf]
      %v5519 = vld [vmem:[%s2 + $0x18c] sm:$0xf]
      %v5520 = vld [vmem:[%s2 + $0x190] sm:$0xf]
      %v5521 = vld [vmem:[%s2 + $0x194] sm:$0xf]
      %v5522 = vld [vmem:[%s2 + $0x198] sm:$0xf]
      %v5523 = vld [vmem:[%s2 + $0x19c] sm:$0xf]
      %v5524 = vld [vmem:[%s2 + $0x1a0] sm:$0xf]
      %v5525 = vld [vmem:[%s2 + $0x1a4] sm:$0xf]
      %v5526 = vld [vmem:[%s2 + $0x1a8] sm:$0xf]
      %v5527 = vld [vmem:[%s2 + $0x1ac] sm:$0xf]
      %v5528 = vld [vmem:[%s2 + $0x1b0] sm:$0xf]
      %v5529 = vld [vmem:[%s2 + $0x1b4] sm:$0xf]
      %v5530 = vld [vmem:[%s2 + $0x1b8] sm:$0xf]
      %v5531 = vld [vmem:[%s2 + $0x1bc] sm:$0xf]
      %v5532 = vld [vmem:[%s2 + $0x1c0] sm:$0xf]
      %v5533 = vld [vmem:[%s2 + $0x1c4] sm:$0xf]
      %v5534 = vld [vmem:[%s2 + $0x1c8] sm:$0xf]
      %v5535 = vld [vmem:[%s2 + $0x1cc] sm:$0xf]
      %v5536 = vld [vmem:[%s2 + $0x1d0] sm:$0xf]
      %v5537 = vld [vmem:[%s2 + $0x1d4] sm:$0xf]
      %v5538 = vld [vmem:[%s2 + $0x1d8] sm:$0xf]
      %v5539 = vld [vmem:[%s2 + $0x1dc] sm:$0xf]
      %v5540 = vld [vmem:[%s2 + $0x1e0] sm:$0xf]
      %v5541 = vld [vmem:[%s2 + $0x1e4] sm:$0xf]
      %v5542 = vld [vmem:[%s2 + $0x1e8] sm:$0xf]
      %v5543 = vld [vmem:[%s2 + $0x1ec] sm:$0xf]
      %v5544 = vld [vmem:[%s2 + $0x1f0] sm:$0xf]
      %v5545 = vld [vmem:[%s2 + $0x1f4] sm:$0xf]
      %v5546 = vld [vmem:[%s2 + $0x1f8] sm:$0xf]
      %v5547 = vld [vmem:[%s2 + $0x1fc] sm:$0xf]
      %v5548 = vld [vmem:[%s2 + $0x200] sm:$0xf]
      %v5549 = vld [vmem:[%s2 + $0x204] sm:$0xf]
      %v5550 = vld [vmem:[%s2 + $0x208] sm:$0xf]
      %v5551 = vld [vmem:[%s2 + $0x20c] sm:$0xf]
      %v5552 = vld [vmem:[%s2 + $0x210] sm:$0xf]
      %v5553 = vld [vmem:[%s2 + $0x214] sm:$0xf]
      %v5554 = vld [vmem:[%s2 + $0x218] sm:$0xf]
      %v5555 = vld [vmem:[%s2 + $0x21c] sm:$0xf]
      %v5556 = vld [vmem:[%s2 + $0x220] sm:$0xf]
      %v5557 = vld [vmem:[%s2 + $0x224] sm:$0xf]
      %v5558 = vld [vmem:[%s2 + $0x228] sm:$0xf]
      %v5559 = vld [vmem:[%s2 + $0x22c] sm:$0xf]
      %v5560 = vld [vmem:[%s2 + $0x230] sm:$0xf]
      %v5561 = vld [vmem:[%s2 + $0x234] sm:$0xf]
      %v5562 = vld [vmem:[%s2 + $0x238] sm:$0xf]
      %v5563 = vld [vmem:[%s2 + $0x23c] sm:$0xf]
      %v5708 = vunpack.c.l.b16 %v5420
      %v5709 = vunpack.c.l.b16 %v5421
      %v5710 = vunpack.c.l.b16 %v5422
      %v5711 = vunpack.c.l.b16 %v5423
      %v5712 = vunpack.c.l.b16 %v5424
      %v5713 = vunpack.c.l.b16 %v5425
      %v5714 = vunpack.c.l.b16 %v5426
      %v5715 = vunpack.c.l.b16 %v5427
      %v5716 = vunpack.c.l.b16 %v5428
      %v5717 = vunpack.c.l.b16 %v5429
      %v5718 = vunpack.c.l.b16 %v5430
      %v5719 = vunpack.c.l.b16 %v5431
      %v5720 = vunpack.c.l.b16 %v5432
      %v5721 = vunpack.c.l.b16 %v5433
      %v5722 = vunpack.c.l.b16 %v5434
      %v5723 = vunpack.c.l.b16 %v5435
      %v5724 = vunpack.c.l.b16 %v5436
      %v5725 = vunpack.c.l.b16 %v5437
      %v5726 = vunpack.c.l.b16 %v5438
      %v5727 = vunpack.c.l.b16 %v5439
      %v5728 = vunpack.c.l.b16 %v5440
      %v5729 = vunpack.c.l.b16 %v5441
      %v5730 = vunpack.c.l.b16 %v5442
      %v5731 = vunpack.c.l.b16 %v5443
      %v5732 = vunpack.c.l.b16 %v5444
      %v5733 = vunpack.c.l.b16 %v5445
      %v5734 = vunpack.c.l.b16 %v5446
      %v5735 = vunpack.c.l.b16 %v5447
      %v5736 = vunpack.c.l.b16 %v5448
      %v5737 = vunpack.c.l.b16 %v5449
      %v5738 = vunpack.c.l.b16 %v5450
      %v5739 = vunpack.c.l.b16 %v5451
      %v5740 = vunpack.c.l.b16 %v5452
      %v5741 = vunpack.c.l.b16 %v5453
      %v5742 = vunpack.c.l.b16 %v5454
      %v5743 = vunpack.c.l.b16 %v5455
      %v5744 = vunpack.c.l.b16 %v5456
      %v5745 = vunpack.c.l.b16 %v5457
      %v5746 = vunpack.c.l.b16 %v5458
      %v5747 = vunpack.c.l.b16 %v5459
      %v5748 = vunpack.c.l.b16 %v5460
      %v5749 = vunpack.c.l.b16 %v5461
      %v5750 = vunpack.c.l.b16 %v5462
      %v5751 = vunpack.c.l.b16 %v5463
      %v5752 = vunpack.c.l.b16 %v5464
      %v5753 = vunpack.c.l.b16 %v5465
      %v5754 = vunpack.c.l.b16 %v5466
      %v5755 = vunpack.c.l.b16 %v5467
      %v5756 = vunpack.c.l.b16 %v5468
      %v5757 = vunpack.c.l.b16 %v5469
      %v5758 = vunpack.c.l.b16 %v5470
      %v5759 = vunpack.c.l.b16 %v5471
      %v5760 = vunpack.c.l.b16 %v5472
      %v5761 = vunpack.c.l.b16 %v5473
      %v5762 = vunpack.c.l.b16 %v5474
      %v5763 = vunpack.c.l.b16 %v5475
      %v5764 = vunpack.c.l.b16 %v5476
      %v5765 = vunpack.c.l.b16 %v5477
      %v5766 = vunpack.c.l.b16 %v5478
      %v5767 = vunpack.c.l.b16 %v5479
      %v5768 = vunpack.c.l.b16 %v5480
      %v5769 = vunpack.c.l.b16 %v5481
      %v5770 = vunpack.c.l.b16 %v5482
      %v5771 = vunpack.c.l.b16 %v5483
      %v5772 = vunpack.c.l.b16 %v5484
      %v5773 = vunpack.c.l.b16 %v5485
      %v5774 = vunpack.c.l.b16 %v5486
      %v5775 = vunpack.c.l.b16 %v5487
      %v5776 = vunpack.c.l.b16 %v5488
      %v5777 = vunpack.c.l.b16 %v5489
      %v5778 = vunpack.c.l.b16 %v5490
      %v5779 = vunpack.c.l.b16 %v5491
      %v5780 = vunpack.c.l.b16 %v5492
      %v5781 = vunpack.c.l.b16 %v5493
      %v5782 = vunpack.c.l.b16 %v5494
      %v5783 = vunpack.c.l.b16 %v5495
      %v5784 = vunpack.c.l.b16 %v5496
      %v5785 = vunpack.c.l.b16 %v5497
      %v5786 = vunpack.c.l.b16 %v5498
      %v5787 = vunpack.c.l.b16 %v5499
      %v5788 = vunpack.c.l.b16 %v5500
      %v5789 = vunpack.c.l.b16 %v5501
      %v5790 = vunpack.c.l.b16 %v5502
      %v5791 = vunpack.c.l.b16 %v5503
      %v5792 = vunpack.c.l.b16 %v5504
      %v5793 = vunpack.c.l.b16 %v5505
      %v5794 = vunpack.c.l.b16 %v5506
      %v5795 = vunpack.c.l.b16 %v5507
      %v5796 = vunpack.c.l.b16 %v5508
      %v5797 = vunpack.c.l.b16 %v5509
      %v5798 = vunpack.c.l.b16 %v5510
      %v5799 = vunpack.c.l.b16 %v5511
      %v5800 = vunpack.c.l.b16 %v5512
      %v5801 = vunpack.c.l.b16 %v5513
      %v5802 = vunpack.c.l.b16 %v5514
      %v5803 = vunpack.c.l.b16 %v5515
      %v5804 = vunpack.c.l.b16 %v5516
      %v5805 = vunpack.c.l.b16 %v5517
      %v5806 = vunpack.c.l.b16 %v5518
      %v5807 = vunpack.c.l.b16 %v5519
      %v5808 = vunpack.c.l.b16 %v5520
      %v5809 = vunpack.c.l.b16 %v5521
      %v5810 = vunpack.c.l.b16 %v5522
      %v5811 = vunpack.c.l.b16 %v5523
      %v5812 = vunpack.c.l.b16 %v5524
      %v5813 = vunpack.c.l.b16 %v5525
      %v5814 = vunpack.c.l.b16 %v5526
      %v5815 = vunpack.c.l.b16 %v5527
      %v5816 = vunpack.c.l.b16 %v5528
      %v5817 = vunpack.c.l.b16 %v5529
      %v5818 = vunpack.c.l.b16 %v5530
      %v5819 = vunpack.c.l.b16 %v5531
      %v5820 = vunpack.c.l.b16 %v5532
      %v5821 = vunpack.c.l.b16 %v5533
      %v5822 = vunpack.c.l.b16 %v5534
      %v5823 = vunpack.c.l.b16 %v5535
      %v5824 = vunpack.c.l.b16 %v5536
      %v5825 = vunpack.c.l.b16 %v5537
      %v5826 = vunpack.c.l.b16 %v5538
      %v5827 = vunpack.c.l.b16 %v5539
      %v5828 = vunpack.c.l.b16 %v5540
      %v5829 = vunpack.c.l.b16 %v5541
      %v5830 = vunpack.c.l.b16 %v5542
      %v5831 = vunpack.c.l.b16 %v5543
      %v5832 = vunpack.c.l.b16 %v5544
      %v5833 = vunpack.c.l.b16 %v5545
      %v5834 = vunpack.c.l.b16 %v5546
      %v5835 = vunpack.c.l.b16 %v5547
      %v5836 = vunpack.c.l.b16 %v5548
      %v5837 = vunpack.c.l.b16 %v5549
      %v5838 = vunpack.c.l.b16 %v5550
      %v5839 = vunpack.c.l.b16 %v5551
      %v5840 = vunpack.c.l.b16 %v5552
      %v5841 = vunpack.c.l.b16 %v5553
      %v5842 = vunpack.c.l.b16 %v5554
      %v5843 = vunpack.c.l.b16 %v5555
      %v5844 = vunpack.c.l.b16 %v5556
      %v5845 = vunpack.c.l.b16 %v5557
      %v5846 = vunpack.c.l.b16 %v5558
      %v5847 = vunpack.c.l.b16 %v5559
      %v5848 = vunpack.c.l.b16 %v5560
      %v5849 = vunpack.c.l.b16 %v5561
      %v5850 = vunpack.c.l.b16 %v5562
      %v5851 = vunpack.c.l.b16 %v5563
      %v5852 = vpack.c.b16 %v5709, %v5708
      %v5853 = vpack.c.b16 %v5711, %v5710
      %v5854 = vpack.c.b16 %v5713, %v5712
      %v5855 = vpack.c.b16 %v5715, %v5714
      %v5856 = vpack.c.b16 %v5717, %v5716
      %v5857 = vpack.c.b16 %v5719, %v5718
      %v5858 = vpack.c.b16 %v5721, %v5720
      %v5859 = vpack.c.b16 %v5723, %v5722
      %v5860 = vpack.c.b16 %v5725, %v5724
      %v5861 = vpack.c.b16 %v5727, %v5726
      %v5862 = vpack.c.b16 %v5729, %v5728
      %v5863 = vpack.c.b16 %v5731, %v5730
      %v5864 = vpack.c.b16 %v5733, %v5732
      %v5865 = vpack.c.b16 %v5735, %v5734
      %v5866 = vpack.c.b16 %v5737, %v5736
      %v5867 = vpack.c.b16 %v5739, %v5738
      %v5868 = vpack.c.b16 %v5741, %v5740
      %v5869 = vpack.c.b16 %v5743, %v5742
      %v5870 = vpack.c.b16 %v5745, %v5744
      %v5871 = vpack.c.b16 %v5747, %v5746
      %v5872 = vpack.c.b16 %v5749, %v5748
      %v5873 = vpack.c.b16 %v5751, %v5750
      %v5874 = vpack.c.b16 %v5753, %v5752
      %v5875 = vpack.c.b16 %v5755, %v5754
      %v5876 = vpack.c.b16 %v5757, %v5756
      %v5877 = vpack.c.b16 %v5759, %v5758
      %v5878 = vpack.c.b16 %v5761, %v5760
      %v5879 = vpack.c.b16 %v5763, %v5762
      %v5880 = vpack.c.b16 %v5765, %v5764
      %v5881 = vpack.c.b16 %v5767, %v5766
      %v5882 = vpack.c.b16 %v5769, %v5768
      %v5883 = vpack.c.b16 %v5771, %v5770
      %v5884 = vpack.c.b16 %v5773, %v5772
      %v5885 = vpack.c.b16 %v5775, %v5774
      %v5886 = vpack.c.b16 %v5777, %v5776
      %v5887 = vpack.c.b16 %v5779, %v5778
      %v5888 = vpack.c.b16 %v5781, %v5780
      %v5889 = vpack.c.b16 %v5783, %v5782
      %v5890 = vpack.c.b16 %v5785, %v5784
      %v5891 = vpack.c.b16 %v5787, %v5786
      %v5892 = vpack.c.b16 %v5789, %v5788
      %v5893 = vpack.c.b16 %v5791, %v5790
      %v5894 = vpack.c.b16 %v5793, %v5792
      %v5895 = vpack.c.b16 %v5795, %v5794
      %v5896 = vpack.c.b16 %v5797, %v5796
      %v5897 = vpack.c.b16 %v5799, %v5798
      %v5898 = vpack.c.b16 %v5801, %v5800
      %v5899 = vpack.c.b16 %v5803, %v5802
      %v5900 = vpack.c.b16 %v5805, %v5804
      %v5901 = vpack.c.b16 %v5807, %v5806
      %v5902 = vpack.c.b16 %v5809, %v5808
      %v5903 = vpack.c.b16 %v5811, %v5810
      %v5904 = vpack.c.b16 %v5813, %v5812
      %v5905 = vpack.c.b16 %v5815, %v5814
      %v5906 = vpack.c.b16 %v5817, %v5816
      %v5907 = vpack.c.b16 %v5819, %v5818
      %v5908 = vpack.c.b16 %v5821, %v5820
      %v5909 = vpack.c.b16 %v5823, %v5822
      %v5910 = vpack.c.b16 %v5825, %v5824
      %v5911 = vpack.c.b16 %v5827, %v5826
      %v5912 = vpack.c.b16 %v5829, %v5828
      %v5913 = vpack.c.b16 %v5831, %v5830
      %v5914 = vpack.c.b16 %v5833, %v5832
      %v5915 = vpack.c.b16 %v5835, %v5834
      %v5916 = vpack.c.b16 %v5837, %v5836
      %v5917 = vpack.c.b16 %v5839, %v5838
      %v5918 = vpack.c.b16 %v5841, %v5840
      %v5919 = vpack.c.b16 %v5843, %v5842
      %v5920 = vpack.c.b16 %v5845, %v5844
      %v5921 = vpack.c.b16 %v5847, %v5846
      %v5922 = vpack.c.b16 %v5849, %v5848
      %v5923 = vpack.c.b16 %v5851, %v5850
      %5996 = vmatprep.subr.bf16.mxu0 0
      %5997 = vmatpush1.bf16.msra.mxu0 %v5852
      %5998 = vmatprep.subr.bf16.mxu0 0
      %5999 = vmatpush1.bf16.msra.mxu0 %v5853
      %6000 = vmatprep.subr.bf16.mxu0 0
      %6001 = vmatpush1.bf16.msra.mxu0 %v5854
      %6002 = vmatprep.subr.bf16.mxu0 0
      %6003 = vmatpush1.bf16.msra.mxu0 %v5855
      %6004 = vmatprep.subr.bf16.mxu0 0
      %6005 = vmatpush1.bf16.msra.mxu0 %v5856
      %6006 = vmatprep.subr.bf16.mxu0 0
      %6007 = vmatpush1.bf16.msra.mxu0 %v5857
      %6008 = vmatprep.subr.bf16.mxu0 0
      %6009 = vmatpush1.bf16.msra.mxu0 %v5858
      %6010 = vmatprep.subr.bf16.mxu0 0
      %6011 = vmatpush1.bf16.msra.mxu0 %v5859
      %6012 = vmatprep.subr.bf16.mxu0 0
      %6013 = vmatpush1.bf16.msra.mxu0 %v5860
      %6014 = vmatprep.subr.bf16.mxu0 0
      %6015 = vmatpush1.bf16.msra.mxu0 %v5861
      %6016 = vmatprep.subr.bf16.mxu0 0
      %6017 = vmatpush1.bf16.msra.mxu0 %v5862
      %6018 = vmatprep.subr.bf16.mxu0 0
      %6019 = vmatpush1.bf16.msra.mxu0 %v5863
      %6020 = vmatprep.subr.bf16.mxu0 0
      %6021 = vmatpush1.bf16.msra.mxu0 %v5864
      %6022 = vmatprep.subr.bf16.mxu0 0
      %6023 = vmatpush1.bf16.msra.mxu0 %v5865
      %6024 = vmatprep.subr.bf16.mxu0 0
      %6025 = vmatpush1.bf16.msra.mxu0 %v5866
      %6026 = vmatprep.subr.bf16.mxu0 0
      %6027 = vmatpush1.bf16.msra.mxu0 %v5867
      %6028 = vmatprep.mubr.bf16.mxu0 %v5349
      %6029 = vmatmul.mubr.bf16.gmra.mrb[0].mxu0 %v5348
      %v6030 = vpop.f32.mrb[0].mxu0
      %v6031 = vadd.f32 0.0, %v6030
      %v6032 = vpop.f32.mrb[0].mxu0
      %v6033 = vpop.f32.mrb[0].mxu0
      %v6034 = vadd.f32 0.0, %v6033
      %v6035 = vpop.f32.mrb[0].mxu0
      %6036 = vmatprep.mubr.bf16.mxu0 %v5358
      %6037 = vmatmul.mubr.bf16.gmra.mrb[0].mxu0 %v5357
      %v6038 = vpop.f32.mrb[0].mxu0
      %v6039 = vadd.f32 0.0, %v6038
      %v6040 = vpop.f32.mrb[0].mxu0
      %v6041 = vpop.f32.mrb[0].mxu0
      %v6042 = vadd.f32 0.0, %v6041
      %v6043 = vpop.f32.mrb[0].mxu0
      %6044 = vmatprep.mubr.bf16.mxu0 %v5367
      %6045 = vmatmul.mubr.bf16.gmra.mrb[0].mxu0 %v5366
      %v6046 = vpop.f32.mrb[0].mxu0
      %v6047 = vadd.f32 0.0, %v6046
      %v6048 = vpop.f32.mrb[0].mxu0
      %v6049 = vpop.f32.mrb[0].mxu0
      %v6050 = vadd.f32 0.0, %v6049
      %v6051 = vpop.f32.mrb[0].mxu0
      %6052 = vmatprep.mubr.bf16.mxu0 %v5376
      %6053 = vmatmul.mubr.bf16.gmra.mrb[0].mxu0 %v5375
      %v6054 = vpop.f32.mrb[0].mxu0
      %v6055 = vadd.f32 0.0, %v6054
      %v6056 = vpop.f32.mrb[0].mxu0
      %v6057 = vpop.f32.mrb[0].mxu0
      %v6058 = vadd.f32 0.0, %v6057
      %v6059 = vpop.f32.mrb[0].mxu0
      %6060 = vmatprep.mubr.bf16.mxu0 %v5385
      %6061 = vmatmul.mubr.bf16.gmra.mrb[0].mxu0 %v5384
      %v6062 = vpop.f32.mrb[0].mxu0
      %v6063 = vadd.f32 0.0, %v6062
      %v6064 = vpop.f32.mrb[0].mxu0
      %v6065 = vpop.f32.mrb[0].mxu0
      %v6066 = vadd.f32 0.0, %v6065
      %v6067 = vpop.f32.mrb[0].mxu0
      %6068 = vmatprep.mubr.bf16.mxu0 %v5394
      %6069 = vmatmul.mubr.bf16.gmra.mrb[0].mxu0 %v5393
      %v6070 = vpop.f32.mrb[0].mxu0
      %v6071 = vadd.f32 0.0, %v6070
      %v6072 = vpop.f32.mrb[0].mxu0
      %v6073 = vpop.f32.mrb[0].mxu0
      %v6074 = vadd.f32 0.0, %v6073
      %v6075 = vpop.f32.mrb[0].mxu0
      %6076 = vmatprep.mubr.bf16.mxu0 %v5403
      %6077 = vmatmul.mubr.bf16.gmra.mrb[0].mxu0 %v5402
      %v6078 = vpop.f32.mrb[0].mxu0
      %v6079 = vadd.f32 0.0, %v6078
      %v6080 = vpop.f32.mrb[0].mxu0
      %v6081 = vpop.f32.mrb[0].mxu0
      %v6082 = vadd.f32 0.0, %v6081
      %v6083 = vpop.f32.mrb[0].mxu0
      %6084 = vmatprep.mubr.bf16.mxu0 %v5412
      %6085 = vmatmul.mubr.bf16.gmra.mrb[0].mxu0 %v5411
      %v6086 = vpop.f32.mrb[0].mxu0
      %v6087 = vadd.f32 0.0, %v6086
      %v6088 = vpop.f32.mrb[0].mxu0
      %v6089 = vpop.f32.mrb[0].mxu0
      %v6090 = vadd.f32 0.0, %v6089
      %v6091 = vpop.f32.mrb[0].mxu0
      %6092 = vdwg.mxu0
      %6093 = vmatprep.subr.bf16.mxu0 0
      %6094 = vmatpush1.bf16.msra.mxu0 %v5868
      %6095 = vmatprep.subr.bf16.mxu0 0
      %6096 = vmatpush1.bf16.msra.mxu0 %v5869
      %6097 = vmatprep.subr.bf16.mxu0 0
      %6098 = vmatpush1.bf16.msra.mxu0 %v5870
      %6099 = vmatprep.subr.bf16.mxu0 0
      %6100 = vmatpush1.bf16.msra.mxu0 %v5871
      %6101 = vmatprep.subr.bf16.mxu0 0
      %6102 = vmatpush1.bf16.msra.mxu0 %v5872
      %6103 = vmatprep.subr.bf16.mxu0 0
      %6104 = vmatpush1.bf16.msra.mxu0 %v5873
      %6105 = vmatprep.subr.bf16.mxu0 0
      %6106 = vmatpush1.bf16.msra.mxu0 %v5874
      %6107 = vmatprep.subr.bf16.mxu0 0
      %6108 = vmatpush1.bf16.msra.mxu0 %v5875
      %6109 = vmatprep.subr.bf16.mxu0 0
      %6110 = vmatpush1.bf16.msra.mxu0 %v5876
      %6111 = vmatprep.subr.bf16.mxu0 0
      %6112 = vmatpush1.bf16.msra.mxu0 %v5877
      %6113 = vmatprep.subr.bf16.mxu0 0
      %6114 = vmatpush1.bf16.msra.mxu0 %v5878
      %6115 = vmatprep.subr.bf16.mxu0 0
      %6116 = vmatpush1.bf16.msra.mxu0 %v5879
      %6117 = vmatprep.subr.bf16.mxu0 0
      %6118 = vmatpush1.bf16.msra.mxu0 %v5880
      %6119 = vmatprep.subr.bf16.mxu0 0
      %6120 = vmatpush1.bf16.msra.mxu0 %v5881
      %6121 = vmatprep.subr.bf16.mxu0 0
      %6122 = vmatpush1.bf16.msra.mxu0 %v5882
      %6123 = vmatprep.subr.bf16.mxu0 0
      %6124 = vmatpush1.bf16.msra.mxu0 %v5883
      %6125 = vmatprep.mubr.bf16.mxu0 %v5351
      %6126 = vmatmul.mubr.bf16.gmra.mrb[0].mxu0 %v5350
      %v6127 = vpop.f32.mrb[0].mxu0
      %v6128 = vadd.f32 %v6031, %v6127
      %v6129 = vpop.f32.mrb[0].mxu0
      %v6130 = vpop.f32.mrb[0].mxu0
      %v6131 = vadd.f32 %v6034, %v6130
      %v6132 = vpop.f32.mrb[0].mxu0
      %6133 = vmatprep.mubr.bf16.mxu0 %v5360
      %6134 = vmatmul.mubr.bf16.gmra.mrb[0].mxu0 %v5359
      %v6135 = vpop.f32.mrb[0].mxu0
      %v6136 = vadd.f32 %v6039, %v6135
      %v6137 = vpop.f32.mrb[0].mxu0
      %v6138 = vpop.f32.mrb[0].mxu0
      %v6139 = vadd.f32 %v6042, %v6138
      %v6140 = vpop.f32.mrb[0].mxu0
      %6141 = vmatprep.mubr.bf16.mxu0 %v5369
      %6142 = vmatmul.mubr.bf16.gmra.mrb[0].mxu0 %v5368
      %v6143 = vpop.f32.mrb[0].mxu0
      %v6144 = vadd.f32 %v6047, %v6143
      %v6145 = vpop.f32.mrb[0].mxu0
      %v6146 = vpop.f32.mrb[0].mxu0
      %v6147 = vadd.f32 %v6050, %v6146
      %v6148 = vpop.f32.mrb[0].mxu0
      %6149 = vmatprep.mubr.bf16.mxu0 %v5378
      %6150 = vmatmul.mubr.bf16.gmra.mrb[0].mxu0 %v5377
      %v6151 = vpop.f32.mrb[0].mxu0
      %v6152 = vadd.f32 %v6055, %v6151
      %v6153 = vpop.f32.mrb[0].mxu0
      %v6154 = vpop.f32.mrb[0].mxu0
      %v6155 = vadd.f32 %v6058, %v6154
      %v6156 = vpop.f32.mrb[0].mxu0
      %6157 = vmatprep.mubr.bf16.mxu0 %v5387
      %6158 = vmatmul.mubr.bf16.gmra.mrb[0].mxu0 %v5386
      %v6159 = vpop.f32.mrb[0].mxu0
      %v6160 = vadd.f32 %v6063, %v6159
      %v6161 = vpop.f32.mrb[0].mxu0
      %v6162 = vpop.f32.mrb[0].mxu0
      %v6163 = vadd.f32 %v6066, %v6162
      %v6164 = vpop.f32.mrb[0].mxu0
      %6165 = vmatprep.mubr.bf16.mxu0 %v5396
      %6166 = vmatmul.mubr.bf16.gmra.mrb[0].mxu0 %v5395
      %v6167 = vpop.f32.mrb[0].mxu0
      %v6168 = vadd.f32 %v6071, %v6167
      %v6169 = vpop.f32.mrb[0].mxu0
      %v6170 = vpop.f32.mrb[0].mxu0
      %v6171 = vadd.f32 %v6074, %v6170
      %v6172 = vpop.f32.mrb[0].mxu0
      %6173 = vmatprep.mubr.bf16.mxu0 %v5405
      %6174 = vmatmul.mubr.bf16.gmra.mrb[0].mxu0 %v5404
      %v6175 = vpop.f32.mrb[0].mxu0
      %v6176 = vadd.f32 %v6079, %v6175
      %v6177 = vpop.f32.mrb[0].mxu0
      %v6178 = vpop.f32.mrb[0].mxu0
      %v6179 = vadd.f32 %v6082, %v6178
      %v6180 = vpop.f32.mrb[0].mxu0
      %6181 = vmatprep.mubr.bf16.mxu0 %v5414
      %6182 = vmatmul.mubr.bf16.gmra.mrb[0].mxu0 %v5413
      %v6183 = vpop.f32.mrb[0].mxu0
      %v6184 = vadd.f32 %v6087, %v6183
      %v6185 = vpop.f32.mrb[0].mxu0
      %v6186 = vpop.f32.mrb[0].mxu0
      %v6187 = vadd.f32 %v6090, %v6186
      %v6188 = vpop.f32.mrb[0].mxu0
      %6189 = vdwg.mxu0
      %6190 = vmatprep.subr.bf16.mxu0 0
      %6191 = vmatpush1.bf16.msra.mxu0 %v5884
      %6192 = vmatprep.subr.bf16.mxu0 0
      %6193 = vmatpush1.bf16.msra.mxu0 %v5885
      %6194 = vmatprep.subr.bf16.mxu0 0
      %6195 = vmatpush1.bf16.msra.mxu0 %v5886
      %6196 = vmatprep.subr.bf16.mxu0 0
      %6197 = vmatpush1.bf16.msra.mxu0 %v5887
      %6198 = vmatprep.subr.bf16.mxu0 0
      %6199 = vmatpush1.bf16.msra.mxu0 %v5888
      %6200 = vmatprep.subr.bf16.mxu0 0
      %6201 = vmatpush1.bf16.msra.mxu0 %v5889
      %6202 = vmatprep.subr.bf16.mxu0 0
      %6203 = vmatpush1.bf16.msra.mxu0 %v5890
      %6204 = vmatprep.subr.bf16.mxu0 0
      %6205 = vmatpush1.bf16.msra.mxu0 %v5891
      %6206 = vmatprep.subr.bf16.mxu0 0
      %6207 = vmatpush1.bf16.msra.mxu0 %v5892
      %6208 = vmatprep.subr.bf16.mxu0 0
      %6209 = vmatpush1.bf16.msra.mxu0 %v5893
      %6210 = vmatprep.subr.bf16.mxu0 0
      %6211 = vmatpush1.bf16.msra.mxu0 %v5894
      %6212 = vmatprep.subr.bf16.mxu0 0
      %6213 = vmatpush1.bf16.msra.mxu0 %v5895
      %6214 = vmatprep.subr.bf16.mxu0 0
      %6215 = vmatpush1.bf16.msra.mxu0 %v5896
      %6216 = vmatprep.subr.bf16.mxu0 0
      %6217 = vmatpush1.bf16.msra.mxu0 %v5897
      %6218 = vmatprep.subr.bf16.mxu0 0
      %6219 = vmatpush1.bf16.msra.mxu0 %v5898
      %6220 = vmatprep.subr.bf16.mxu0 0
      %6221 = vmatpush1.bf16.msra.mxu0 %v5899
      %6222 = vmatprep.mubr.bf16.mxu0 %v5353
      %6223 = vmatmul.mubr.bf16.gmra.mrb[0].mxu0 %v5352
      %v6224 = vpop.f32.mrb[0].mxu0
      %v6225 = vadd.f32 %v6128, %v6224
      %v6226 = vpop.f32.mrb[0].mxu0
      %v6227 = vpop.f32.mrb[0].mxu0
      %v6228 = vadd.f32 %v6131, %v6227
      %v6229 = vpop.f32.mrb[0].mxu0
      %6230 = vmatprep.mubr.bf16.mxu0 %v5362
      %6231 = vmatmul.mubr.bf16.gmra.mrb[0].mxu0 %v5361
      %v6232 = vpop.f32.mrb[0].mxu0
      %v6233 = vadd.f32 %v6136, %v6232
      %v6234 = vpop.f32.mrb[0].mxu0
      %v6235 = vpop.f32.mrb[0].mxu0
      %v6236 = vadd.f32 %v6139, %v6235
      %v6237 = vpop.f32.mrb[0].mxu0
      %6238 = vmatprep.mubr.bf16.mxu0 %v5371
      %6239 = vmatmul.mubr.bf16.gmra.mrb[0].mxu0 %v5370
      %v6240 = vpop.f32.mrb[0].mxu0
      %v6241 = vadd.f32 %v6144, %v6240
      %v6242 = vpop.f32.mrb[0].mxu0
      %v6243 = vpop.f32.mrb[0].mxu0
      %v6244 = vadd.f32 %v6147, %v6243
      %v6245 = vpop.f32.mrb[0].mxu0
      %6246 = vmatprep.mubr.bf16.mxu0 %v5380
      %6247 = vmatmul.mubr.bf16.gmra.mrb[0].mxu0 %v5379
      %v6248 = vpop.f32.mrb[0].mxu0
      %v6249 = vadd.f32 %v6152, %v6248
      %v6250 = vpop.f32.mrb[0].mxu0
      %v6251 = vpop.f32.mrb[0].mxu0
      %v6252 = vadd.f32 %v6155, %v6251
      %v6253 = vpop.f32.mrb[0].mxu0
      %6254 = vmatprep.mubr.bf16.mxu0 %v5389
      %6255 = vmatmul.mubr.bf16.gmra.mrb[0].mxu0 %v5388
      %v6256 = vpop.f32.mrb[0].mxu0
      %v6257 = vadd.f32 %v6160, %v6256
      %v6258 = vpop.f32.mrb[0].mxu0
      %v6259 = vpop.f32.mrb[0].mxu0
      %v6260 = vadd.f32 %v6163, %v6259
      %v6261 = vpop.f32.mrb[0].mxu0
      %6262 = vmatprep.mubr.bf16.mxu0 %v5398
      %6263 = vmatmul.mubr.bf16.gmra.mrb[0].mxu0 %v5397
      %v6264 = vpop.f32.mrb[0].mxu0
      %v6265 = vadd.f32 %v6168, %v6264
      %v6266 = vpop.f32.mrb[0].mxu0
      %v6267 = vpop.f32.mrb[0].mxu0
      %v6268 = vadd.f32 %v6171, %v6267
      %v6269 = vpop.f32.mrb[0].mxu0
      %6270 = vmatprep.mubr.bf16.mxu0 %v5407
      %6271 = vmatmul.mubr.bf16.gmra.mrb[0].mxu0 %v5406
      %v6272 = vpop.f32.mrb[0].mxu0
      %v6273 = vadd.f32 %v6176, %v6272
      %v6274 = vpop.f32.mrb[0].mxu0
      %v6275 = vpop.f32.mrb[0].mxu0
      %v6276 = vadd.f32 %v6179, %v6275
      %v6277 = vpop.f32.mrb[0].mxu0
      %6278 = vmatprep.mubr.bf16.mxu0 %v5416
      %6279 = vmatmul.mubr.bf16.gmra.mrb[0].mxu0 %v5415
      %v6280 = vpop.f32.mrb[0].mxu0
      %v6281 = vadd.f32 %v6184, %v6280
      %v6282 = vpop.f32.mrb[0].mxu0
      %v6283 = vpop.f32.mrb[0].mxu0
      %v6284 = vadd.f32 %v6187, %v6283
      %v6285 = vpop.f32.mrb[0].mxu0
      %6286 = vdwg.mxu0
      %6287 = vmatprep.subr.bf16.mxu0 0
      %6288 = vmatpush1.bf16.msra.mxu0 %v5900
      %6289 = vmatprep.subr.bf16.mxu0 0
      %6290 = vmatpush1.bf16.msra.mxu0 %v5901
      %6291 = vmatprep.subr.bf16.mxu0 0
      %6292 = vmatpush1.bf16.msra.mxu0 %v5902
      %6293 = vmatprep.subr.bf16.mxu0 0
      %6294 = vmatpush1.bf16.msra.mxu0 %v5903
      %6295 = vmatprep.subr.bf16.mxu0 0
      %6296 = vmatpush1.bf16.msra.mxu0 %v5904
      %6297 = vmatprep.subr.bf16.mxu0 0
      %6298 = vmatpush1.bf16.msra.mxu0 %v5905
      %6299 = vmatprep.subr.bf16.mxu0 0
      %6300 = vmatpush1.bf16.msra.mxu0 %v5906
      %6301 = vmatprep.subr.bf16.mxu0 0
      %6302 = vmatpush1.bf16.msra.mxu0 %v5907
      %6303 = vmatprep.subr.bf16.mxu0 0
      %6304 = vmatpush1.bf16.msra.mxu0 %v5908
      %6305 = vmatprep.subr.bf16.mxu0 0
      %6306 = vmatpush1.bf16.msra.mxu0 %v5909
      %6307 = vmatprep.subr.bf16.mxu0 0
      %6308 = vmatpush1.bf16.msra.mxu0 %v5910
      %6309 = vmatprep.subr.bf16.mxu0 0
      %6310 = vmatpush1.bf16.msra.mxu0 %v5911
      %6311 = vmatprep.subr.bf16.mxu0 0
      %6312 = vmatpush1.bf16.msra.mxu0 %v5912
      %6313 = vmatprep.subr.bf16.mxu0 0
      %6314 = vmatpush1.bf16.msra.mxu0 %v5913
      %6315 = vmatprep.subr.bf16.mxu0 0
      %6316 = vmatpush1.bf16.msra.mxu0 %v5914
      %6317 = vmatprep.subr.bf16.mxu0 0
      %6318 = vmatpush1.bf16.msra.mxu0 %v5915
      %6319 = vmatprep.mubr.bf16.mxu0 %v5355
      %6320 = vmatmul.mubr.bf16.gmra.mrb[0].mxu0 %v5354
      %v6321 = vpop.f32.mrb[0].mxu0
      %v6322 = vadd.f32 %v6225, %v6321
      %v6323 = vpop.f32.mrb[0].mxu0
      %v6324 = vpop.f32.mrb[0].mxu0
      %v6325 = vadd.f32 %v6228, %v6324
      %v6326 = vpop.f32.mrb[0].mxu0
      %6327 = vmatprep.mubr.bf16.mxu0 %v5364
      %6328 = vmatmul.mubr.bf16.gmra.mrb[0].mxu0 %v5363
      %v6329 = vpop.f32.mrb[0].mxu0
      %v6330 = vadd.f32 %v6233, %v6329
      %v6331 = vpop.f32.mrb[0].mxu0
      %v6332 = vpop.f32.mrb[0].mxu0
      %v6333 = vadd.f32 %v6236, %v6332
      %v6334 = vpop.f32.mrb[0].mxu0
      %6335 = vmatprep.mubr.bf16.mxu0 %v5373
      %6336 = vmatmul.mubr.bf16.gmra.mrb[0].mxu0 %v5372
      %v6337 = vpop.f32.mrb[0].mxu0
      %v6338 = vadd.f32 %v6241, %v6337
      %v6339 = vpop.f32.mrb[0].mxu0
      %v6340 = vpop.f32.mrb[0].mxu0
      %v6341 = vadd.f32 %v6244, %v6340
      %v6342 = vpop.f32.mrb[0].mxu0
      %6343 = vmatprep.mubr.bf16.mxu0 %v5382
      %6344 = vmatmul.mubr.bf16.gmra.mrb[0].mxu0 %v5381
      %v6345 = vpop.f32.mrb[0].mxu0
      %v6346 = vadd.f32 %v6249, %v6345
      %v6347 = vpop.f32.mrb[0].mxu0
      %v6348 = vpop.f32.mrb[0].mxu0
      %v6349 = vadd.f32 %v6252, %v6348
      %v6350 = vpop.f32.mrb[0].mxu0
      %6351 = vmatprep.mubr.bf16.mxu0 %v5391
      %6352 = vmatmul.mubr.bf16.gmra.mrb[0].mxu0 %v5390
      %v6353 = vpop.f32.mrb[0].mxu0
      %v6354 = vadd.f32 %v6257, %v6353
      %v6355 = vpop.f32.mrb[0].mxu0
      %v6356 = vpop.f32.mrb[0].mxu0
      %v6357 = vadd.f32 %v6260, %v6356
      %v6358 = vpop.f32.mrb[0].mxu0
      %6359 = vmatprep.mubr.bf16.mxu0 %v5400
      %6360 = vmatmul.mubr.bf16.gmra.mrb[0].mxu0 %v5399
      %v6361 = vpop.f32.mrb[0].mxu0
      %v6362 = vadd.f32 %v6265, %v6361
      %v6363 = vpop.f32.mrb[0].mxu0
      %v6364 = vpop.f32.mrb[0].mxu0
      %v6365 = vadd.f32 %v6268, %v6364
      %v6366 = vpop.f32.mrb[0].mxu0
      %6367 = vmatprep.mubr.bf16.mxu0 %v5409
      %6368 = vmatmul.mubr.bf16.gmra.mrb[0].mxu0 %v5408
      %v6369 = vpop.f32.mrb[0].mxu0
      %v6370 = vadd.f32 %v6273, %v6369
      %v6371 = vpop.f32.mrb[0].mxu0
      %v6372 = vpop.f32.mrb[0].mxu0
      %v6373 = vadd.f32 %v6276, %v6372
      %v6374 = vpop.f32.mrb[0].mxu0
      %6375 = vmatprep.mubr.bf16.mxu0 %v5418
      %6376 = vmatmul.mubr.bf16.gmra.mrb[0].mxu0 %v5417
      %v6377 = vpop.f32.mrb[0].mxu0
      %v6378 = vadd.f32 %v6281, %v6377
      %v6379 = vpop.f32.mrb[0].mxu0
      %v6380 = vpop.f32.mrb[0].mxu0
      %v6381 = vadd.f32 %v6284, %v6380
      %v6382 = vpop.f32.mrb[0].mxu0
      %6383 = vdwg.mxu0
      %6384 = vmatprep.subr.bf16.mxu0 0
      %6385 = vmatpush1.bf16.msra.mxu0 %v5916
      %6386 = vmatprep.subr.bf16.mxu0 0
      %6387 = vmatpush1.bf16.msra.mxu0 %v5917
      %6388 = vmatprep.subr.bf16.mxu0 0
      %6389 = vmatpush1.bf16.msra.mxu0 %v5918
      %6390 = vmatprep.subr.bf16.mxu0 0
      %6391 = vmatpush1.bf16.msra.mxu0 %v5919
      %6392 = vmatprep.subr.bf16.mxu0 0
      %6393 = vmatpush1.bf16.msra.mxu0 %v5920
      %6394 = vmatprep.subr.bf16.mxu0 0
      %6395 = vmatpush1.bf16.msra.mxu0 %v5921
      %6396 = vmatprep.subr.bf16.mxu0 0
      %6397 = vmatpush1.bf16.msra.mxu0 %v5922
      %6398 = vmatprep.subr.bf16.mxu0 0
      %6399 = vmatpush1.bf16.msra.mxu0 %v5923
      %6400 = vmatprep.subr.bf16.mxu0 0
      %6401 = vmatpush1.bf16.msra.mxu0 0
      %6402 = vmatprep.subr.bf16.mxu0 0
      %6403 = vmatpush1.bf16.msra.mxu0 0
      %6404 = vmatprep.subr.bf16.mxu0 0
      %6405 = vmatpush1.bf16.msra.mxu0 0
      %6406 = vmatprep.subr.bf16.mxu0 0
      %6407 = vmatpush1.bf16.msra.mxu0 0
      %6408 = vmatprep.subr.bf16.mxu0 0
      %6409 = vmatpush1.bf16.msra.mxu0 0
      %6410 = vmatprep.subr.bf16.mxu0 0
      %6411 = vmatpush1.bf16.msra.mxu0 0
      %6412 = vmatprep.subr.bf16.mxu0 0
      %6413 = vmatpush1.bf16.msra.mxu0 0
      %6414 = vmatprep.subr.bf16.mxu0 0
      %6415 = vmatpush1.bf16.msra.mxu0 0
      %6416 = vmatprep.mubr.bf16.mxu0 0
      %6417 = vmatmul.mubr.bf16.gmra.mrb[0].mxu0 %v5356
      %v6418 = vpop.f32.mrb[0].mxu0
      %v6419 = vadd.f32 %v6322, %v6418
      %v6420 = vpop.f32.mrb[0].mxu0
      %v6421 = vpop.f32.mrb[0].mxu0
      %v6422 = vadd.f32 %v6325, %v6421
      %v6423 = vpop.f32.mrb[0].mxu0
      %6424 = vmatprep.mubr.bf16.mxu0 0
      %6425 = vmatmul.mubr.bf16.gmra.mrb[0].mxu0 %v5365
      %v6426 = vpop.f32.mrb[0].mxu0
      %v6427 = vadd.f32 %v6330, %v6426
      %v6428 = vpop.f32.mrb[0].mxu0
      %v6429 = vpop.f32.mrb[0].mxu0
      %v6430 = vadd.f32 %v6333, %v6429
      %v6431 = vpop.f32.mrb[0].mxu0
      %6432 = vmatprep.mubr.bf16.mxu0 0
      %6433 = vmatmul.mubr.bf16.gmra.mrb[0].mxu0 %v5374
      %v6434 = vpop.f32.mrb[0].mxu0
      %v6435 = vadd.f32 %v6338, %v6434
      %v6436 = vpop.f32.mrb[0].mxu0
      %v6437 = vpop.f32.mrb[0].mxu0
      %v6438 = vadd.f32 %v6341, %v6437
      %v6439 = vpop.f32.mrb[0].mxu0
      %6440 = vmatprep.mubr.bf16.mxu0 0
      %6441 = vmatmul.mubr.bf16.gmra.mrb[0].mxu0 %v5383
      %v6442 = vpop.f32.mrb[0].mxu0
      %v6443 = vadd.f32 %v6346, %v6442
      %v6444 = vpop.f32.mrb[0].mxu0
      %v6445 = vpop.f32.mrb[0].mxu0
      %v6446 = vadd.f32 %v6349, %v6445
      %v6447 = vpop.f32.mrb[0].mxu0
      %6448 = vmatprep.mubr.bf16.mxu0 0
      %6449 = vmatmul.mubr.bf16.gmra.mrb[0].mxu0 %v5392
      %v6450 = vpop.f32.mrb[0].mxu0
      %v6451 = vadd.f32 %v6354, %v6450
      %v6452 = vpop.f32.mrb[0].mxu0
      %v6453 = vpop.f32.mrb[0].mxu0
      %v6454 = vadd.f32 %v6357, %v6453
      %v6455 = vpop.f32.mrb[0].mxu0
      %6456 = vmatprep.mubr.bf16.mxu0 0
      %6457 = vmatmul.mubr.bf16.gmra.mrb[0].mxu0 %v5401
      %v6458 = vpop.f32.mrb[0].mxu0
      %v6459 = vadd.f32 %v6362, %v6458
      %v6460 = vpop.f32.mrb[0].mxu0
      %v6461 = vpop.f32.mrb[0].mxu0
      %v6462 = vadd.f32 %v6365, %v6461
      %v6463 = vpop.f32.mrb[0].mxu0
      %6464 = vmatprep.mubr.bf16.mxu0 0
      %6465 = vmatmul.mubr.bf16.gmra.mrb[0].mxu0 %v5410
      %v6466 = vpop.f32.mrb[0].mxu0
      %v6467 = vadd.f32 %v6370, %v6466
      %v6468 = vpop.f32.mrb[0].mxu0
      %v6469 = vpop.f32.mrb[0].mxu0
      %v6470 = vadd.f32 %v6373, %v6469
      %v6471 = vpop.f32.mrb[0].mxu0
      %6472 = vmatprep.mubr.bf16.mxu0 0
      %6473 = vmatmul.mubr.bf16.gmra.mrb[0].mxu0 %v5419
      %v6474 = vpop.f32.mrb[0].mxu0
      %v6475 = vadd.f32 %v6378, %v6474
      %v6476 = vpop.f32.mrb[0].mxu0
      %v6477 = vpop.f32.mrb[0].mxu0
      %v6478 = vadd.f32 %v6381, %v6477
      %v6479 = vpop.f32.mrb[0].mxu0
      %6480 = vdwg.mxu0
      %v6481 = vld [vmem:[%s413] sm:$0xff]
      %v6482 = vld [vmem:[%s413 + $0x8] sm:$0xff]
      %v6483 = vld [vmem:[%s413 + $0x10] sm:$0xff]
      %v6484 = vld [vmem:[%s413 + $0x18] sm:$0xff]
      %v6485 = vld [vmem:[%s413 + $0x20] sm:$0xff]
      %v6486 = vld [vmem:[%s413 + $0x28] sm:$0xff]
      %v6487 = vld [vmem:[%s413 + $0x30] sm:$0xff]
      %v6488 = vld [vmem:[%s413 + $0x38] sm:$0xff]
      %v6489 = vld [vmem:[%s413 + $0x40] sm:$0xff]
      %v6490 = vld [vmem:[%s413 + $0x48] sm:$0xff]
      %v6491 = vld [vmem:[%s413 + $0x50] sm:$0xff]
      %v6492 = vld [vmem:[%s413 + $0x58] sm:$0xff]
      %v6493 = vld [vmem:[%s413 + $0x60] sm:$0xff]
      %v6494 = vld [vmem:[%s413 + $0x68] sm:$0xff]
      %v6495 = vld [vmem:[%s413 + $0x70] sm:$0xff]
      %v6496 = vld [vmem:[%s413 + $0x78] sm:$0xff]
      %v6497 = vld [vmem:[%s6] sm:$0x1]
      %v6499 = vlaneseq
      %v6500 = vshrl.u32 %v6499, 7
      %v6501 = vsub.s32 0, %v6500
      %v6502 = vrot.slane %v6497, %v6501
      %v6504 = vadd.f32 %v6419, %v6502
      %v6505 = vadd.f32 %v6422, %v6502
      %v6506 = vadd.f32 %v6427, %v6502
      %v6507 = vadd.f32 %v6430, %v6502
      %v6508 = vadd.f32 %v6435, %v6502
      %v6509 = vadd.f32 %v6438, %v6502
      %v6510 = vadd.f32 %v6443, %v6502
      %v6511 = vadd.f32 %v6446, %v6502
      %v6512 = vadd.f32 %v6451, %v6502
      %v6513 = vadd.f32 %v6454, %v6502
      %v6514 = vadd.f32 %v6459, %v6502
      %v6515 = vadd.f32 %v6462, %v6502
      %v6516 = vadd.f32 %v6467, %v6502
      %v6517 = vadd.f32 %v6470, %v6502
      %v6518 = vadd.f32 %v6475, %v6502
      %v6519 = vadd.f32 %v6478, %v6502
      %v6520 = vadd.f32 %v6504, %v6481
      %v6521 = vadd.f32 %v6505, %v6482
      %v6522 = vadd.f32 %v6506, %v6483
      %v6523 = vadd.f32 %v6507, %v6484
      %v6524 = vadd.f32 %v6508, %v6485
      %v6525 = vadd.f32 %v6509, %v6486
      %v6526 = vadd.f32 %v6510, %v6487
      %v6527 = vadd.f32 %v6511, %v6488
      %v6528 = vadd.f32 %v6512, %v6489
      %v6529 = vadd.f32 %v6513, %v6490
      %v6530 = vadd.f32 %v6514, %v6491
      %v6531 = vadd.f32 %v6515, %v6492
      %v6532 = vadd.f32 %v6516, %v6493
      %v6533 = vadd.f32 %v6517, %v6494
      %v6534 = vadd.f32 %v6518, %v6495
      %v6535 = vadd.f32 %v6519, %v6496
      %6536 = vst [vmem:[%s329] sm:$0xff] %v6520
      %6537 = vst [vmem:[%s329 + $0x8] sm:$0xff] %v6521
      %6538 = vst [vmem:[%s329 + $0x10] sm:$0xff] %v6522
      %6539 = vst [vmem:[%s329 + $0x18] sm:$0xff] %v6523
      %6540 = vst [vmem:[%s329 + $0x20] sm:$0xff] %v6524
      %6541 = vst [vmem:[%s329 + $0x28] sm:$0xff] %v6525
      %6542 = vst [vmem:[%s329 + $0x30] sm:$0xff] %v6526
      %6543 = vst [vmem:[%s329 + $0x38] sm:$0xff] %v6527
      %6544 = vst [vmem:[%s329 + $0x40] sm:$0xff] %v6528
      %6545 = vst [vmem:[%s329 + $0x48] sm:$0xff] %v6529
      %6546 = vst [vmem:[%s329 + $0x50] sm:$0xff] %v6530
      %6547 = vst [vmem:[%s329 + $0x58] sm:$0xff] %v6531
      %6548 = vst [vmem:[%s329 + $0x60] sm:$0xff] %v6532
      %6549 = vst [vmem:[%s329 + $0x68] sm:$0xff] %v6533
      %6550 = vst [vmem:[%s329 + $0x70] sm:$0xff] %v6534
      %6551 = vst [vmem:[%s329 + $0x78] sm:$0xff] %v6535
      %s6552 = smul.u32 8, %s24
      %p6553 = scmp.lt.s32.totalorder %s23, 1
      %s6554 = scalar_select %p6553, %s23, 1
      %p6555 = scmp.lt.s32.totalorder %s6552, 15
      %s6556 = scalar_select %p6555, %s6552, 15
      %s6557 = smul.addr %s6556, 2
      %s6558 = smul.addr %s6554, 32
      %s6559 = sadd.s32 %s6557, %s6558
      %s6560 = smul.addr %s6559, 8
      %s6561 = scalar_lea.vmem %s8, %s6560
      // Predicated region
      $region77: #{ibasic_block_pallas.1} parent=51 // pred_check
        %p6562 = pneg %p224
      $region78: #{ibasic_block_pallas.1} parent=51 // pred_check_branch
        %6564 = sbr.rel (%p6562) target = $region80
      $region79: #{ibasic_block_pallas.1} parent=51 // pred_region
        %s6565 = smul.u32 8, %s24
      $region80: #{ibasic_block_pallas.1} parent=51 // pred_fallthru
        _
    $region52: #{ibasic_block_pallas.1} parent=5 // pred_fallthru
      _
    %p6566 = scmp.le.s32.totalorder 2, %s14
    // Predicated region
    $region81: #{ibasic_block_pallas.1} parent=5 // pred_check
      %p6567 = pneg %p6566
    $region82: #{ibasic_block_pallas.1} parent=5 // pred_check_branch
      %6569 = sbr.rel (%p6567) target = $region84
    $region83: #{ibasic_block_pallas.1} parent=5 // pred_region
      %s6570 = ssub.s32 %s14, 2
      // Predicated region
      $region85: #{ibasic_block_pallas.1} parent=83 // pred_check
        %p6571 = pneg %p230
      $region86: #{ibasic_block_pallas.1} parent=83 // pred_check_branch
        %6573 = sbr.rel (%p6571) target = $region88
      $region87: #{ibasic_block_pallas.1} parent=83 // pred_region
        %s6574 = smul.u32 8, %s26
        %p6575 = scmp.lt.s32.totalorder %s25, 1
        %s6576 = scalar_select %p6575, %s25, 1
        %p6577 = scmp.lt.s32.totalorder %s6574, 15
        %s6578 = scalar_select %p6577, %s6574, 15
        %s6579 = smul.addr %s6578, 2
        %s6580 = smul.addr %s6576, 32
        %s6581 = sadd.s32 %s6579, %s6580
        %s6582 = smul.addr %s6581, 8
        %s6583 = scalar_lea.vmem %s8, %s6582
      $region88: #{ibasic_block_pallas.1} parent=83 // pred_fallthru
        _
    $region84: #{ibasic_block_pallas.1} parent=5 // pred_fallthru
      _
  $region6: #{ibasic_block_pallas.1} parent=0 // loop_footer
    %s18 = sadd.s32 1, %s14
  $region7: #{ibasic_block_pallas.1} parent=0 // loop_footer_branch
    %13 = sbr.rel target = $region3
  $region8: #{ibasic_block_pallas.1} parent=0 // loop_exit
    _

</llo_original>
